<compile_context>
chip_gen: v7x
topology: tpu7x:2x2x1
jax: 0.10.0
libtpu: 0.0.40
codegen_flags: <defaults>
</compile_context>

<pallas_src>
import numpy as np
import jax
import jax.numpy as jnp
from jax.experimental import pallas as pl
from jax.experimental.pallas import tpu as pltpu


# ----------------------------------------------------------------------------
# 1x1 conv (mid branch): tiled bf16 MXU matmul, channels-major, lane-dense out.
#   Y[b, :, s] = relu(W @ X[b, :, s] + bias),  X:(b, Cin, HW), W:(Cout, Cin)
# ----------------------------------------------------------------------------
def pointwise_conv(x_bf16, w_bf16, bias_f32, relu=True):
    b, cin, hw = x_bf16.shape
    cout = w_bf16.shape[0]
    tn = 128 if hw % 128 == 0 else hw   # spatial (lane) tile; bump to 512 for production HW
    tk = cin                            # K is tiny here; tile (e.g. 256) for large Cin
    ns, nk = hw // tn, cin // tk

    def kernel(w_ref, b_ref, x_ref, o_ref, acc_ref):
        k = pl.program_id(2)

        @pl.when(k == 0)
        def _():
            acc_ref[...] = jnp.zeros_like(acc_ref)

        acc_ref[...] += jnp.dot(w_ref[...], x_ref[0],
                                preferred_element_type=jnp.float32)

        @pl.when(k == pl.num_programs(2) - 1)
        def _():
            y = acc_ref[...] + b_ref[...]
            if relu:
                y = jnp.maximum(y, 0.0)
            o_ref[0] = y

    return pl.pallas_call(
        kernel,
        out_shape=jax.ShapeDtypeStruct((b, cout, hw), jnp.float32),
        grid=(b, ns, nk),
        in_specs=[
            pl.BlockSpec((cout, tk), lambda bi, si, ki: (0, ki)),
            pl.BlockSpec((cout, 1), lambda bi, si, ki: (0, 0)),
            pl.BlockSpec((1, tk, tn), lambda bi, si, ki: (bi, ki, si)),
        ],
        out_specs=pl.BlockSpec((1, cout, tn), lambda bi, si, ki: (bi, 0, si)),
        scratch_shapes=[pltpu.VMEM((cout, tn), jnp.float32)],
        compiler_params=pltpu.CompilerParams(
            dimension_semantics=("parallel", "parallel", "arbitrary")),
    )(w_bf16, bias_f32, x_bf16)


# ----------------------------------------------------------------------------
# GP branch, fully fused: global-avg-pool + (center tap of 3x3 conv) + ReLU.
# ----------------------------------------------------------------------------
def gp_branch(x_flat_f32, w_center_f32, bias_f32, hw_true):
    b, cin, hw = x_flat_f32.shape
    cout = w_center_f32.shape[0]
    inv = 1.0 / float(hw_true)

    def kernel(w_ref, b_ref, x_ref, o_ref):
        pooled = jnp.sum(x_ref[0], axis=1, keepdims=True) * inv     # (Cin, 1)
        y = jnp.dot(w_ref[...], pooled, preferred_element_type=jnp.float32)
        o_ref[0] = jnp.maximum(y + b_ref[...], 0.0)                 # (Cout, 1)

    return pl.pallas_call(
        kernel,
        out_shape=jax.ShapeDtypeStruct((b, cout, 1), jnp.float32),
        grid=(b,),
        in_specs=[
            pl.BlockSpec((cout, cin), lambda i: (0, 0)),
            pl.BlockSpec((cout, 1), lambda i: (0, 0)),
            pl.BlockSpec((1, cin, hw), lambda i: (i, 0, 0)),
        ],
        out_specs=pl.BlockSpec((1, cout, 1), lambda i: (i, 0, 0)),
        compiler_params=pltpu.CompilerParams(dimension_semantics=("parallel",)),
    )(w_center_f32, bias_f32, x_flat_f32)


# ----------------------------------------------------------------------------
# 3x3 / stride-2 / pad-1 conv + ReLU (ConvBnAct), NCHW in/out.
# The 9 taps are accumulated on the VPU inside the kernel; the stride is handled
# by a (row, col) parity split done once in the wrapper (no amplification).
# ----------------------------------------------------------------------------
def down_conv(x_nchw, w_oihw, bias):
    b, cin, H, W = x_nchw.shape
    cout = w_oihw.shape[0]
    assert H % 2 == 0 and W % 2 == 0, "even spatial dims expected"
    Ho, Wo = (H - 1) // 2 + 1, (W - 1) // 2 + 1
    xp = jnp.pad(x_nchw, ((0, 0), (0, 0), (1, 1), (1, 1)))
    Hh, Wh = (H + 2) // 2, (W + 2) // 2
    # phase layout: channel index = (row_parity*2 + col_parity)*Cin + ci
    ph = jnp.stack([xp[:, :, 0::2, :], xp[:, :, 1::2, :]], axis=1)   # (b,2,Cin,Hh,W+2)
    ph = jnp.stack([ph[..., 0::2], ph[..., 1::2]], axis=2)           # (b,2,2,Cin,Hh,Wh)
    ph = ph.reshape(b, 4 * cin, Hh, Wh)

    wflat = w_oihw.reshape(-1).astype(jnp.float32)                   # (co,ci,kh,kw) order
    bflat = bias.astype(jnp.float32)

    def kernel(w_ref, b_ref, x_ref, o_ref):
        slabs = [x_ref[0, p] for p in range(4 * cin)]                # (Hh, Wh) each
        for co in range(cout):
            acc = jnp.zeros((Ho, Wo), jnp.float32)
            for ci in range(cin):
                for kh in range(3):
                    for kw in range(3):
                        t = slabs[((kh % 2) * 2 + (kw % 2)) * cin + ci]
                        wv = w_ref[((co * cin + ci) * 3 + kh) * 3 + kw]
                        acc = acc + wv * t[kh // 2:kh // 2 + Ho, kw // 2:kw // 2 + Wo]
            o_ref[0, co] = jnp.maximum(acc + b_ref[co], 0.0)

    return pl.pallas_call(
        kernel,
        out_shape=jax.ShapeDtypeStruct((b, cout, Ho, Wo), jnp.float32),
        grid=(b,),
        in_specs=[
            pl.BlockSpec(memory_space=pltpu.MemorySpace.SMEM),
            pl.BlockSpec(memory_space=pltpu.MemorySpace.SMEM),
            pl.BlockSpec((1, 4 * cin, Hh, Wh), lambda i: (i, 0, 0, 0)),
        ],
        out_specs=pl.BlockSpec((1, cout, Ho, Wo), lambda i: (i, 0, 0, 0)),
        compiler_params=pltpu.CompilerParams(dimension_semantics=("parallel",)),
    )(wflat, bflat, ph)


# ----------------------------------------------------------------------------
# ChannelPool (max & mean over C) + 3x3/s1/p1 ConvBn (2->1 channel), fused,
# pure VPU (18 MACs / pixel), output squeezed to (b, H, W).
# (Padding before pooling is equivalent: the zero pad ring gives max=mean=0.)
# ----------------------------------------------------------------------------
def cpool_reduce_conv(d_nchw, w_oihw, bias):
    b, cd, Hd, Wd = d_nchw.shape
    dp = jnp.pad(d_nchw, ((0, 0), (0, 0), (1, 1), (1, 1)))
    Hp, Wp = Hd + 2, Wd + 2
    wflat = w_oihw.reshape(-1).astype(jnp.float32)   # [9 taps for max-ch, 9 taps for mean-ch]
    bflat = bias.astype(jnp.float32)
    inv_c = 1.0 / float(cd)

    def kernel(w_ref, b_ref, x_ref, o_ref):
        x = x_ref[0]                                 # (Cd, Hp, Wp)
        mx = jnp.max(x, axis=0)
        mn = jnp.sum(x, axis=0) * inv_c
        acc = jnp.zeros((Hd, Wd), jnp.float32)
        for kh in range(3):
            for kw in range(3):
                acc = acc + w_ref[kh * 3 + kw] * mx[kh:kh + Hd, kw:kw + Wd]
                acc = acc + w_ref[9 + kh * 3 + kw] * mn[kh:kh + Hd, kw:kw + Wd]
        o_ref[0] = acc + b_ref[0]                    # ConvBn: no activation

    return pl.pallas_call(
        kernel,
        out_shape=jax.ShapeDtypeStruct((b, Hd, Wd), jnp.float32),
        grid=(b,),
        in_specs=[
            pl.BlockSpec(memory_space=pltpu.MemorySpace.SMEM),
            pl.BlockSpec(memory_space=pltpu.MemorySpace.SMEM),
            pl.BlockSpec((1, cd, Hp, Wp), lambda i: (i, 0, 0, 0)),
        ],
        out_specs=pl.BlockSpec((1, Hd, Wd), lambda i: (i, 0, 0)),
        compiler_params=pltpu.CompilerParams(dimension_semantics=("parallel",)),
    )(wflat, bflat, dp)


# ----------------------------------------------------------------------------
# Fusion: bilinear upsample (up(u) = A_h @ u @ A_w^T, A_w passed pre-transposed)
# of the 3 scales, sigmoid gate, residual add.  Output written directly in
# NCHW, row-tiled over H.
# ----------------------------------------------------------------------------
def fuse_upsample_gate(u1, u2, u3, A1h, A1wT, A2h, A2wT, A3h, A3wT, mid, gp):
    b, cout, H, W = mid.shape
    th = 8 if H % 8 == 0 else H        # row tile keeps VMEM bounded at production sizes

    def kernel(u1_ref, u2_ref, u3_ref, a1h_ref, a1wT_ref, a2h_ref, a2wT_ref,
               a3h_ref, a3wT_ref, mid_ref, gp_ref, o_ref):
        def up(ah_ref, awT_ref, u_ref):
            t = jnp.dot(ah_ref[...], u_ref[0], preferred_element_type=jnp.float32)
            return jnp.dot(t, awT_ref[...], preferred_element_type=jnp.float32)

        sam = (up(a1h_ref, a1wT_ref, u1_ref) + up(a2h_ref, a2wT_ref, u2_ref)
               + up(a3h_ref, a3wT_ref, u3_ref))     # (th, W)
        sig = jax.nn.sigmoid(sam)
        o_ref[0] = sig[None, :, :] * mid_ref[0] + gp_ref[0][:, :, None]

    def u_spec(u):
        return pl.BlockSpec((1,) + u.shape[1:], lambda bi, hi: (bi, 0, 0))

    def ah_spec(a):
        return pl.BlockSpec((th, a.shape[1]), lambda bi, hi: (hi, 0))

    def awT_spec(a):
        return pl.BlockSpec(a.shape, lambda bi, hi: (0, 0))

    return pl.pallas_call(
        kernel,
        out_shape=jax.ShapeDtypeStruct((b, cout, H, W), jnp.float32),
        grid=(b, H // th),
        in_specs=[
            u_spec(u1), u_spec(u2), u_spec(u3),
            ah_spec(A1h), awT_spec(A1wT),
            ah_spec(A2h), awT_spec(A2wT),
            ah_spec(A3h), awT_spec(A3wT),
            pl.BlockSpec((1, cout, th, W), lambda bi, hi: (bi, 0, hi, 0)),
            pl.BlockSpec((1, cout, 1), lambda bi, hi: (bi, 0, 0)),
        ],
        out_specs=pl.BlockSpec((1, cout, th, W), lambda bi, hi: (bi, 0, hi, 0)),
        compiler_params=pltpu.CompilerParams(
            dimension_semantics=("parallel", "parallel")),
    )(u1, u2, u3, A1h, A1wT, A2h, A2wT, A3h, A3wT, mid, gp)


# ----------------------------------------------------------------------------
# JAX glue: folded Conv+BN params, separable bilinear (align_corners) matrices.
# ----------------------------------------------------------------------------
def make_conv_bn(key, cin, cout, k):
    """Conv(bias=False) + BN(eval) folded into OIHW weight + bias."""
    k1, k2, k3 = jax.random.split(key, 3)
    w = 0.1 * jax.random.normal(k1, (cout, cin, k, k), jnp.float32)
    gamma = 1.0 + 0.1 * jax.random.normal(k2, (cout,), jnp.float32)
    beta = 0.1 * jax.random.normal(k3, (cout,), jnp.float32)
    running_mean = jnp.zeros((cout,), jnp.float32)
    running_var = jnp.ones((cout,), jnp.float32)
    eps = 1e-5
    scale = gamma / jnp.sqrt(running_var + eps)
    w_fold = w * scale[:, None, None, None]
    b_fold = beta - running_mean * scale
    return w_fold, b_fold


def bilinear_matrix(out_size, in_size):
    """Separable bilinear interpolation matrix, align_corners=True (PyTorch).

    Built with numpy (static shapes) so it is a compile-time constant.
    """
    if in_size == 1:
        return np.ones((out_size, 1), np.float32)
    o = np.arange(out_size, dtype=np.float32)
    src = o * (in_size - 1) / (out_size - 1)
    i0 = np.clip(np.floor(src).astype(np.int32), 0, in_size - 2)
    frac = src - i0.astype(np.float32)
    A = np.zeros((out_size, in_size), np.float32)
    A[np.arange(out_size), i0] += 1.0 - frac
    A[np.arange(out_size), i0 + 1] += frac
    return A


# ----------------------------------------------------------------------------
# FPA forward (NCHW in, NCHW out, zero layout transposes in between)
# ----------------------------------------------------------------------------
def fpa_forward(x, params):
    b, C, H, W = x.shape
    HW = H * W
    x_flat = x.reshape(b, C, HW)                   # free reshape, channels-major

    # GP branch: pooled 1x1 input is zero-padded, so only the center conv tap matters.
    w_gp, b_gp = params["gp"]
    O = w_gp.shape[0]
    gp = gp_branch(x_flat, w_gp[:, :, 1, 1], b_gp.reshape(O, 1), HW)        # (b, O, 1)

    # mid branch: 1x1 ConvBnAct as tiled bf16 matmul, lane-dense (b, O, HW) output.
    w_mid, b_mid = params["mid"]
    mid = pointwise_conv(x_flat.astype(jnp.bfloat16),
                         w_mid.reshape(O, C).astype(jnp.bfloat16),
                         b_mid.reshape(O, 1), relu=True)                    # (b, O, HW)
    mid = mid.reshape(b, O, H, W)

    # down path (stride-2 3x3 ConvBnAct)
    d1 = down_conv(x, *params["down1"])            # (b, Cd, H/2, W/2)
    d2 = down_conv(d1, *params["down2"])           # (b, Cd, H/4, W/4)
    d3 = down_conv(d2, *params["down3"])           # (b, Cd, H/8, W/8)

    # ChannelPool + reduce ConvBn (fused) per scale
    u1 = cpool_reduce_conv(d1, *params["rc1"])     # (b, H/2, W/2)
    u2 = cpool_reduce_conv(d2, *params["rc2"])     # (b, H/4, W/4)
    u3 = cpool_reduce_conv(d3, *params["rc3"])     # (b, H/8, W/8)

    # separable H / W interpolation matrices (handles non-square feature maps);
    # W-matrix pre-transposed so the kernel runs two plain A@B matmuls.
    A1h, A1wT = bilinear_matrix(H, u1.shape[1]), bilinear_matrix(W, u1.shape[2]).T.copy()
    A2h, A2wT = bilinear_matrix(H, u2.shape[1]), bilinear_matrix(W, u2.shape[2]).T.copy()
    A3h, A3wT = bilinear_matrix(H, u3.shape[1]), bilinear_matrix(W, u3.shape[2]).T.copy()

    return fuse_upsample_gate(u1, u2, u3, A1h, A1wT, A2h, A2wT, A3h, A3wT, mid, gp)


# ----------------------------------------------------------------------------
if __name__ == "__main__":
    B, C, O, H, W = 2, 4, 8, 16, 16
    Cd = int(0.25 * C)   # = 1

    key = jax.random.PRNGKey(0)
    keys = jax.random.split(key, 9)
    params = {
        "gp":    make_conv_bn(keys[0], C, O, 3),
        "mid":   make_conv_bn(keys[1], C, O, 1),
        "down1": make_conv_bn(keys[2], C, Cd, 3),
        "down2": make_conv_bn(keys[3], Cd, Cd, 3),
        "down3": make_conv_bn(keys[4], Cd, Cd, 3),
        "rc1":   make_conv_bn(keys[5], 2, 1, 3),
        "rc2":   make_conv_bn(keys[6], 2, 1, 3),
        "rc3":   make_conv_bn(keys[7], 2, 1, 3),
    }
    x = jax.random.normal(keys[8], (B, C, H, W), jnp.float32)

    out = jax.jit(fpa_forward)(x, params)
    out = jax.block_until_ready(out)
    assert out.shape == (B, O, H, W), out.shape
    assert bool(jnp.all(jnp.isfinite(out)))
    print("KERNEL_OK")
</pallas_src>

<mosaic_0001>
module attributes {stable_mosaic.version = 11 : i64} {
  func.func @kernel(%arg0: i32, %arg1: memref<36xf32, #tpu.memory_space<smem>>, %arg2: memref<1xf32, #tpu.memory_space<smem>>, %arg3: memref<1x16x9x9xf32, #tpu.memory_space<vmem>>, %arg4: memref<1x1x8x8xf32, #tpu.memory_space<vmem>>) attributes {dimension_semantics = [#tpu.dimension_semantics<parallel>], iteration_bounds = array<i64: 2>, scalar_prefetch = 0 : i64, scratch_operands = 0 : i64, tpu.core_type = #tpu.core_type<tc>, window_params = [{transform_indices = @transform_0, window_bounds = array<i64: 36>}, {transform_indices = @transform_1, window_bounds = array<i64: 1>}, {transform_indices = @transform_2, window_bounds = array<i64: 1, 16, 9, 9>}, {transform_indices = @transform_3, window_bounds = array<i64: 1, 1, 8, 8>}]} {
    %c0 = arith.constant 0 : index
    %c0_0 = arith.constant 0 : index
    %c0_1 = arith.constant 0 : index
    %c0_2 = arith.constant 0 : index
    %0 = vector.load %arg3[%c0, %c0_0, %c0_1, %c0_2] : memref<1x16x9x9xf32, #tpu.memory_space<vmem>>, vector<1x1x9x9xf32>
    %1 = vector.shape_cast %0 : vector<1x1x9x9xf32> to vector<9x9xf32>
    %c0_3 = arith.constant 0 : index
    %c1 = arith.constant 1 : index
    %c0_4 = arith.constant 0 : index
    %c0_5 = arith.constant 0 : index
    %2 = vector.load %arg3[%c0_3, %c1, %c0_4, %c0_5] : memref<1x16x9x9xf32, #tpu.memory_space<vmem>>, vector<1x1x9x9xf32>
    %3 = vector.shape_cast %2 : vector<1x1x9x9xf32> to vector<9x9xf32>
    %c0_6 = arith.constant 0 : index
    %c2 = arith.constant 2 : index
    %c0_7 = arith.constant 0 : index
    %c0_8 = arith.constant 0 : index
    %4 = vector.load %arg3[%c0_6, %c2, %c0_7, %c0_8] : memref<1x16x9x9xf32, #tpu.memory_space<vmem>>, vector<1x1x9x9xf32>
    %5 = vector.shape_cast %4 : vector<1x1x9x9xf32> to vector<9x9xf32>
    %c0_9 = arith.constant 0 : index
    %c3 = arith.constant 3 : index
    %c0_10 = arith.constant 0 : index
    %c0_11 = arith.constant 0 : index
    %6 = vector.load %arg3[%c0_9, %c3, %c0_10, %c0_11] : memref<1x16x9x9xf32, #tpu.memory_space<vmem>>, vector<1x1x9x9xf32>
    %7 = vector.shape_cast %6 : vector<1x1x9x9xf32> to vector<9x9xf32>
    %c0_12 = arith.constant 0 : index
    %c4 = arith.constant 4 : index
    %c0_13 = arith.constant 0 : index
    %c0_14 = arith.constant 0 : index
    %8 = vector.load %arg3[%c0_12, %c4, %c0_13, %c0_14] : memref<1x16x9x9xf32, #tpu.memory_space<vmem>>, vector<1x1x9x9xf32>
    %9 = vector.shape_cast %8 : vector<1x1x9x9xf32> to vector<9x9xf32>
    %c0_15 = arith.constant 0 : index
    %c5 = arith.constant 5 : index
    %c0_16 = arith.constant 0 : index
    %c0_17 = arith.constant 0 : index
    %10 = vector.load %arg3[%c0_15, %c5, %c0_16, %c0_17] : memref<1x16x9x9xf32, #tpu.memory_space<vmem>>, vector<1x1x9x9xf32>
    %11 = vector.shape_cast %10 : vector<1x1x9x9xf32> to vector<9x9xf32>
    %c0_18 = arith.constant 0 : index
    %c6 = arith.constant 6 : index
    %c0_19 = arith.constant 0 : index
    %c0_20 = arith.constant 0 : index
    %12 = vector.load %arg3[%c0_18, %c6, %c0_19, %c0_20] : memref<1x16x9x9xf32, #tpu.memory_space<vmem>>, vector<1x1x9x9xf32>
    %13 = vector.shape_cast %12 : vector<1x1x9x9xf32> to vector<9x9xf32>
    %c0_21 = arith.constant 0 : index
    %c7 = arith.constant 7 : index
    %c0_22 = arith.constant 0 : index
    %c0_23 = arith.constant 0 : index
    %14 = vector.load %arg3[%c0_21, %c7, %c0_22, %c0_23] : memref<1x16x9x9xf32, #tpu.memory_space<vmem>>, vector<1x1x9x9xf32>
    %15 = vector.shape_cast %14 : vector<1x1x9x9xf32> to vector<9x9xf32>
    %c0_24 = arith.constant 0 : index
    %c8 = arith.constant 8 : index
    %c0_25 = arith.constant 0 : index
    %c0_26 = arith.constant 0 : index
    %16 = vector.load %arg3[%c0_24, %c8, %c0_25, %c0_26] : memref<1x16x9x9xf32, #tpu.memory_space<vmem>>, vector<1x1x9x9xf32>
    %17 = vector.shape_cast %16 : vector<1x1x9x9xf32> to vector<9x9xf32>
    %c0_27 = arith.constant 0 : index
    %c9 = arith.constant 9 : index
    %c0_28 = arith.constant 0 : index
    %c0_29 = arith.constant 0 : index
    %18 = vector.load %arg3[%c0_27, %c9, %c0_28, %c0_29] : memref<1x16x9x9xf32, #tpu.memory_space<vmem>>, vector<1x1x9x9xf32>
    %19 = vector.shape_cast %18 : vector<1x1x9x9xf32> to vector<9x9xf32>
    %c0_30 = arith.constant 0 : index
    %c10 = arith.constant 10 : index
    %c0_31 = arith.constant 0 : index
    %c0_32 = arith.constant 0 : index
    %20 = vector.load %arg3[%c0_30, %c10, %c0_31, %c0_32] : memref<1x16x9x9xf32, #tpu.memory_space<vmem>>, vector<1x1x9x9xf32>
    %21 = vector.shape_cast %20 : vector<1x1x9x9xf32> to vector<9x9xf32>
    %c0_33 = arith.constant 0 : index
    %c11 = arith.constant 11 : index
    %c0_34 = arith.constant 0 : index
    %c0_35 = arith.constant 0 : index
    %22 = vector.load %arg3[%c0_33, %c11, %c0_34, %c0_35] : memref<1x16x9x9xf32, #tpu.memory_space<vmem>>, vector<1x1x9x9xf32>
    %23 = vector.shape_cast %22 : vector<1x1x9x9xf32> to vector<9x9xf32>
    %c0_36 = arith.constant 0 : index
    %c12 = arith.constant 12 : index
    %c0_37 = arith.constant 0 : index
    %c0_38 = arith.constant 0 : index
    %24 = vector.load %arg3[%c0_36, %c12, %c0_37, %c0_38] : memref<1x16x9x9xf32, #tpu.memory_space<vmem>>, vector<1x1x9x9xf32>
    %25 = vector.shape_cast %24 : vector<1x1x9x9xf32> to vector<9x9xf32>
    %c0_39 = arith.constant 0 : index
    %c13 = arith.constant 13 : index
    %c0_40 = arith.constant 0 : index
    %c0_41 = arith.constant 0 : index
    %26 = vector.load %arg3[%c0_39, %c13, %c0_40, %c0_41] : memref<1x16x9x9xf32, #tpu.memory_space<vmem>>, vector<1x1x9x9xf32>
    %27 = vector.shape_cast %26 : vector<1x1x9x9xf32> to vector<9x9xf32>
    %c0_42 = arith.constant 0 : index
    %c14 = arith.constant 14 : index
    %c0_43 = arith.constant 0 : index
    %c0_44 = arith.constant 0 : index
    %28 = vector.load %arg3[%c0_42, %c14, %c0_43, %c0_44] : memref<1x16x9x9xf32, #tpu.memory_space<vmem>>, vector<1x1x9x9xf32>
    %29 = vector.shape_cast %28 : vector<1x1x9x9xf32> to vector<9x9xf32>
    %c0_45 = arith.constant 0 : index
    %c15 = arith.constant 15 : index
    %c0_46 = arith.constant 0 : index
    %c0_47 = arith.constant 0 : index
    %30 = vector.load %arg3[%c0_45, %c15, %c0_46, %c0_47] : memref<1x16x9x9xf32, #tpu.memory_space<vmem>>, vector<1x1x9x9xf32>
    %31 = vector.shape_cast %30 : vector<1x1x9x9xf32> to vector<9x9xf32>
    %cst = arith.constant 0.000000e+00 : f32
    %32 = vector.broadcast %cst : f32 to vector<8x8xf32>
    %c0_48 = arith.constant 0 : index
    %33 = memref.load %arg1[%c0_48] : memref<36xf32, #tpu.memory_space<smem>>
    %34 = vector.extract_strided_slice %1 {offsets = [0, 0], sizes = [8, 8], strides = [1, 1]} : vector<9x9xf32> to vector<8x8xf32>
    %35 = vector.broadcast %33 : f32 to vector<8x8xf32>
    %36 = arith.mulf %35, %34 : vector<8x8xf32>
    %37 = arith.addf %32, %36 : vector<8x8xf32>
    %c1_49 = arith.constant 1 : index
    %38 = memref.load %arg1[%c1_49] : memref<36xf32, #tpu.memory_space<smem>>
    %39 = vector.extract_strided_slice %9 {offsets = [0, 0], sizes = [8, 8], strides = [1, 1]} : vector<9x9xf32> to vector<8x8xf32>
    %40 = vector.broadcast %38 : f32 to vector<8x8xf32>
    %41 = arith.mulf %40, %39 : vector<8x8xf32>
    %42 = arith.addf %37, %41 : vector<8x8xf32>
    %c2_50 = arith.constant 2 : index
    %43 = memref.load %arg1[%c2_50] : memref<36xf32, #tpu.memory_space<smem>>
    %44 = vector.extract_strided_slice %1 {offsets = [0, 1], sizes = [8, 8], strides = [1, 1]} : vector<9x9xf32> to vector<8x8xf32>
    %45 = vector.broadcast %43 : f32 to vector<8x8xf32>
    %46 = arith.mulf %45, %44 : vector<8x8xf32>
    %47 = arith.addf %42, %46 : vector<8x8xf32>
    %c3_51 = arith.constant 3 : index
    %48 = memref.load %arg1[%c3_51] : memref<36xf32, #tpu.memory_space<smem>>
    %49 = vector.extract_strided_slice %17 {offsets = [0, 0], sizes = [8, 8], strides = [1, 1]} : vector<9x9xf32> to vector<8x8xf32>
    %50 = vector.broadcast %48 : f32 to vector<8x8xf32>
    %51 = arith.mulf %50, %49 : vector<8x8xf32>
    %52 = arith.addf %47, %51 : vector<8x8xf32>
    %c4_52 = arith.constant 4 : index
    %53 = memref.load %arg1[%c4_52] : memref<36xf32, #tpu.memory_space<smem>>
    %54 = vector.extract_strided_slice %25 {offsets = [0, 0], sizes = [8, 8], strides = [1, 1]} : vector<9x9xf32> to vector<8x8xf32>
    %55 = vector.broadcast %53 : f32 to vector<8x8xf32>
    %56 = arith.mulf %55, %54 : vector<8x8xf32>
    %57 = arith.addf %52, %56 : vector<8x8xf32>
    %c5_53 = arith.constant 5 : index
    %58 = memref.load %arg1[%c5_53] : memref<36xf32, #tpu.memory_space<smem>>
    %59 = vector.extract_strided_slice %17 {offsets = [0, 1], sizes = [8, 8], strides = [1, 1]} : vector<9x9xf32> to vector<8x8xf32>
    %60 = vector.broadcast %58 : f32 to vector<8x8xf32>
    %61 = arith.mulf %60, %59 : vector<8x8xf32>
    %62 = arith.addf %57, %61 : vector<8x8xf32>
    %c6_54 = arith.constant 6 : index
    %63 = memref.load %arg1[%c6_54] : memref<36xf32, #tpu.memory_space<smem>>
    %64 = vector.extract_strided_slice %1 {offsets = [1, 0], sizes = [8, 8], strides = [1, 1]} : vector<9x9xf32> to vector<8x8xf32>
    %65 = vector.broadcast %63 : f32 to vector<8x8xf32>
    %66 = arith.mulf %65, %64 : vector<8x8xf32>
    %67 = arith.addf %62, %66 : vector<8x8xf32>
    %c7_55 = arith.constant 7 : index
    %68 = memref.load %arg1[%c7_55] : memref<36xf32, #tpu.memory_space<smem>>
    %69 = vector.extract_strided_slice %9 {offsets = [1, 0], sizes = [8, 8], strides = [1, 1]} : vector<9x9xf32> to vector<8x8xf32>
    %70 = vector.broadcast %68 : f32 to vector<8x8xf32>
    %71 = arith.mulf %70, %69 : vector<8x8xf32>
    %72 = arith.addf %67, %71 : vector<8x8xf32>
    %c8_56 = arith.constant 8 : index
    %73 = memref.load %arg1[%c8_56] : memref<36xf32, #tpu.memory_space<smem>>
    %74 = vector.extract_strided_slice %1 {offsets = [1, 1], sizes = [8, 8], strides = [1, 1]} : vector<9x9xf32> to vector<8x8xf32>
    %75 = vector.broadcast %73 : f32 to vector<8x8xf32>
    %76 = arith.mulf %75, %74 : vector<8x8xf32>
    %77 = arith.addf %72, %76 : vector<8x8xf32>
    %c9_57 = arith.constant 9 : index
    %78 = memref.load %arg1[%c9_57] : memref<36xf32, #tpu.memory_space<smem>>
    %79 = vector.extract_strided_slice %3 {offsets = [0, 0], sizes = [8, 8], strides = [1, 1]} : vector<9x9xf32> to vector<8x8xf32>
    %80 = vector.broadcast %78 : f32 to vector<8x8xf32>
    %81 = arith.mulf %80, %79 : vector<8x8xf32>
    %82 = arith.addf %77, %81 : vector<8x8xf32>
    %c10_58 = arith.constant 10 : index
    %83 = memref.load %arg1[%c10_58] : memref<36xf32, #tpu.memory_space<smem>>
    %84 = vector.extract_strided_slice %11 {offsets = [0, 0], sizes = [8, 8], strides = [1, 1]} : vector<9x9xf32> to vector<8x8xf32>
    %85 = vector.broadcast %83 : f32 to vector<8x8xf32>
    %86 = arith.mulf %85, %84 : vector<8x8xf32>
    %87 = arith.addf %82, %86 : vector<8x8xf32>
    %c11_59 = arith.constant 11 : index
    %88 = memref.load %arg1[%c11_59] : memref<36xf32, #tpu.memory_space<smem>>
    %89 = vector.extract_strided_slice %3 {offsets = [0, 1], sizes = [8, 8], strides = [1, 1]} : vector<9x9xf32> to vector<8x8xf32>
    %90 = vector.broadcast %88 : f32 to vector<8x8xf32>
    %91 = arith.mulf %90, %89 : vector<8x8xf32>
    %92 = arith.addf %87, %91 : vector<8x8xf32>
    %c12_60 = arith.constant 12 : index
    %93 = memref.load %arg1[%c12_60] : memref<36xf32, #tpu.memory_space<smem>>
    %94 = vector.extract_strided_slice %19 {offsets = [0, 0], sizes = [8, 8], strides = [1, 1]} : vector<9x9xf32> to vector<8x8xf32>
    %95 = vector.broadcast %93 : f32 to vector<8x8xf32>
    %96 = arith.mulf %95, %94 : vector<8x8xf32>
    %97 = arith.addf %92, %96 : vector<8x8xf32>
    %c13_61 = arith.constant 13 : index
    %98 = memref.load %arg1[%c13_61] : memref<36xf32, #tpu.memory_space<smem>>
    %99 = vector.extract_strided_slice %27 {offsets = [0, 0], sizes = [8, 8], strides = [1, 1]} : vector<9x9xf32> to vector<8x8xf32>
    %100 = vector.broadcast %98 : f32 to vector<8x8xf32>
    %101 = arith.mulf %100, %99 : vector<8x8xf32>
    %102 = arith.addf %97, %101 : vector<8x8xf32>
    %c14_62 = arith.constant 14 : index
    %103 = memref.load %arg1[%c14_62] : memref<36xf32, #tpu.memory_space<smem>>
    %104 = vector.extract_strided_slice %19 {offsets = [0, 1], sizes = [8, 8], strides = [1, 1]} : vector<9x9xf32> to vector<8x8xf32>
    %105 = vector.broadcast %103 : f32 to vector<8x8xf32>
    %106 = arith.mulf %105, %104 : vector<8x8xf32>
    %107 = arith.addf %102, %106 : vector<8x8xf32>
    %c15_63 = arith.constant 15 : index
    %108 = memref.load %arg1[%c15_63] : memref<36xf32, #tpu.memory_space<smem>>
    %109 = vector.extract_strided_slice %3 {offsets = [1, 0], sizes = [8, 8], strides = [1, 1]} : vector<9x9xf32> to vector<8x8xf32>
    %110 = vector.broadcast %108 : f32 to vector<8x8xf32>
    %111 = arith.mulf %110, %109 : vector<8x8xf32>
    %112 = arith.addf %107, %111 : vector<8x8xf32>
    %c16 = arith.constant 16 : index
    %113 = memref.load %arg1[%c16] : memref<36xf32, #tpu.memory_space<smem>>
    %114 = vector.extract_strided_slice %11 {offsets = [1, 0], sizes = [8, 8], strides = [1, 1]} : vector<9x9xf32> to vector<8x8xf32>
    %115 = vector.broadcast %113 : f32 to vector<8x8xf32>
    %116 = arith.mulf %115, %114 : vector<8x8xf32>
    %117 = arith.addf %112, %116 : vector<8x8xf32>
    %c17 = arith.constant 17 : index
    %118 = memref.load %arg1[%c17] : memref<36xf32, #tpu.memory_space<smem>>
    %119 = vector.extract_strided_slice %3 {offsets = [1, 1], sizes = [8, 8], strides = [1, 1]} : vector<9x9xf32> to vector<8x8xf32>
    %120 = vector.broadcast %118 : f32 to vector<8x8xf32>
    %121 = arith.mulf %120, %119 : vector<8x8xf32>
    %122 = arith.addf %117, %121 : vector<8x8xf32>
    %c18 = arith.constant 18 : index
    %123 = memref.load %arg1[%c18] : memref<36xf32, #tpu.memory_space<smem>>
    %124 = vector.extract_strided_slice %5 {offsets = [0, 0], sizes = [8, 8], strides = [1, 1]} : vector<9x9xf32> to vector<8x8xf32>
    %125 = vector.broadcast %123 : f32 to vector<8x8xf32>
    %126 = arith.mulf %125, %124 : vector<8x8xf32>
    %127 = arith.addf %122, %126 : vector<8x8xf32>
    %c19 = arith.constant 19 : index
    %128 = memref.load %arg1[%c19] : memref<36xf32, #tpu.memory_space<smem>>
    %129 = vector.extract_strided_slice %13 {offsets = [0, 0], sizes = [8, 8], strides = [1, 1]} : vector<9x9xf32> to vector<8x8xf32>
    %130 = vector.broadcast %128 : f32 to vector<8x8xf32>
    %131 = arith.mulf %130, %129 : vector<8x8xf32>
    %132 = arith.addf %127, %131 : vector<8x8xf32>
    %c20 = arith.constant 20 : index
    %133 = memref.load %arg1[%c20] : memref<36xf32, #tpu.memory_space<smem>>
    %134 = vector.extract_strided_slice %5 {offsets = [0, 1], sizes = [8, 8], strides = [1, 1]} : vector<9x9xf32> to vector<8x8xf32>
    %135 = vector.broadcast %133 : f32 to vector<8x8xf32>
    %136 = arith.mulf %135, %134 : vector<8x8xf32>
    %137 = arith.addf %132, %136 : vector<8x8xf32>
    %c21 = arith.constant 21 : index
    %138 = memref.load %arg1[%c21] : memref<36xf32, #tpu.memory_space<smem>>
    %139 = vector.extract_strided_slice %21 {offsets = [0, 0], sizes = [8, 8], strides = [1, 1]} : vector<9x9xf32> to vector<8x8xf32>
    %140 = vector.broadcast %138 : f32 to vector<8x8xf32>
    %141 = arith.mulf %140, %139 : vector<8x8xf32>
    %142 = arith.addf %137, %141 : vector<8x8xf32>
    %c22 = arith.constant 22 : index
    %143 = memref.load %arg1[%c22] : memref<36xf32, #tpu.memory_space<smem>>
    %144 = vector.extract_strided_slice %29 {offsets = [0, 0], sizes = [8, 8], strides = [1, 1]} : vector<9x9xf32> to vector<8x8xf32>
    %145 = vector.broadcast %143 : f32 to vector<8x8xf32>
    %146 = arith.mulf %145, %144 : vector<8x8xf32>
    %147 = arith.addf %142, %146 : vector<8x8xf32>
    %c23 = arith.constant 23 : index
    %148 = memref.load %arg1[%c23] : memref<36xf32, #tpu.memory_space<smem>>
    %149 = vector.extract_strided_slice %21 {offsets = [0, 1], sizes = [8, 8], strides = [1, 1]} : vector<9x9xf32> to vector<8x8xf32>
    %150 = vector.broadcast %148 : f32 to vector<8x8xf32>
    %151 = arith.mulf %150, %149 : vector<8x8xf32>
    %152 = arith.addf %147, %151 : vector<8x8xf32>
    %c24 = arith.constant 24 : index
    %153 = memref.load %arg1[%c24] : memref<36xf32, #tpu.memory_space<smem>>
    %154 = vector.extract_strided_slice %5 {offsets = [1, 0], sizes = [8, 8], strides = [1, 1]} : vector<9x9xf32> to vector<8x8xf32>
    %155 = vector.broadcast %153 : f32 to vector<8x8xf32>
    %156 = arith.mulf %155, %154 : vector<8x8xf32>
    %157 = arith.addf %152, %156 : vector<8x8xf32>
    %c25 = arith.constant 25 : index
    %158 = memref.load %arg1[%c25] : memref<36xf32, #tpu.memory_space<smem>>
    %159 = vector.extract_strided_slice %13 {offsets = [1, 0], sizes = [8, 8], strides = [1, 1]} : vector<9x9xf32> to vector<8x8xf32>
    %160 = vector.broadcast %158 : f32 to vector<8x8xf32>
    %161 = arith.mulf %160, %159 : vector<8x8xf32>
    %162 = arith.addf %157, %161 : vector<8x8xf32>
    %c26 = arith.constant 26 : index
    %163 = memref.load %arg1[%c26] : memref<36xf32, #tpu.memory_space<smem>>
    %164 = vector.extract_strided_slice %5 {offsets = [1, 1], sizes = [8, 8], strides = [1, 1]} : vector<9x9xf32> to vector<8x8xf32>
    %165 = vector.broadcast %163 : f32 to vector<8x8xf32>
    %166 = arith.mulf %165, %164 : vector<8x8xf32>
    %167 = arith.addf %162, %166 : vector<8x8xf32>
    %c27 = arith.constant 27 : index
    %168 = memref.load %arg1[%c27] : memref<36xf32, #tpu.memory_space<smem>>
    %169 = vector.extract_strided_slice %7 {offsets = [0, 0], sizes = [8, 8], strides = [1, 1]} : vector<9x9xf32> to vector<8x8xf32>
    %170 = vector.broadcast %168 : f32 to vector<8x8xf32>
    %171 = arith.mulf %170, %169 : vector<8x8xf32>
    %172 = arith.addf %167, %171 : vector<8x8xf32>
    %c28 = arith.constant 28 : index
    %173 = memref.load %arg1[%c28] : memref<36xf32, #tpu.memory_space<smem>>
    %174 = vector.extract_strided_slice %15 {offsets = [0, 0], sizes = [8, 8], strides = [1, 1]} : vector<9x9xf32> to vector<8x8xf32>
    %175 = vector.broadcast %173 : f32 to vector<8x8xf32>
    %176 = arith.mulf %175, %174 : vector<8x8xf32>
    %177 = arith.addf %172, %176 : vector<8x8xf32>
    %c29 = arith.constant 29 : index
    %178 = memref.load %arg1[%c29] : memref<36xf32, #tpu.memory_space<smem>>
    %179 = vector.extract_strided_slice %7 {offsets = [0, 1], sizes = [8, 8], strides = [1, 1]} : vector<9x9xf32> to vector<8x8xf32>
    %180 = vector.broadcast %178 : f32 to vector<8x8xf32>
    %181 = arith.mulf %180, %179 : vector<8x8xf32>
    %182 = arith.addf %177, %181 : vector<8x8xf32>
    %c30 = arith.constant 30 : index
    %183 = memref.load %arg1[%c30] : memref<36xf32, #tpu.memory_space<smem>>
    %184 = vector.extract_strided_slice %23 {offsets = [0, 0], sizes = [8, 8], strides = [1, 1]} : vector<9x9xf32> to vector<8x8xf32>
    %185 = vector.broadcast %183 : f32 to vector<8x8xf32>
    %186 = arith.mulf %185, %184 : vector<8x8xf32>
    %187 = arith.addf %182, %186 : vector<8x8xf32>
    %c31 = arith.constant 31 : index
    %188 = memref.load %arg1[%c31] : memref<36xf32, #tpu.memory_space<smem>>
    %189 = vector.extract_strided_slice %31 {offsets = [0, 0], sizes = [8, 8], strides = [1, 1]} : vector<9x9xf32> to vector<8x8xf32>
    %190 = vector.broadcast %188 : f32 to vector<8x8xf32>
    %191 = arith.mulf %190, %189 : vector<8x8xf32>
    %192 = arith.addf %187, %191 : vector<8x8xf32>
    %c32 = arith.constant 32 : index
    %193 = memref.load %arg1[%c32] : memref<36xf32, #tpu.memory_space<smem>>
    %194 = vector.extract_strided_slice %23 {offsets = [0, 1], sizes = [8, 8], strides = [1, 1]} : vector<9x9xf32> to vector<8x8xf32>
    %195 = vector.broadcast %193 : f32 to vector<8x8xf32>
    %196 = arith.mulf %195, %194 : vector<8x8xf32>
    %197 = arith.addf %192, %196 : vector<8x8xf32>
    %c33 = arith.constant 33 : index
    %198 = memref.load %arg1[%c33] : memref<36xf32, #tpu.memory_space<smem>>
    %199 = vector.extract_strided_slice %7 {offsets = [1, 0], sizes = [8, 8], strides = [1, 1]} : vector<9x9xf32> to vector<8x8xf32>
    %200 = vector.broadcast %198 : f32 to vector<8x8xf32>
    %201 = arith.mulf %200, %199 : vector<8x8xf32>
    %202 = arith.addf %197, %201 : vector<8x8xf32>
    %c34 = arith.constant 34 : index
    %203 = memref.load %arg1[%c34] : memref<36xf32, #tpu.memory_space<smem>>
    %204 = vector.extract_strided_slice %15 {offsets = [1, 0], sizes = [8, 8], strides = [1, 1]} : vector<9x9xf32> to vector<8x8xf32>
    %205 = vector.broadcast %203 : f32 to vector<8x8xf32>
    %206 = arith.mulf %205, %204 : vector<8x8xf32>
    %207 = arith.addf %202, %206 : vector<8x8xf32>
    %c35 = arith.constant 35 : index
    %208 = memref.load %arg1[%c35] : memref<36xf32, #tpu.memory_space<smem>>
    %209 = vector.extract_strided_slice %7 {offsets = [1, 1], sizes = [8, 8], strides = [1, 1]} : vector<9x9xf32> to vector<8x8xf32>
    %210 = vector.broadcast %208 : f32 to vector<8x8xf32>
    %211 = arith.mulf %210, %209 : vector<8x8xf32>
    %212 = arith.addf %207, %211 : vector<8x8xf32>
    %c0_64 = arith.constant 0 : index
    %213 = memref.load %arg2[%c0_64] : memref<1xf32, #tpu.memory_space<smem>>
    %214 = vector.broadcast %213 : f32 to vector<8x8xf32>
    %215 = arith.addf %212, %214 : vector<8x8xf32>
    %cst_65 = arith.constant 0.000000e+00 : f32
    %216 = vector.broadcast %cst_65 : f32 to vector<8x8xf32>
    %217 = arith.maximumf %215, %216 : vector<8x8xf32>
    %c0_66 = arith.constant 0 : index
    %c0_67 = arith.constant 0 : index
    %c0_68 = arith.constant 0 : index
    %c0_69 = arith.constant 0 : index
    %218 = vector.load %arg4[%c0_66, %c0_67, %c0_68, %c0_69] : memref<1x1x8x8xf32, #tpu.memory_space<vmem>>, vector<1x1x8x8xf32>
    %219 = vector.shape_cast %218 : vector<1x1x8x8xf32> to vector<8x8xf32>
    %220 = vector.shape_cast %217 : vector<8x8xf32> to vector<1x1x8x8xf32>
    tpu.vector_store %arg4[%c0_66, %c0_67, %c0_68, %c0_69], %220 {strides = array<i32>} : memref<1x1x8x8xf32, #tpu.memory_space<vmem>>, vector<1x1x8x8xf32>,
    return
  }
  func.func @transform_0(%arg0: i32) -> i32 {
    %c0_i32 = arith.constant 0 : i32
    %c0_i32_0 = arith.constant 0 : i32
    return %c0_i32 : i32
  }
  func.func @transform_1(%arg0: i32) -> i32 {
    %c0_i32 = arith.constant 0 : i32
    %c0_i32_0 = arith.constant 0 : i32
    return %c0_i32 : i32
  }
  func.func @transform_2(%arg0: i32) -> (i32, i32, i32, i32) {
    %c0_i32 = arith.constant 0 : i32
    %c0_i32_0 = arith.constant 0 : i32
    %c0_i32_1 = arith.constant 0 : i32
    %c0_i32_2 = arith.constant 0 : i32
    return %arg0, %c0_i32, %c0_i32_0, %c0_i32_1 : i32, i32, i32, i32
  }
  func.func @transform_3(%arg0: i32) -> (i32, i32, i32, i32) {
    %c0_i32 = arith.constant 0 : i32
    %c0_i32_0 = arith.constant 0 : i32
    %c0_i32_1 = arith.constant 0 : i32
    %c0_i32_2 = arith.constant 0 : i32
    return %arg0, %c0_i32, %c0_i32_0, %c0_i32_1 : i32, i32, i32, i32
  }
}

module attributes {stable_mosaic.version = 11 : i64} {
  func.func @kernel(%arg0: i32, %arg1: memref<9xf32, #tpu.memory_space<smem>>, %arg2: memref<1xf32, #tpu.memory_space<smem>>, %arg3: memref<1x4x5x5xf32, #tpu.memory_space<vmem>>, %arg4: memref<1x1x4x4xf32, #tpu.memory_space<vmem>>) attributes {dimension_semantics = [#tpu.dimension_semantics<parallel>], iteration_bounds = array<i64: 2>, scalar_prefetch = 0 : i64, scratch_operands = 0 : i64, tpu.core_type = #tpu.core_type<tc>, window_params = [{transform_indices = @transform_0, window_bounds = array<i64: 9>}, {transform_indices = @transform_1, window_bounds = array<i64: 1>}, {transform_indices = @transform_2, window_bounds = array<i64: 1, 4, 5, 5>}, {transform_indices = @transform_3, window_bounds = array<i64: 1, 1, 4, 4>}]} {
    %c0 = arith.constant 0 : index
    %c0_0 = arith.constant 0 : index
    %c0_1 = arith.constant 0 : index
    %c0_2 = arith.constant 0 : index
    %0 = vector.load %arg3[%c0, %c0_0, %c0_1, %c0_2] : memref<1x4x5x5xf32, #tpu.memory_space<vmem>>, vector<1x1x5x5xf32>
    %1 = vector.shape_cast %0 : vector<1x1x5x5xf32> to vector<5x5xf32>
    %c0_3 = arith.constant 0 : index
    %c1 = arith.constant 1 : index
    %c0_4 = arith.constant 0 : index
    %c0_5 = arith.constant 0 : index
    %2 = vector.load %arg3[%c0_3, %c1, %c0_4, %c0_5] : memref<1x4x5x5xf32, #tpu.memory_space<vmem>>, vector<1x1x5x5xf32>
    %3 = vector.shape_cast %2 : vector<1x1x5x5xf32> to vector<5x5xf32>
    %c0_6 = arith.constant 0 : index
    %c2 = arith.constant 2 : index
    %c0_7 = arith.constant 0 : index
    %c0_8 = arith.constant 0 : index
    %4 = vector.load %arg3[%c0_6, %c2, %c0_7, %c0_8] : memref<1x4x5x5xf32, #tpu.memory_space<vmem>>, vector<1x1x5x5xf32>
    %5 = vector.shape_cast %4 : vector<1x1x5x5xf32> to vector<5x5xf32>
    %c0_9 = arith.constant 0 : index
    %c3 = arith.constant 3 : index
    %c0_10 = arith.constant 0 : index
    %c0_11 = arith.constant 0 : index
    %6 = vector.load %arg3[%c0_9, %c3, %c0_10, %c0_11] : memref<1x4x5x5xf32, #tpu.memory_space<vmem>>, vector<1x1x5x5xf32>
    %7 = vector.shape_cast %6 : vector<1x1x5x5xf32> to vector<5x5xf32>
    %cst = arith.constant 0.000000e+00 : f32
    %8 = vector.broadcast %cst : f32 to vector<4x4xf32>
    %c0_12 = arith.constant 0 : index
    %9 = memref.load %arg1[%c0_12] : memref<9xf32, #tpu.memory_space<smem>>
    %10 = vector.extract_strided_slice %1 {offsets = [0, 0], sizes = [4, 4], strides = [1, 1]} : vector<5x5xf32> to vector<4x4xf32>
    %11 = vector.broadcast %9 : f32 to vector<4x4xf32>
    %12 = arith.mulf %11, %10 : vector<4x4xf32>
    %13 = arith.addf %8, %12 : vector<4x4xf32>
    %c1_13 = arith.constant 1 : index
    %14 = memref.load %arg1[%c1_13] : memref<9xf32, #tpu.memory_space<smem>>
    %15 = vector.extract_strided_slice %3 {offsets = [0, 0], sizes = [4, 4], strides = [1, 1]} : vector<5x5xf32> to vector<4x4xf32>
    %16 = vector.broadcast %14 : f32 to vector<4x4xf32>
    %17 = arith.mulf %16, %15 : vector<4x4xf32>
    %18 = arith.addf %13, %17 : vector<4x4xf32>
    %c2_14 = arith.constant 2 : index
    %19 = memref.load %arg1[%c2_14] : memref<9xf32, #tpu.memory_space<smem>>
    %20 = vector.extract_strided_slice %1 {offsets = [0, 1], sizes = [4, 4], strides = [1, 1]} : vector<5x5xf32> to vector<4x4xf32>
    %21 = vector.broadcast %19 : f32 to vector<4x4xf32>
    %22 = arith.mulf %21, %20 : vector<4x4xf32>
    %23 = arith.addf %18, %22 : vector<4x4xf32>
    %c3_15 = arith.constant 3 : index
    %24 = memref.load %arg1[%c3_15] : memref<9xf32, #tpu.memory_space<smem>>
    %25 = vector.extract_strided_slice %5 {offsets = [0, 0], sizes = [4, 4], strides = [1, 1]} : vector<5x5xf32> to vector<4x4xf32>
    %26 = vector.broadcast %24 : f32 to vector<4x4xf32>
    %27 = arith.mulf %26, %25 : vector<4x4xf32>
    %28 = arith.addf %23, %27 : vector<4x4xf32>
    %c4 = arith.constant 4 : index
    %29 = memref.load %arg1[%c4] : memref<9xf32, #tpu.memory_space<smem>>
    %30 = vector.extract_strided_slice %7 {offsets = [0, 0], sizes = [4, 4], strides = [1, 1]} : vector<5x5xf32> to vector<4x4xf32>
    %31 = vector.broadcast %29 : f32 to vector<4x4xf32>
    %32 = arith.mulf %31, %30 : vector<4x4xf32>
    %33 = arith.addf %28, %32 : vector<4x4xf32>
    %c5 = arith.constant 5 : index
    %34 = memref.load %arg1[%c5] : memref<9xf32, #tpu.memory_space<smem>>
    %35 = vector.extract_strided_slice %5 {offsets = [0, 1], sizes = [4, 4], strides = [1, 1]} : vector<5x5xf32> to vector<4x4xf32>
    %36 = vector.broadcast %34 : f32 to vector<4x4xf32>
    %37 = arith.mulf %36, %35 : vector<4x4xf32>
    %38 = arith.addf %33, %37 : vector<4x4xf32>
    %c6 = arith.constant 6 : index
    %39 = memref.load %arg1[%c6] : memref<9xf32, #tpu.memory_space<smem>>
    %40 = vector.extract_strided_slice %1 {offsets = [1, 0], sizes = [4, 4], strides = [1, 1]} : vector<5x5xf32> to vector<4x4xf32>
    %41 = vector.broadcast %39 : f32 to vector<4x4xf32>
    %42 = arith.mulf %41, %40 : vector<4x4xf32>
    %43 = arith.addf %38, %42 : vector<4x4xf32>
    %c7 = arith.constant 7 : index
    %44 = memref.load %arg1[%c7] : memref<9xf32, #tpu.memory_space<smem>>
    %45 = vector.extract_strided_slice %3 {offsets = [1, 0], sizes = [4, 4], strides = [1, 1]} : vector<5x5xf32> to vector<4x4xf32>
    %46 = vector.broadcast %44 : f32 to vector<4x4xf32>
    %47 = arith.mulf %46, %45 : vector<4x4xf32>
    %48 = arith.addf %43, %47 : vector<4x4xf32>
    %c8 = arith.constant 8 : index
    %49 = memref.load %arg1[%c8] : memref<9xf32, #tpu.memory_space<smem>>
    %50 = vector.extract_strided_slice %1 {offsets = [1, 1], sizes = [4, 4], strides = [1, 1]} : vector<5x5xf32> to vector<4x4xf32>
    %51 = vector.broadcast %49 : f32 to vector<4x4xf32>
    %52 = arith.mulf %51, %50 : vector<4x4xf32>
    %53 = arith.addf %48, %52 : vector<4x4xf32>
    %c0_16 = arith.constant 0 : index
    %54 = memref.load %arg2[%c0_16] : memref<1xf32, #tpu.memory_space<smem>>
    %55 = vector.broadcast %54 : f32 to vector<4x4xf32>
    %56 = arith.addf %53, %55 : vector<4x4xf32>
    %cst_17 = arith.constant 0.000000e+00 : f32
    %57 = vector.broadcast %cst_17 : f32 to vector<4x4xf32>
    %58 = arith.maximumf %56, %57 : vector<4x4xf32>
    %c0_18 = arith.constant 0 : index
    %c0_19 = arith.constant 0 : index
    %c0_20 = arith.constant 0 : index
    %c0_21 = arith.constant 0 : index
    %59 = vector.load %arg4[%c0_18, %c0_19, %c0_20, %c0_21] : memref<1x1x4x4xf32, #tpu.memory_space<vmem>>, vector<1x1x4x4xf32>
    %60 = vector.shape_cast %59 : vector<1x1x4x4xf32> to vector<4x4xf32>
    %61 = vector.shape_cast %58 : vector<4x4xf32> to vector<1x1x4x4xf32>
    tpu.vector_store %arg4[%c0_18, %c0_19, %c0_20, %c0_21], %61 {strides = array<i32>} : memref<1x1x4x4xf32, #tpu.memory_space<vmem>>, vector<1x1x4x4xf32>,
    return
  }
  func.func @transform_0(%arg0: i32) -> i32 {
    %c0_i32 = arith.constant 0 : i32
    %c0_i32_0 = arith.constant 0 : i32
    return %c0_i32 : i32
  }
  func.func @transform_1(%arg0: i32) -> i32 {
    %c0_i32 = arith.constant 0 : i32
    %c0_i32_0 = arith.constant 0 : i32
    return %c0_i32 : i32
  }
  func.func @transform_2(%arg0: i32) -> (i32, i32, i32, i32) {
    %c0_i32 = arith.constant 0 : i32
    %c0_i32_0 = arith.constant 0 : i32
    %c0_i32_1 = arith.constant 0 : i32
    %c0_i32_2 = arith.constant 0 : i32
    return %arg0, %c0_i32, %c0_i32_0, %c0_i32_1 : i32, i32, i32, i32
  }
  func.func @transform_3(%arg0: i32) -> (i32, i32, i32, i32) {
    %c0_i32 = arith.constant 0 : i32
    %c0_i32_0 = arith.constant 0 : i32
    %c0_i32_1 = arith.constant 0 : i32
    %c0_i32_2 = arith.constant 0 : i32
    return %arg0, %c0_i32, %c0_i32_0, %c0_i32_1 : i32, i32, i32, i32
  }
}

module attributes {stable_mosaic.version = 11 : i64} {
  func.func @kernel(%arg0: i32, %arg1: memref<9xf32, #tpu.memory_space<smem>>, %arg2: memref<1xf32, #tpu.memory_space<smem>>, %arg3: memref<1x4x3x3xf32, #tpu.memory_space<vmem>>, %arg4: memref<1x1x2x2xf32, #tpu.memory_space<vmem>>) attributes {dimension_semantics = [#tpu.dimension_semantics<parallel>], iteration_bounds = array<i64: 2>, scalar_prefetch = 0 : i64, scratch_operands = 0 : i64, tpu.core_type = #tpu.core_type<tc>, window_params = [{transform_indices = @transform_0, window_bounds = array<i64: 9>}, {transform_indices = @transform_1, window_bounds = array<i64: 1>}, {transform_indices = @transform_2, window_bounds = array<i64: 1, 4, 3, 3>}, {transform_indices = @transform_3, window_bounds = array<i64: 1, 1, 2, 2>}]} {
    %c0 = arith.constant 0 : index
    %c0_0 = arith.constant 0 : index
    %c0_1 = arith.constant 0 : index
    %c0_2 = arith.constant 0 : index
    %0 = vector.load %arg3[%c0, %c0_0, %c0_1, %c0_2] : memref<1x4x3x3xf32, #tpu.memory_space<vmem>>, vector<1x1x3x3xf32>
    %1 = vector.shape_cast %0 : vector<1x1x3x3xf32> to vector<3x3xf32>
    %c0_3 = arith.constant 0 : index
    %c1 = arith.constant 1 : index
    %c0_4 = arith.constant 0 : index
    %c0_5 = arith.constant 0 : index
    %2 = vector.load %arg3[%c0_3, %c1, %c0_4, %c0_5] : memref<1x4x3x3xf32, #tpu.memory_space<vmem>>, vector<1x1x3x3xf32>
    %3 = vector.shape_cast %2 : vector<1x1x3x3xf32> to vector<3x3xf32>
    %c0_6 = arith.constant 0 : index
    %c2 = arith.constant 2 : index
    %c0_7 = arith.constant 0 : index
    %c0_8 = arith.constant 0 : index
    %4 = vector.load %arg3[%c0_6, %c2, %c0_7, %c0_8] : memref<1x4x3x3xf32, #tpu.memory_space<vmem>>, vector<1x1x3x3xf32>
    %5 = vector.shape_cast %4 : vector<1x1x3x3xf32> to vector<3x3xf32>
    %c0_9 = arith.constant 0 : index
    %c3 = arith.constant 3 : index
    %c0_10 = arith.constant 0 : index
    %c0_11 = arith.constant 0 : index
    %6 = vector.load %arg3[%c0_9, %c3, %c0_10, %c0_11] : memref<1x4x3x3xf32, #tpu.memory_space<vmem>>, vector<1x1x3x3xf32>
    %7 = vector.shape_cast %6 : vector<1x1x3x3xf32> to vector<3x3xf32>
    %cst = arith.constant 0.000000e+00 : f32
    %8 = vector.broadcast %cst : f32 to vector<2x2xf32>
    %c0_12 = arith.constant 0 : index
    %9 = memref.load %arg1[%c0_12] : memref<9xf32, #tpu.memory_space<smem>>
    %10 = vector.extract_strided_slice %1 {offsets = [0, 0], sizes = [2, 2], strides = [1, 1]} : vector<3x3xf32> to vector<2x2xf32>
    %11 = vector.broadcast %9 : f32 to vector<2x2xf32>
    %12 = arith.mulf %11, %10 : vector<2x2xf32>
    %13 = arith.addf %8, %12 : vector<2x2xf32>
    %c1_13 = arith.constant 1 : index
    %14 = memref.load %arg1[%c1_13] : memref<9xf32, #tpu.memory_space<smem>>
    %15 = vector.extract_strided_slice %3 {offsets = [0, 0], sizes = [2, 2], strides = [1, 1]} : vector<3x3xf32> to vector<2x2xf32>
    %16 = vector.broadcast %14 : f32 to vector<2x2xf32>
    %17 = arith.mulf %16, %15 : vector<2x2xf32>
    %18 = arith.addf %13, %17 : vector<2x2xf32>
    %c2_14 = arith.constant 2 : index
    %19 = memref.load %arg1[%c2_14] : memref<9xf32, #tpu.memory_space<smem>>
    %20 = vector.extract_strided_slice %1 {offsets = [0, 1], sizes = [2, 2], strides = [1, 1]} : vector<3x3xf32> to vector<2x2xf32>
    %21 = vector.broadcast %19 : f32 to vector<2x2xf32>
    %22 = arith.mulf %21, %20 : vector<2x2xf32>
    %23 = arith.addf %18, %22 : vector<2x2xf32>
    %c3_15 = arith.constant 3 : index
    %24 = memref.load %arg1[%c3_15] : memref<9xf32, #tpu.memory_space<smem>>
    %25 = vector.extract_strided_slice %5 {offsets = [0, 0], sizes = [2, 2], strides = [1, 1]} : vector<3x3xf32> to vector<2x2xf32>
    %26 = vector.broadcast %24 : f32 to vector<2x2xf32>
    %27 = arith.mulf %26, %25 : vector<2x2xf32>
    %28 = arith.addf %23, %27 : vector<2x2xf32>
    %c4 = arith.constant 4 : index
    %29 = memref.load %arg1[%c4] : memref<9xf32, #tpu.memory_space<smem>>
    %30 = vector.extract_strided_slice %7 {offsets = [0, 0], sizes = [2, 2], strides = [1, 1]} : vector<3x3xf32> to vector<2x2xf32>
    %31 = vector.broadcast %29 : f32 to vector<2x2xf32>
    %32 = arith.mulf %31, %30 : vector<2x2xf32>
    %33 = arith.addf %28, %32 : vector<2x2xf32>
    %c5 = arith.constant 5 : index
    %34 = memref.load %arg1[%c5] : memref<9xf32, #tpu.memory_space<smem>>
    %35 = vector.extract_strided_slice %5 {offsets = [0, 1], sizes = [2, 2], strides = [1, 1]} : vector<3x3xf32> to vector<2x2xf32>
    %36 = vector.broadcast %34 : f32 to vector<2x2xf32>
    %37 = arith.mulf %36, %35 : vector<2x2xf32>
    %38 = arith.addf %33, %37 : vector<2x2xf32>
    %c6 = arith.constant 6 : index
    %39 = memref.load %arg1[%c6] : memref<9xf32, #tpu.memory_space<smem>>
    %40 = vector.extract_strided_slice %1 {offsets = [1, 0], sizes = [2, 2], strides = [1, 1]} : vector<3x3xf32> to vector<2x2xf32>
    %41 = vector.broadcast %39 : f32 to vector<2x2xf32>
    %42 = arith.mulf %41, %40 : vector<2x2xf32>
    %43 = arith.addf %38, %42 : vector<2x2xf32>
    %c7 = arith.constant 7 : index
    %44 = memref.load %arg1[%c7] : memref<9xf32, #tpu.memory_space<smem>>
    %45 = vector.extract_strided_slice %3 {offsets = [1, 0], sizes = [2, 2], strides = [1, 1]} : vector<3x3xf32> to vector<2x2xf32>
    %46 = vector.broadcast %44 : f32 to vector<2x2xf32>
    %47 = arith.mulf %46, %45 : vector<2x2xf32>
    %48 = arith.addf %43, %47 : vector<2x2xf32>
    %c8 = arith.constant 8 : index
    %49 = memref.load %arg1[%c8] : memref<9xf32, #tpu.memory_space<smem>>
    %50 = vector.extract_strided_slice %1 {offsets = [1, 1], sizes = [2, 2], strides = [1, 1]} : vector<3x3xf32> to vector<2x2xf32>
    %51 = vector.broadcast %49 : f32 to vector<2x2xf32>
    %52 = arith.mulf %51, %50 : vector<2x2xf32>
    %53 = arith.addf %48, %52 : vector<2x2xf32>
    %c0_16 = arith.constant 0 : index
    %54 = memref.load %arg2[%c0_16] : memref<1xf32, #tpu.memory_space<smem>>
    %55 = vector.broadcast %54 : f32 to vector<2x2xf32>
    %56 = arith.addf %53, %55 : vector<2x2xf32>
    %cst_17 = arith.constant 0.000000e+00 : f32
    %57 = vector.broadcast %cst_17 : f32 to vector<2x2xf32>
    %58 = arith.maximumf %56, %57 : vector<2x2xf32>
    %c0_18 = arith.constant 0 : index
    %c0_19 = arith.constant 0 : index
    %c0_20 = arith.constant 0 : index
    %c0_21 = arith.constant 0 : index
    %59 = vector.load %arg4[%c0_18, %c0_19, %c0_20, %c0_21] : memref<1x1x2x2xf32, #tpu.memory_space<vmem>>, vector<1x1x2x2xf32>
    %60 = vector.shape_cast %59 : vector<1x1x2x2xf32> to vector<2x2xf32>
    %61 = vector.shape_cast %58 : vector<2x2xf32> to vector<1x1x2x2xf32>
    tpu.vector_store %arg4[%c0_18, %c0_19, %c0_20, %c0_21], %61 {strides = array<i32>} : memref<1x1x2x2xf32, #tpu.memory_space<vmem>>, vector<1x1x2x2xf32>,
    return
  }
  func.func @transform_0(%arg0: i32) -> i32 {
    %c0_i32 = arith.constant 0 : i32
    %c0_i32_0 = arith.constant 0 : i32
    return %c0_i32 : i32
  }
  func.func @transform_1(%arg0: i32) -> i32 {
    %c0_i32 = arith.constant 0 : i32
    %c0_i32_0 = arith.constant 0 : i32
    return %c0_i32 : i32
  }
  func.func @transform_2(%arg0: i32) -> (i32, i32, i32, i32) {
    %c0_i32 = arith.constant 0 : i32
    %c0_i32_0 = arith.constant 0 : i32
    %c0_i32_1 = arith.constant 0 : i32
    %c0_i32_2 = arith.constant 0 : i32
    return %arg0, %c0_i32, %c0_i32_0, %c0_i32_1 : i32, i32, i32, i32
  }
  func.func @transform_3(%arg0: i32) -> (i32, i32, i32, i32) {
    %c0_i32 = arith.constant 0 : i32
    %c0_i32_0 = arith.constant 0 : i32
    %c0_i32_1 = arith.constant 0 : i32
    %c0_i32_2 = arith.constant 0 : i32
    return %arg0, %c0_i32, %c0_i32_0, %c0_i32_1 : i32, i32, i32, i32
  }
}

module attributes {stable_mosaic.version = 11 : i64} {
  func.func @kernel(%arg0: i32, %arg1: memref<18xf32, #tpu.memory_space<smem>>, %arg2: memref<1xf32, #tpu.memory_space<smem>>, %arg3: memref<1x1x4x4xf32, #tpu.memory_space<vmem>>, %arg4: memref<1x2x2xf32, #tpu.memory_space<vmem>>) attributes {dimension_semantics = [#tpu.dimension_semantics<parallel>], iteration_bounds = array<i64: 2>, scalar_prefetch = 0 : i64, scratch_operands = 0 : i64, tpu.core_type = #tpu.core_type<tc>, window_params = [{transform_indices = @transform_0, window_bounds = array<i64: 18>}, {transform_indices = @transform_1, window_bounds = array<i64: 1>}, {transform_indices = @transform_2, window_bounds = array<i64: 1, 1, 4, 4>}, {transform_indices = @transform_3, window_bounds = array<i64: 1, 2, 2>}]} {
    %c0 = arith.constant 0 : index
    %c0_0 = arith.constant 0 : index
    %c0_1 = arith.constant 0 : index
    %c0_2 = arith.constant 0 : index
    %0 = vector.load %arg3[%c0, %c0_0, %c0_1, %c0_2] : memref<1x1x4x4xf32, #tpu.memory_space<vmem>>, vector<1x1x4x4xf32>
    %1 = vector.shape_cast %0 : vector<1x1x4x4xf32> to vector<1x4x4xf32>
    %cst = arith.constant dense<0xFF800000> : vector<4x4xf32>
    %2 = vector.multi_reduction <maximumf>, %1, %cst [0] : vector<1x4x4xf32> to vector<4x4xf32>
    %cst_3 = arith.constant dense<0.000000e+00> : vector<4x4xf32>
    %3 = vector.multi_reduction <add>, %1, %cst_3 [0] : vector<1x4x4xf32> to vector<4x4xf32>
    %cst_4 = arith.constant 1.000000e+00 : f32
    %4 = vector.broadcast %cst_4 : f32 to vector<4x4xf32>
    %5 = arith.mulf %3, %4 : vector<4x4xf32>
    %cst_5 = arith.constant 0.000000e+00 : f32
    %6 = vector.broadcast %cst_5 : f32 to vector<2x2xf32>
    %c0_6 = arith.constant 0 : index
    %7 = memref.load %arg1[%c0_6] : memref<18xf32, #tpu.memory_space<smem>>
    %8 = vector.extract_strided_slice %2 {offsets = [0, 0], sizes = [2, 2], strides = [1, 1]} : vector<4x4xf32> to vector<2x2xf32>
    %9 = vector.broadcast %7 : f32 to vector<2x2xf32>
    %10 = arith.mulf %9, %8 : vector<2x2xf32>
    %11 = arith.addf %6, %10 : vector<2x2xf32>
    %c9 = arith.constant 9 : index
    %12 = memref.load %arg1[%c9] : memref<18xf32, #tpu.memory_space<smem>>
    %13 = vector.extract_strided_slice %5 {offsets = [0, 0], sizes = [2, 2], strides = [1, 1]} : vector<4x4xf32> to vector<2x2xf32>
    %14 = vector.broadcast %12 : f32 to vector<2x2xf32>
    %15 = arith.mulf %14, %13 : vector<2x2xf32>
    %16 = arith.addf %11, %15 : vector<2x2xf32>
    %c1 = arith.constant 1 : index
    %17 = memref.load %arg1[%c1] : memref<18xf32, #tpu.memory_space<smem>>
    %18 = vector.extract_strided_slice %2 {offsets = [0, 1], sizes = [2, 2], strides = [1, 1]} : vector<4x4xf32> to vector<2x2xf32>
    %19 = vector.broadcast %17 : f32 to vector<2x2xf32>
    %20 = arith.mulf %19, %18 : vector<2x2xf32>
    %21 = arith.addf %16, %20 : vector<2x2xf32>
    %c10 = arith.constant 10 : index
    %22 = memref.load %arg1[%c10] : memref<18xf32, #tpu.memory_space<smem>>
    %23 = vector.extract_strided_slice %5 {offsets = [0, 1], sizes = [2, 2], strides = [1, 1]} : vector<4x4xf32> to vector<2x2xf32>
    %24 = vector.broadcast %22 : f32 to vector<2x2xf32>
    %25 = arith.mulf %24, %23 : vector<2x2xf32>
    %26 = arith.addf %21, %25 : vector<2x2xf32>
    %c2 = arith.constant 2 : index
    %27 = memref.load %arg1[%c2] : memref<18xf32, #tpu.memory_space<smem>>
    %28 = vector.extract_strided_slice %2 {offsets = [0, 2], sizes = [2, 2], strides = [1, 1]} : vector<4x4xf32> to vector<2x2xf32>
    %29 = vector.broadcast %27 : f32 to vector<2x2xf32>
    %30 = arith.mulf %29, %28 : vector<2x2xf32>
    %31 = arith.addf %26, %30 : vector<2x2xf32>
    %c11 = arith.constant 11 : index
    %32 = memref.load %arg1[%c11] : memref<18xf32, #tpu.memory_space<smem>>
    %33 = vector.extract_strided_slice %5 {offsets = [0, 2], sizes = [2, 2], strides = [1, 1]} : vector<4x4xf32> to vector<2x2xf32>
    %34 = vector.broadcast %32 : f32 to vector<2x2xf32>
    %35 = arith.mulf %34, %33 : vector<2x2xf32>
    %36 = arith.addf %31, %35 : vector<2x2xf32>
    %c3 = arith.constant 3 : index
    %37 = memref.load %arg1[%c3] : memref<18xf32, #tpu.memory_space<smem>>
    %38 = vector.extract_strided_slice %2 {offsets = [1, 0], sizes = [2, 2], strides = [1, 1]} : vector<4x4xf32> to vector<2x2xf32>
    %39 = vector.broadcast %37 : f32 to vector<2x2xf32>
    %40 = arith.mulf %39, %38 : vector<2x2xf32>
    %41 = arith.addf %36, %40 : vector<2x2xf32>
    %c12 = arith.constant 12 : index
    %42 = memref.load %arg1[%c12] : memref<18xf32, #tpu.memory_space<smem>>
    %43 = vector.extract_strided_slice %5 {offsets = [1, 0], sizes = [2, 2], strides = [1, 1]} : vector<4x4xf32> to vector<2x2xf32>
    %44 = vector.broadcast %42 : f32 to vector<2x2xf32>
    %45 = arith.mulf %44, %43 : vector<2x2xf32>
    %46 = arith.addf %41, %45 : vector<2x2xf32>
    %c4 = arith.constant 4 : index
    %47 = memref.load %arg1[%c4] : memref<18xf32, #tpu.memory_space<smem>>
    %48 = vector.extract_strided_slice %2 {offsets = [1, 1], sizes = [2, 2], strides = [1, 1]} : vector<4x4xf32> to vector<2x2xf32>
    %49 = vector.broadcast %47 : f32 to vector<2x2xf32>
    %50 = arith.mulf %49, %48 : vector<2x2xf32>
    %51 = arith.addf %46, %50 : vector<2x2xf32>
    %c13 = arith.constant 13 : index
    %52 = memref.load %arg1[%c13] : memref<18xf32, #tpu.memory_space<smem>>
    %53 = vector.extract_strided_slice %5 {offsets = [1, 1], sizes = [2, 2], strides = [1, 1]} : vector<4x4xf32> to vector<2x2xf32>
    %54 = vector.broadcast %52 : f32 to vector<2x2xf32>
    %55 = arith.mulf %54, %53 : vector<2x2xf32>
    %56 = arith.addf %51, %55 : vector<2x2xf32>
    %c5 = arith.constant 5 : index
    %57 = memref.load %arg1[%c5] : memref<18xf32, #tpu.memory_space<smem>>
    %58 = vector.extract_strided_slice %2 {offsets = [1, 2], sizes = [2, 2], strides = [1, 1]} : vector<4x4xf32> to vector<2x2xf32>
    %59 = vector.broadcast %57 : f32 to vector<2x2xf32>
    %60 = arith.mulf %59, %58 : vector<2x2xf32>
    %61 = arith.addf %56, %60 : vector<2x2xf32>
    %c14 = arith.constant 14 : index
    %62 = memref.load %arg1[%c14] : memref<18xf32, #tpu.memory_space<smem>>
    %63 = vector.extract_strided_slice %5 {offsets = [1, 2], sizes = [2, 2], strides = [1, 1]} : vector<4x4xf32> to vector<2x2xf32>
    %64 = vector.broadcast %62 : f32 to vector<2x2xf32>
    %65 = arith.mulf %64, %63 : vector<2x2xf32>
    %66 = arith.addf %61, %65 : vector<2x2xf32>
    %c6 = arith.constant 6 : index
    %67 = memref.load %arg1[%c6] : memref<18xf32, #tpu.memory_space<smem>>
    %68 = vector.extract_strided_slice %2 {offsets = [2, 0], sizes = [2, 2], strides = [1, 1]} : vector<4x4xf32> to vector<2x2xf32>
    %69 = vector.broadcast %67 : f32 to vector<2x2xf32>
    %70 = arith.mulf %69, %68 : vector<2x2xf32>
    %71 = arith.addf %66, %70 : vector<2x2xf32>
    %c15 = arith.constant 15 : index
    %72 = memref.load %arg1[%c15] : memref<18xf32, #tpu.memory_space<smem>>
    %73 = vector.extract_strided_slice %5 {offsets = [2, 0], sizes = [2, 2], strides = [1, 1]} : vector<4x4xf32> to vector<2x2xf32>
    %74 = vector.broadcast %72 : f32 to vector<2x2xf32>
    %75 = arith.mulf %74, %73 : vector<2x2xf32>
    %76 = arith.addf %71, %75 : vector<2x2xf32>
    %c7 = arith.constant 7 : index
    %77 = memref.load %arg1[%c7] : memref<18xf32, #tpu.memory_space<smem>>
    %78 = vector.extract_strided_slice %2 {offsets = [2, 1], sizes = [2, 2], strides = [1, 1]} : vector<4x4xf32> to vector<2x2xf32>
    %79 = vector.broadcast %77 : f32 to vector<2x2xf32>
    %80 = arith.mulf %79, %78 : vector<2x2xf32>
    %81 = arith.addf %76, %80 : vector<2x2xf32>
    %c16 = arith.constant 16 : index
    %82 = memref.load %arg1[%c16] : memref<18xf32, #tpu.memory_space<smem>>
    %83 = vector.extract_strided_slice %5 {offsets = [2, 1], sizes = [2, 2], strides = [1, 1]} : vector<4x4xf32> to vector<2x2xf32>
    %84 = vector.broadcast %82 : f32 to vector<2x2xf32>
    %85 = arith.mulf %84, %83 : vector<2x2xf32>
    %86 = arith.addf %81, %85 : vector<2x2xf32>
    %c8 = arith.constant 8 : index
    %87 = memref.load %arg1[%c8] : memref<18xf32, #tpu.memory_space<smem>>
    %88 = vector.extract_strided_slice %2 {offsets = [2, 2], sizes = [2, 2], strides = [1, 1]} : vector<4x4xf32> to vector<2x2xf32>
    %89 = vector.broadcast %87 : f32 to vector<2x2xf32>
    %90 = arith.mulf %89, %88 : vector<2x2xf32>
    %91 = arith.addf %86, %90 : vector<2x2xf32>
    %c17 = arith.constant 17 : index
    %92 = memref.load %arg1[%c17] : memref<18xf32, #tpu.memory_space<smem>>
    %93 = vector.extract_strided_slice %5 {offsets = [2, 2], sizes = [2, 2], strides = [1, 1]} : vector<4x4xf32> to vector<2x2xf32>
    %94 = vector.broadcast %92 : f32 to vector<2x2xf32>
    %95 = arith.mulf %94, %93 : vector<2x2xf32>
    %96 = arith.addf %91, %95 : vector<2x2xf32>
    %c0_7 = arith.constant 0 : index
    %97 = memref.load %arg2[%c0_7] : memref<1xf32, #tpu.memory_space<smem>>
    %98 = vector.broadcast %97 : f32 to vector<2x2xf32>
    %99 = arith.addf %96, %98 : vector<2x2xf32>
    %c0_8 = arith.constant 0 : index
    %c0_9 = arith.constant 0 : index
    %c0_10 = arith.constant 0 : index
    %100 = vector.load %arg4[%c0_8, %c0_9, %c0_10] : memref<1x2x2xf32, #tpu.memory_space<vmem>>, vector<1x2x2xf32>
    %101 = vector.shape_cast %100 : vector<1x2x2xf32> to vector<2x2xf32>
    %102 = vector.shape_cast %99 : vector<2x2xf32> to vector<1x2x2xf32>
    tpu.vector_store %arg4[%c0_8, %c0_9, %c0_10], %102 {strides = array<i32>} : memref<1x2x2xf32, #tpu.memory_space<vmem>>, vector<1x2x2xf32>,
    return
  }
  func.func @transform_0(%arg0: i32) -> i32 {
    %c0_i32 = arith.constant 0 : i32
    %c0_i32_0 = arith.constant 0 : i32
    return %c0_i32 : i32
  }
  func.func @transform_1(%arg0: i32) -> i32 {
    %c0_i32 = arith.constant 0 : i32
    %c0_i32_0 = arith.constant 0 : i32
    return %c0_i32 : i32
  }
  func.func @transform_2(%arg0: i32) -> (i32, i32, i32, i32) {
    %c0_i32 = arith.constant 0 : i32
    %c0_i32_0 = arith.constant 0 : i32
    %c0_i32_1 = arith.constant 0 : i32
    %c0_i32_2 = arith.constant 0 : i32
    return %arg0, %c0_i32, %c0_i32_0, %c0_i32_1 : i32, i32, i32, i32
  }
  func.func @transform_3(%arg0: i32) -> (i32, i32, i32) {
    %c0_i32 = arith.constant 0 : i32
    %c0_i32_0 = arith.constant 0 : i32
    %c0_i32_1 = arith.constant 0 : i32
    return %arg0, %c0_i32, %c0_i32_0 : i32, i32, i32
  }
}

module attributes {stable_mosaic.version = 11 : i64} {
  func.func @kernel(%arg0: i32, %arg1: memref<18xf32, #tpu.memory_space<smem>>, %arg2: memref<1xf32, #tpu.memory_space<smem>>, %arg3: memref<1x1x10x10xf32, #tpu.memory_space<vmem>>, %arg4: memref<1x8x8xf32, #tpu.memory_space<vmem>>) attributes {dimension_semantics = [#tpu.dimension_semantics<parallel>], iteration_bounds = array<i64: 2>, scalar_prefetch = 0 : i64, scratch_operands = 0 : i64, tpu.core_type = #tpu.core_type<tc>, window_params = [{transform_indices = @transform_0, window_bounds = array<i64: 18>}, {transform_indices = @transform_1, window_bounds = array<i64: 1>}, {transform_indices = @transform_2, window_bounds = array<i64: 1, 1, 10, 10>}, {transform_indices = @transform_3, window_bounds = array<i64: 1, 8, 8>}]} {
    %c0 = arith.constant 0 : index
    %c0_0 = arith.constant 0 : index
    %c0_1 = arith.constant 0 : index
    %c0_2 = arith.constant 0 : index
    %0 = vector.load %arg3[%c0, %c0_0, %c0_1, %c0_2] : memref<1x1x10x10xf32, #tpu.memory_space<vmem>>, vector<1x1x10x10xf32>
    %1 = vector.shape_cast %0 : vector<1x1x10x10xf32> to vector<1x10x10xf32>
    %cst = arith.constant dense<0xFF800000> : vector<10x10xf32>
    %2 = vector.multi_reduction <maximumf>, %1, %cst [0] : vector<1x10x10xf32> to vector<10x10xf32>
    %cst_3 = arith.constant dense<0.000000e+00> : vector<10x10xf32>
    %3 = vector.multi_reduction <add>, %1, %cst_3 [0] : vector<1x10x10xf32> to vector<10x10xf32>
    %cst_4 = arith.constant 1.000000e+00 : f32
    %4 = vector.broadcast %cst_4 : f32 to vector<10x10xf32>
    %5 = arith.mulf %3, %4 : vector<10x10xf32>
    %cst_5 = arith.constant 0.000000e+00 : f32
    %6 = vector.broadcast %cst_5 : f32 to vector<8x8xf32>
    %c0_6 = arith.constant 0 : index
    %7 = memref.load %arg1[%c0_6] : memref<18xf32, #tpu.memory_space<smem>>
    %8 = vector.extract_strided_slice %2 {offsets = [0, 0], sizes = [8, 8], strides = [1, 1]} : vector<10x10xf32> to vector<8x8xf32>
    %9 = vector.broadcast %7 : f32 to vector<8x8xf32>
    %10 = arith.mulf %9, %8 : vector<8x8xf32>
    %11 = arith.addf %6, %10 : vector<8x8xf32>
    %c9 = arith.constant 9 : index
    %12 = memref.load %arg1[%c9] : memref<18xf32, #tpu.memory_space<smem>>
    %13 = vector.extract_strided_slice %5 {offsets = [0, 0], sizes = [8, 8], strides = [1, 1]} : vector<10x10xf32> to vector<8x8xf32>
    %14 = vector.broadcast %12 : f32 to vector<8x8xf32>
    %15 = arith.mulf %14, %13 : vector<8x8xf32>
    %16 = arith.addf %11, %15 : vector<8x8xf32>
    %c1 = arith.constant 1 : index
    %17 = memref.load %arg1[%c1] : memref<18xf32, #tpu.memory_space<smem>>
    %18 = vector.extract_strided_slice %2 {offsets = [0, 1], sizes = [8, 8], strides = [1, 1]} : vector<10x10xf32> to vector<8x8xf32>
    %19 = vector.broadcast %17 : f32 to vector<8x8xf32>
    %20 = arith.mulf %19, %18 : vector<8x8xf32>
    %21 = arith.addf %16, %20 : vector<8x8xf32>
    %c10 = arith.constant 10 : index
    %22 = memref.load %arg1[%c10] : memref<18xf32, #tpu.memory_space<smem>>
    %23 = vector.extract_strided_slice %5 {offsets = [0, 1], sizes = [8, 8], strides = [1, 1]} : vector<10x10xf32> to vector<8x8xf32>
    %24 = vector.broadcast %22 : f32 to vector<8x8xf32>
    %25 = arith.mulf %24, %23 : vector<8x8xf32>
    %26 = arith.addf %21, %25 : vector<8x8xf32>
    %c2 = arith.constant 2 : index
    %27 = memref.load %arg1[%c2] : memref<18xf32, #tpu.memory_space<smem>>
    %28 = vector.extract_strided_slice %2 {offsets = [0, 2], sizes = [8, 8], strides = [1, 1]} : vector<10x10xf32> to vector<8x8xf32>
    %29 = vector.broadcast %27 : f32 to vector<8x8xf32>
    %30 = arith.mulf %29, %28 : vector<8x8xf32>
    %31 = arith.addf %26, %30 : vector<8x8xf32>
    %c11 = arith.constant 11 : index
    %32 = memref.load %arg1[%c11] : memref<18xf32, #tpu.memory_space<smem>>
    %33 = vector.extract_strided_slice %5 {offsets = [0, 2], sizes = [8, 8], strides = [1, 1]} : vector<10x10xf32> to vector<8x8xf32>
    %34 = vector.broadcast %32 : f32 to vector<8x8xf32>
    %35 = arith.mulf %34, %33 : vector<8x8xf32>
    %36 = arith.addf %31, %35 : vector<8x8xf32>
    %c3 = arith.constant 3 : index
    %37 = memref.load %arg1[%c3] : memref<18xf32, #tpu.memory_space<smem>>
    %38 = vector.extract_strided_slice %2 {offsets = [1, 0], sizes = [8, 8], strides = [1, 1]} : vector<10x10xf32> to vector<8x8xf32>
    %39 = vector.broadcast %37 : f32 to vector<8x8xf32>
    %40 = arith.mulf %39, %38 : vector<8x8xf32>
    %41 = arith.addf %36, %40 : vector<8x8xf32>
    %c12 = arith.constant 12 : index
    %42 = memref.load %arg1[%c12] : memref<18xf32, #tpu.memory_space<smem>>
    %43 = vector.extract_strided_slice %5 {offsets = [1, 0], sizes = [8, 8], strides = [1, 1]} : vector<10x10xf32> to vector<8x8xf32>
    %44 = vector.broadcast %42 : f32 to vector<8x8xf32>
    %45 = arith.mulf %44, %43 : vector<8x8xf32>
    %46 = arith.addf %41, %45 : vector<8x8xf32>
    %c4 = arith.constant 4 : index
    %47 = memref.load %arg1[%c4] : memref<18xf32, #tpu.memory_space<smem>>
    %48 = vector.extract_strided_slice %2 {offsets = [1, 1], sizes = [8, 8], strides = [1, 1]} : vector<10x10xf32> to vector<8x8xf32>
    %49 = vector.broadcast %47 : f32 to vector<8x8xf32>
    %50 = arith.mulf %49, %48 : vector<8x8xf32>
    %51 = arith.addf %46, %50 : vector<8x8xf32>
    %c13 = arith.constant 13 : index
    %52 = memref.load %arg1[%c13] : memref<18xf32, #tpu.memory_space<smem>>
    %53 = vector.extract_strided_slice %5 {offsets = [1, 1], sizes = [8, 8], strides = [1, 1]} : vector<10x10xf32> to vector<8x8xf32>
    %54 = vector.broadcast %52 : f32 to vector<8x8xf32>
    %55 = arith.mulf %54, %53 : vector<8x8xf32>
    %56 = arith.addf %51, %55 : vector<8x8xf32>
    %c5 = arith.constant 5 : index
    %57 = memref.load %arg1[%c5] : memref<18xf32, #tpu.memory_space<smem>>
    %58 = vector.extract_strided_slice %2 {offsets = [1, 2], sizes = [8, 8], strides = [1, 1]} : vector<10x10xf32> to vector<8x8xf32>
    %59 = vector.broadcast %57 : f32 to vector<8x8xf32>
    %60 = arith.mulf %59, %58 : vector<8x8xf32>
    %61 = arith.addf %56, %60 : vector<8x8xf32>
    %c14 = arith.constant 14 : index
    %62 = memref.load %arg1[%c14] : memref<18xf32, #tpu.memory_space<smem>>
    %63 = vector.extract_strided_slice %5 {offsets = [1, 2], sizes = [8, 8], strides = [1, 1]} : vector<10x10xf32> to vector<8x8xf32>
    %64 = vector.broadcast %62 : f32 to vector<8x8xf32>
    %65 = arith.mulf %64, %63 : vector<8x8xf32>
    %66 = arith.addf %61, %65 : vector<8x8xf32>
    %c6 = arith.constant 6 : index
    %67 = memref.load %arg1[%c6] : memref<18xf32, #tpu.memory_space<smem>>
    %68 = vector.extract_strided_slice %2 {offsets = [2, 0], sizes = [8, 8], strides = [1, 1]} : vector<10x10xf32> to vector<8x8xf32>
    %69 = vector.broadcast %67 : f32 to vector<8x8xf32>
    %70 = arith.mulf %69, %68 : vector<8x8xf32>
    %71 = arith.addf %66, %70 : vector<8x8xf32>
    %c15 = arith.constant 15 : index
    %72 = memref.load %arg1[%c15] : memref<18xf32, #tpu.memory_space<smem>>
    %73 = vector.extract_strided_slice %5 {offsets = [2, 0], sizes = [8, 8], strides = [1, 1]} : vector<10x10xf32> to vector<8x8xf32>
    %74 = vector.broadcast %72 : f32 to vector<8x8xf32>
    %75 = arith.mulf %74, %73 : vector<8x8xf32>
    %76 = arith.addf %71, %75 : vector<8x8xf32>
    %c7 = arith.constant 7 : index
    %77 = memref.load %arg1[%c7] : memref<18xf32, #tpu.memory_space<smem>>
    %78 = vector.extract_strided_slice %2 {offsets = [2, 1], sizes = [8, 8], strides = [1, 1]} : vector<10x10xf32> to vector<8x8xf32>
    %79 = vector.broadcast %77 : f32 to vector<8x8xf32>
    %80 = arith.mulf %79, %78 : vector<8x8xf32>
    %81 = arith.addf %76, %80 : vector<8x8xf32>
    %c16 = arith.constant 16 : index
    %82 = memref.load %arg1[%c16] : memref<18xf32, #tpu.memory_space<smem>>
    %83 = vector.extract_strided_slice %5 {offsets = [2, 1], sizes = [8, 8], strides = [1, 1]} : vector<10x10xf32> to vector<8x8xf32>
    %84 = vector.broadcast %82 : f32 to vector<8x8xf32>
    %85 = arith.mulf %84, %83 : vector<8x8xf32>
    %86 = arith.addf %81, %85 : vector<8x8xf32>
    %c8 = arith.constant 8 : index
    %87 = memref.load %arg1[%c8] : memref<18xf32, #tpu.memory_space<smem>>
    %88 = vector.extract_strided_slice %2 {offsets = [2, 2], sizes = [8, 8], strides = [1, 1]} : vector<10x10xf32> to vector<8x8xf32>
    %89 = vector.broadcast %87 : f32 to vector<8x8xf32>
    %90 = arith.mulf %89, %88 : vector<8x8xf32>
    %91 = arith.addf %86, %90 : vector<8x8xf32>
    %c17 = arith.constant 17 : index
    %92 = memref.load %arg1[%c17] : memref<18xf32, #tpu.memory_space<smem>>
    %93 = vector.extract_strided_slice %5 {offsets = [2, 2], sizes = [8, 8], strides = [1, 1]} : vector<10x10xf32> to vector<8x8xf32>
    %94 = vector.broadcast %92 : f32 to vector<8x8xf32>
    %95 = arith.mulf %94, %93 : vector<8x8xf32>
    %96 = arith.addf %91, %95 : vector<8x8xf32>
    %c0_7 = arith.constant 0 : index
    %97 = memref.load %arg2[%c0_7] : memref<1xf32, #tpu.memory_space<smem>>
    %98 = vector.broadcast %97 : f32 to vector<8x8xf32>
    %99 = arith.addf %96, %98 : vector<8x8xf32>
    %c0_8 = arith.constant 0 : index
    %c0_9 = arith.constant 0 : index
    %c0_10 = arith.constant 0 : index
    %100 = vector.load %arg4[%c0_8, %c0_9, %c0_10] : memref<1x8x8xf32, #tpu.memory_space<vmem>>, vector<1x8x8xf32>
    %101 = vector.shape_cast %100 : vector<1x8x8xf32> to vector<8x8xf32>
    %102 = vector.shape_cast %99 : vector<8x8xf32> to vector<1x8x8xf32>
    tpu.vector_store %arg4[%c0_8, %c0_9, %c0_10], %102 {strides = array<i32>} : memref<1x8x8xf32, #tpu.memory_space<vmem>>, vector<1x8x8xf32>,
    return
  }
  func.func @transform_0(%arg0: i32) -> i32 {
    %c0_i32 = arith.constant 0 : i32
    %c0_i32_0 = arith.constant 0 : i32
    return %c0_i32 : i32
  }
  func.func @transform_1(%arg0: i32) -> i32 {
    %c0_i32 = arith.constant 0 : i32
    %c0_i32_0 = arith.constant 0 : i32
    return %c0_i32 : i32
  }
  func.func @transform_2(%arg0: i32) -> (i32, i32, i32, i32) {
    %c0_i32 = arith.constant 0 : i32
    %c0_i32_0 = arith.constant 0 : i32
    %c0_i32_1 = arith.constant 0 : i32
    %c0_i32_2 = arith.constant 0 : i32
    return %arg0, %c0_i32, %c0_i32_0, %c0_i32_1 : i32, i32, i32, i32
  }
  func.func @transform_3(%arg0: i32) -> (i32, i32, i32) {
    %c0_i32 = arith.constant 0 : i32
    %c0_i32_0 = arith.constant 0 : i32
    %c0_i32_1 = arith.constant 0 : i32
    return %arg0, %c0_i32, %c0_i32_0 : i32, i32, i32
  }
}

module attributes {stable_mosaic.version = 11 : i64} {
  func.func @kernel(%arg0: i32, %arg1: memref<18xf32, #tpu.memory_space<smem>>, %arg2: memref<1xf32, #tpu.memory_space<smem>>, %arg3: memref<1x1x6x6xf32, #tpu.memory_space<vmem>>, %arg4: memref<1x4x4xf32, #tpu.memory_space<vmem>>) attributes {dimension_semantics = [#tpu.dimension_semantics<parallel>], iteration_bounds = array<i64: 2>, scalar_prefetch = 0 : i64, scratch_operands = 0 : i64, tpu.core_type = #tpu.core_type<tc>, window_params = [{transform_indices = @transform_0, window_bounds = array<i64: 18>}, {transform_indices = @transform_1, window_bounds = array<i64: 1>}, {transform_indices = @transform_2, window_bounds = array<i64: 1, 1, 6, 6>}, {transform_indices = @transform_3, window_bounds = array<i64: 1, 4, 4>}]} {
    %c0 = arith.constant 0 : index
    %c0_0 = arith.constant 0 : index
    %c0_1 = arith.constant 0 : index
    %c0_2 = arith.constant 0 : index
    %0 = vector.load %arg3[%c0, %c0_0, %c0_1, %c0_2] : memref<1x1x6x6xf32, #tpu.memory_space<vmem>>, vector<1x1x6x6xf32>
    %1 = vector.shape_cast %0 : vector<1x1x6x6xf32> to vector<1x6x6xf32>
    %cst = arith.constant dense<0xFF800000> : vector<6x6xf32>
    %2 = vector.multi_reduction <maximumf>, %1, %cst [0] : vector<1x6x6xf32> to vector<6x6xf32>
    %cst_3 = arith.constant dense<0.000000e+00> : vector<6x6xf32>
    %3 = vector.multi_reduction <add>, %1, %cst_3 [0] : vector<1x6x6xf32> to vector<6x6xf32>
    %cst_4 = arith.constant 1.000000e+00 : f32
    %4 = vector.broadcast %cst_4 : f32 to vector<6x6xf32>
    %5 = arith.mulf %3, %4 : vector<6x6xf32>
    %cst_5 = arith.constant 0.000000e+00 : f32
    %6 = vector.broadcast %cst_5 : f32 to vector<4x4xf32>
    %c0_6 = arith.constant 0 : index
    %7 = memref.load %arg1[%c0_6] : memref<18xf32, #tpu.memory_space<smem>>
    %8 = vector.extract_strided_slice %2 {offsets = [0, 0], sizes = [4, 4], strides = [1, 1]} : vector<6x6xf32> to vector<4x4xf32>
    %9 = vector.broadcast %7 : f32 to vector<4x4xf32>
    %10 = arith.mulf %9, %8 : vector<4x4xf32>
    %11 = arith.addf %6, %10 : vector<4x4xf32>
    %c9 = arith.constant 9 : index
    %12 = memref.load %arg1[%c9] : memref<18xf32, #tpu.memory_space<smem>>
    %13 = vector.extract_strided_slice %5 {offsets = [0, 0], sizes = [4, 4], strides = [1, 1]} : vector<6x6xf32> to vector<4x4xf32>
    %14 = vector.broadcast %12 : f32 to vector<4x4xf32>
    %15 = arith.mulf %14, %13 : vector<4x4xf32>
    %16 = arith.addf %11, %15 : vector<4x4xf32>
    %c1 = arith.constant 1 : index
    %17 = memref.load %arg1[%c1] : memref<18xf32, #tpu.memory_space<smem>>
    %18 = vector.extract_strided_slice %2 {offsets = [0, 1], sizes = [4, 4], strides = [1, 1]} : vector<6x6xf32> to vector<4x4xf32>
    %19 = vector.broadcast %17 : f32 to vector<4x4xf32>
    %20 = arith.mulf %19, %18 : vector<4x4xf32>
    %21 = arith.addf %16, %20 : vector<4x4xf32>
    %c10 = arith.constant 10 : index
    %22 = memref.load %arg1[%c10] : memref<18xf32, #tpu.memory_space<smem>>
    %23 = vector.extract_strided_slice %5 {offsets = [0, 1], sizes = [4, 4], strides = [1, 1]} : vector<6x6xf32> to vector<4x4xf32>
    %24 = vector.broadcast %22 : f32 to vector<4x4xf32>
    %25 = arith.mulf %24, %23 : vector<4x4xf32>
    %26 = arith.addf %21, %25 : vector<4x4xf32>
    %c2 = arith.constant 2 : index
    %27 = memref.load %arg1[%c2] : memref<18xf32, #tpu.memory_space<smem>>
    %28 = vector.extract_strided_slice %2 {offsets = [0, 2], sizes = [4, 4], strides = [1, 1]} : vector<6x6xf32> to vector<4x4xf32>
    %29 = vector.broadcast %27 : f32 to vector<4x4xf32>
    %30 = arith.mulf %29, %28 : vector<4x4xf32>
    %31 = arith.addf %26, %30 : vector<4x4xf32>
    %c11 = arith.constant 11 : index
    %32 = memref.load %arg1[%c11] : memref<18xf32, #tpu.memory_space<smem>>
    %33 = vector.extract_strided_slice %5 {offsets = [0, 2], sizes = [4, 4], strides = [1, 1]} : vector<6x6xf32> to vector<4x4xf32>
    %34 = vector.broadcast %32 : f32 to vector<4x4xf32>
    %35 = arith.mulf %34, %33 : vector<4x4xf32>
    %36 = arith.addf %31, %35 : vector<4x4xf32>
    %c3 = arith.constant 3 : index
    %37 = memref.load %arg1[%c3] : memref<18xf32, #tpu.memory_space<smem>>
    %38 = vector.extract_strided_slice %2 {offsets = [1, 0], sizes = [4, 4], strides = [1, 1]} : vector<6x6xf32> to vector<4x4xf32>
    %39 = vector.broadcast %37 : f32 to vector<4x4xf32>
    %40 = arith.mulf %39, %38 : vector<4x4xf32>
    %41 = arith.addf %36, %40 : vector<4x4xf32>
    %c12 = arith.constant 12 : index
    %42 = memref.load %arg1[%c12] : memref<18xf32, #tpu.memory_space<smem>>
    %43 = vector.extract_strided_slice %5 {offsets = [1, 0], sizes = [4, 4], strides = [1, 1]} : vector<6x6xf32> to vector<4x4xf32>
    %44 = vector.broadcast %42 : f32 to vector<4x4xf32>
    %45 = arith.mulf %44, %43 : vector<4x4xf32>
    %46 = arith.addf %41, %45 : vector<4x4xf32>
    %c4 = arith.constant 4 : index
    %47 = memref.load %arg1[%c4] : memref<18xf32, #tpu.memory_space<smem>>
    %48 = vector.extract_strided_slice %2 {offsets = [1, 1], sizes = [4, 4], strides = [1, 1]} : vector<6x6xf32> to vector<4x4xf32>
    %49 = vector.broadcast %47 : f32 to vector<4x4xf32>
    %50 = arith.mulf %49, %48 : vector<4x4xf32>
    %51 = arith.addf %46, %50 : vector<4x4xf32>
    %c13 = arith.constant 13 : index
    %52 = memref.load %arg1[%c13] : memref<18xf32, #tpu.memory_space<smem>>
    %53 = vector.extract_strided_slice %5 {offsets = [1, 1], sizes = [4, 4], strides = [1, 1]} : vector<6x6xf32> to vector<4x4xf32>
    %54 = vector.broadcast %52 : f32 to vector<4x4xf32>
    %55 = arith.mulf %54, %53 : vector<4x4xf32>
    %56 = arith.addf %51, %55 : vector<4x4xf32>
    %c5 = arith.constant 5 : index
    %57 = memref.load %arg1[%c5] : memref<18xf32, #tpu.memory_space<smem>>
    %58 = vector.extract_strided_slice %2 {offsets = [1, 2], sizes = [4, 4], strides = [1, 1]} : vector<6x6xf32> to vector<4x4xf32>
    %59 = vector.broadcast %57 : f32 to vector<4x4xf32>
    %60 = arith.mulf %59, %58 : vector<4x4xf32>
    %61 = arith.addf %56, %60 : vector<4x4xf32>
    %c14 = arith.constant 14 : index
    %62 = memref.load %arg1[%c14] : memref<18xf32, #tpu.memory_space<smem>>
    %63 = vector.extract_strided_slice %5 {offsets = [1, 2], sizes = [4, 4], strides = [1, 1]} : vector<6x6xf32> to vector<4x4xf32>
    %64 = vector.broadcast %62 : f32 to vector<4x4xf32>
    %65 = arith.mulf %64, %63 : vector<4x4xf32>
    %66 = arith.addf %61, %65 : vector<4x4xf32>
    %c6 = arith.constant 6 : index
    %67 = memref.load %arg1[%c6] : memref<18xf32, #tpu.memory_space<smem>>
    %68 = vector.extract_strided_slice %2 {offsets = [2, 0], sizes = [4, 4], strides = [1, 1]} : vector<6x6xf32> to vector<4x4xf32>
    %69 = vector.broadcast %67 : f32 to vector<4x4xf32>
    %70 = arith.mulf %69, %68 : vector<4x4xf32>
    %71 = arith.addf %66, %70 : vector<4x4xf32>
    %c15 = arith.constant 15 : index
    %72 = memref.load %arg1[%c15] : memref<18xf32, #tpu.memory_space<smem>>
    %73 = vector.extract_strided_slice %5 {offsets = [2, 0], sizes = [4, 4], strides = [1, 1]} : vector<6x6xf32> to vector<4x4xf32>
    %74 = vector.broadcast %72 : f32 to vector<4x4xf32>
    %75 = arith.mulf %74, %73 : vector<4x4xf32>
    %76 = arith.addf %71, %75 : vector<4x4xf32>
    %c7 = arith.constant 7 : index
    %77 = memref.load %arg1[%c7] : memref<18xf32, #tpu.memory_space<smem>>
    %78 = vector.extract_strided_slice %2 {offsets = [2, 1], sizes = [4, 4], strides = [1, 1]} : vector<6x6xf32> to vector<4x4xf32>
    %79 = vector.broadcast %77 : f32 to vector<4x4xf32>
    %80 = arith.mulf %79, %78 : vector<4x4xf32>
    %81 = arith.addf %76, %80 : vector<4x4xf32>
    %c16 = arith.constant 16 : index
    %82 = memref.load %arg1[%c16] : memref<18xf32, #tpu.memory_space<smem>>
    %83 = vector.extract_strided_slice %5 {offsets = [2, 1], sizes = [4, 4], strides = [1, 1]} : vector<6x6xf32> to vector<4x4xf32>
    %84 = vector.broadcast %82 : f32 to vector<4x4xf32>
    %85 = arith.mulf %84, %83 : vector<4x4xf32>
    %86 = arith.addf %81, %85 : vector<4x4xf32>
    %c8 = arith.constant 8 : index
    %87 = memref.load %arg1[%c8] : memref<18xf32, #tpu.memory_space<smem>>
    %88 = vector.extract_strided_slice %2 {offsets = [2, 2], sizes = [4, 4], strides = [1, 1]} : vector<6x6xf32> to vector<4x4xf32>
    %89 = vector.broadcast %87 : f32 to vector<4x4xf32>
    %90 = arith.mulf %89, %88 : vector<4x4xf32>
    %91 = arith.addf %86, %90 : vector<4x4xf32>
    %c17 = arith.constant 17 : index
    %92 = memref.load %arg1[%c17] : memref<18xf32, #tpu.memory_space<smem>>
    %93 = vector.extract_strided_slice %5 {offsets = [2, 2], sizes = [4, 4], strides = [1, 1]} : vector<6x6xf32> to vector<4x4xf32>
    %94 = vector.broadcast %92 : f32 to vector<4x4xf32>
    %95 = arith.mulf %94, %93 : vector<4x4xf32>
    %96 = arith.addf %91, %95 : vector<4x4xf32>
    %c0_7 = arith.constant 0 : index
    %97 = memref.load %arg2[%c0_7] : memref<1xf32, #tpu.memory_space<smem>>
    %98 = vector.broadcast %97 : f32 to vector<4x4xf32>
    %99 = arith.addf %96, %98 : vector<4x4xf32>
    %c0_8 = arith.constant 0 : index
    %c0_9 = arith.constant 0 : index
    %c0_10 = arith.constant 0 : index
    %100 = vector.load %arg4[%c0_8, %c0_9, %c0_10] : memref<1x4x4xf32, #tpu.memory_space<vmem>>, vector<1x4x4xf32>
    %101 = vector.shape_cast %100 : vector<1x4x4xf32> to vector<4x4xf32>
    %102 = vector.shape_cast %99 : vector<4x4xf32> to vector<1x4x4xf32>
    tpu.vector_store %arg4[%c0_8, %c0_9, %c0_10], %102 {strides = array<i32>} : memref<1x4x4xf32, #tpu.memory_space<vmem>>, vector<1x4x4xf32>,
    return
  }
  func.func @transform_0(%arg0: i32) -> i32 {
    %c0_i32 = arith.constant 0 : i32
    %c0_i32_0 = arith.constant 0 : i32
    return %c0_i32 : i32
  }
  func.func @transform_1(%arg0: i32) -> i32 {
    %c0_i32 = arith.constant 0 : i32
    %c0_i32_0 = arith.constant 0 : i32
    return %c0_i32 : i32
  }
  func.func @transform_2(%arg0: i32) -> (i32, i32, i32, i32) {
    %c0_i32 = arith.constant 0 : i32
    %c0_i32_0 = arith.constant 0 : i32
    %c0_i32_1 = arith.constant 0 : i32
    %c0_i32_2 = arith.constant 0 : i32
    return %arg0, %c0_i32, %c0_i32_0, %c0_i32_1 : i32, i32, i32, i32
  }
  func.func @transform_3(%arg0: i32) -> (i32, i32, i32) {
    %c0_i32 = arith.constant 0 : i32
    %c0_i32_0 = arith.constant 0 : i32
    %c0_i32_1 = arith.constant 0 : i32
    return %arg0, %c0_i32, %c0_i32_0 : i32, i32, i32
  }
}

module attributes {stable_mosaic.version = 11 : i64} {
  func.func @kernel(%arg0: i32, %arg1: i32, %arg2: i32, %arg3: memref<8x4xbf16, #tpu.memory_space<vmem>>, %arg4: memref<8x1xf32, #tpu.memory_space<vmem>>, %arg5: memref<1x4x128xbf16, #tpu.memory_space<vmem>>, %arg6: memref<1x8x128xf32, #tpu.memory_space<vmem>>, %arg7: memref<8x128xf32, #tpu.memory_space<vmem>>) attributes {dimension_semantics = [#tpu.dimension_semantics<parallel>, #tpu.dimension_semantics<parallel>, #tpu.dimension_semantics<arbitrary>], iteration_bounds = array<i64: 2, 2, 1>, scalar_prefetch = 0 : i64, scratch_operands = 1 : i64, tpu.core_type = #tpu.core_type<tc>, window_params = [{transform_indices = @transform_0, window_bounds = array<i64: 8, 4>}, {pipeline_mode = #tpu.pipeline_mode<synchronous>, transform_indices = @transform_1, window_bounds = array<i64: 8, 1>}, {transform_indices = @transform_2, window_bounds = array<i64: 1, 4, 128>}, {transform_indices = @transform_3, window_bounds = array<i64: 1, 8, 128>}]} {
    %c0_i32 = arith.constant 0 : i32
    %0 = arith.cmpi eq, %arg2, %c0_i32 : i32
    %1 = arith.extui %0 : i1 to i32
    %c0_i32_0 = arith.constant 0 : i32
    %2 = arith.cmpi ne, %1, %c0_i32_0 : i32
    scf.if %2 {
      %cst_11 = arith.constant 0.000000e+00 : f32
      %13 = vector.broadcast %cst_11 : f32 to vector<8x128xf32>
      %c0_12 = arith.constant 0 : index
      %c0_13 = arith.constant 0 : index
      %14 = vector.load %arg7[%c0_12, %c0_13] : memref<8x128xf32, #tpu.memory_space<vmem>>, vector<8x128xf32>
      tpu.vector_store %arg7[%c0_12, %c0_13], %13 {strides = array<i32>} : memref<8x128xf32, #tpu.memory_space<vmem>>, vector<8x128xf32>,
    } else {
    }
    %c0 = arith.constant 0 : index
    %c0_1 = arith.constant 0 : index
    %3 = vector.load %arg7[%c0, %c0_1] : memref<8x128xf32, #tpu.memory_space<vmem>>, vector<8x128xf32>
    %c0_2 = arith.constant 0 : index
    %c0_3 = arith.constant 0 : index
    %4 = vector.load %arg3[%c0_2, %c0_3] : memref<8x4xbf16, #tpu.memory_space<vmem>>, vector<8x4xbf16>
    %c0_4 = arith.constant 0 : index
    %c0_5 = arith.constant 0 : index
    %c0_6 = arith.constant 0 : index
    %5 = vector.load %arg5[%c0_4, %c0_5, %c0_6] : memref<1x4x128xbf16, #tpu.memory_space<vmem>>, vector<1x4x128xbf16>
    %6 = vector.shape_cast %5 : vector<1x4x128xbf16> to vector<4x128xbf16>
    %cst = arith.constant dense<0.000000e+00> : vector<8x128xf32>
    %7 = tpu.matmul %4, %6, %cst {dimension_numbers = #tpu.dot_dimension_numbers<[1], [0], [0], [1], [0, 0, 1, 1], [], []>} : vector<8x4xbf16>, vector<4x128xbf16>, vector<8x128xf32> -> vector<8x128xf32>
    %8 = arith.addf %3, %7 : vector<8x128xf32>
    %c0_7 = arith.constant 0 : index
    %c0_8 = arith.constant 0 : index
    %9 = vector.load %arg7[%c0_7, %c0_8] : memref<8x128xf32, #tpu.memory_space<vmem>>, vector<8x128xf32>
    tpu.vector_store %arg7[%c0_7, %c0_8], %8 {strides = array<i32>} : memref<8x128xf32, #tpu.memory_space<vmem>>, vector<8x128xf32>,
    %c0_i32_9 = arith.constant 0 : i32
    %10 = arith.cmpi eq, %arg2, %c0_i32_9 : i32
    %11 = arith.extui %10 : i1 to i32
    %c0_i32_10 = arith.constant 0 : i32
    %12 = arith.cmpi ne, %11, %c0_i32_10 : i32
    scf.if %12 {
      %c0_11 = arith.constant 0 : index
      %c0_12 = arith.constant 0 : index
      %13 = vector.load %arg7[%c0_11, %c0_12] : memref<8x128xf32, #tpu.memory_space<vmem>>, vector<8x128xf32>
      %c0_13 = arith.constant 0 : index
      %c0_14 = arith.constant 0 : index
      %14 = vector.load %arg4[%c0_13, %c0_14] : memref<8x1xf32, #tpu.memory_space<vmem>>, vector<8x1xf32>
      %15 = vector.broadcast %14 : vector<8x1xf32> to vector<8x128xf32>
      %16 = arith.addf %13, %15 : vector<8x128xf32>
      %cst_15 = arith.constant 0.000000e+00 : f32
      %17 = vector.broadcast %cst_15 : f32 to vector<8x128xf32>
      %18 = arith.maximumf %16, %17 : vector<8x128xf32>
      %c0_16 = arith.constant 0 : index
      %c0_17 = arith.constant 0 : index
      %c0_18 = arith.constant 0 : index
      %19 = vector.load %arg6[%c0_16, %c0_17, %c0_18] : memref<1x8x128xf32, #tpu.memory_space<vmem>>, vector<1x8x128xf32>
      %20 = vector.shape_cast %19 : vector<1x8x128xf32> to vector<8x128xf32>
      %21 = vector.shape_cast %18 : vector<8x128xf32> to vector<1x8x128xf32>
      tpu.vector_store %arg6[%c0_16, %c0_17, %c0_18], %21 {strides = array<i32>} : memref<1x8x128xf32, #tpu.memory_space<vmem>>, vector<1x8x128xf32>,
    } else {
    }
    return
  }
  func.func @transform_0(%arg0: i32, %arg1: i32, %arg2: i32) -> (i32, i32) {
    %c0_i32 = arith.constant 0 : i32
    %c0_i32_0 = arith.constant 0 : i32
    return %c0_i32, %arg2 : i32, i32
  }
  func.func @transform_1(%arg0: i32, %arg1: i32, %arg2: i32) -> (i32, i32) {
    %c0_i32 = arith.constant 0 : i32
    %c0_i32_0 = arith.constant 0 : i32
    %c0_i32_1 = arith.constant 0 : i32
    return %c0_i32, %c0_i32_0 : i32, i32
  }
  func.func @transform_2(%arg0: i32, %arg1: i32, %arg2: i32) -> (i32, i32, i32) {
    %c0_i32 = arith.constant 0 : i32
    return %arg0, %arg2, %arg1 : i32, i32, i32
  }
  func.func @transform_3(%arg0: i32, %arg1: i32, %arg2: i32) -> (i32, i32, i32) {
    %c0_i32 = arith.constant 0 : i32
    %c0_i32_0 = arith.constant 0 : i32
    return %arg0, %c0_i32, %arg1 : i32, i32, i32
  }
}

module attributes {stable_mosaic.version = 11 : i64} {
  func.func @kernel(%arg0: i32, %arg1: memref<8x4xf32, #tpu.memory_space<vmem>>, %arg2: memref<8x1xf32, #tpu.memory_space<vmem>>, %arg3: memref<1x4x256xf32, #tpu.memory_space<vmem>>, %arg4: memref<1x8x1xf32, #tpu.memory_space<vmem>>) attributes {dimension_semantics = [#tpu.dimension_semantics<parallel>], iteration_bounds = array<i64: 2>, scalar_prefetch = 0 : i64, scratch_operands = 0 : i64, tpu.core_type = #tpu.core_type<tc>, window_params = [{pipeline_mode = #tpu.pipeline_mode<synchronous>, transform_indices = @transform_0, window_bounds = array<i64: 8, 4>}, {pipeline_mode = #tpu.pipeline_mode<synchronous>, transform_indices = @transform_1, window_bounds = array<i64: 8, 1>}, {transform_indices = @transform_2, window_bounds = array<i64: 1, 4, 256>}, {transform_indices = @transform_3, window_bounds = array<i64: 1, 8, 1>}]} {
    %c0 = arith.constant 0 : index
    %c0_0 = arith.constant 0 : index
    %c0_1 = arith.constant 0 : index
    %0 = vector.load %arg3[%c0, %c0_0, %c0_1] : memref<1x4x256xf32, #tpu.memory_space<vmem>>, vector<1x4x256xf32>
    %1 = vector.shape_cast %0 : vector<1x4x256xf32> to vector<4x256xf32>
    %cst = arith.constant dense<0.000000e+00> : vector<4xf32>
    %2 = vector.multi_reduction <add>, %1, %cst [1] : vector<4x256xf32> to vector<4xf32>
    %3 = vector.shape_cast %2 : vector<4xf32> to vector<4x1xf32>
    %cst_2 = arith.constant 3.906250e-03 : f32
    %4 = vector.broadcast %cst_2 : f32 to vector<4x1xf32>
    %5 = arith.mulf %3, %4 : vector<4x1xf32>
    %c0_3 = arith.constant 0 : index
    %c0_4 = arith.constant 0 : index
    %6 = vector.load %arg1[%c0_3, %c0_4] : memref<8x4xf32, #tpu.memory_space<vmem>>, vector<8x4xf32>
    %cst_5 = arith.constant dense<0.000000e+00> : vector<8x1xf32>
    %7 = tpu.matmul %6, %5, %cst_5 {dimension_numbers = #tpu.dot_dimension_numbers<[1], [0], [0], [1], [0, 0, 1, 1], [], []>} : vector<8x4xf32>, vector<4x1xf32>, vector<8x1xf32> -> vector<8x1xf32>
    %c0_6 = arith.constant 0 : index
    %c0_7 = arith.constant 0 : index
    %8 = vector.load %arg2[%c0_6, %c0_7] : memref<8x1xf32, #tpu.memory_space<vmem>>, vector<8x1xf32>
    %9 = arith.addf %7, %8 : vector<8x1xf32>
    %cst_8 = arith.constant 0.000000e+00 : f32
    %10 = vector.broadcast %cst_8 : f32 to vector<8x1xf32>
    %11 = arith.maximumf %9, %10 : vector<8x1xf32>
    %c0_9 = arith.constant 0 : index
    %c0_10 = arith.constant 0 : index
    %c0_11 = arith.constant 0 : index
    %12 = vector.load %arg4[%c0_9, %c0_10, %c0_11] : memref<1x8x1xf32, #tpu.memory_space<vmem>>, vector<1x8x1xf32>
    %13 = vector.shape_cast %12 : vector<1x8x1xf32> to vector<8x1xf32>
    %14 = vector.shape_cast %11 : vector<8x1xf32> to vector<1x8x1xf32>
    tpu.vector_store %arg4[%c0_9, %c0_10, %c0_11], %14 {strides = array<i32>} : memref<1x8x1xf32, #tpu.memory_space<vmem>>, vector<1x8x1xf32>,
    return
  }
  func.func @transform_0(%arg0: i32) -> (i32, i32) {
    %c0_i32 = arith.constant 0 : i32
    %c0_i32_0 = arith.constant 0 : i32
    %c0_i32_1 = arith.constant 0 : i32
    return %c0_i32, %c0_i32_0 : i32, i32
  }
  func.func @transform_1(%arg0: i32) -> (i32, i32) {
    %c0_i32 = arith.constant 0 : i32
    %c0_i32_0 = arith.constant 0 : i32
    %c0_i32_1 = arith.constant 0 : i32
    return %c0_i32, %c0_i32_0 : i32, i32
  }
  func.func @transform_2(%arg0: i32) -> (i32, i32, i32) {
    %c0_i32 = arith.constant 0 : i32
    %c0_i32_0 = arith.constant 0 : i32
    %c0_i32_1 = arith.constant 0 : i32
    return %arg0, %c0_i32, %c0_i32_0 : i32, i32, i32
  }
  func.func @transform_3(%arg0: i32) -> (i32, i32, i32) {
    %c0_i32 = arith.constant 0 : i32
    %c0_i32_0 = arith.constant 0 : i32
    %c0_i32_1 = arith.constant 0 : i32
    return %arg0, %c0_i32, %c0_i32_0 : i32, i32, i32
  }
}

module attributes {stable_mosaic.version = 11 : i64} {
  func.func @kernel(%arg0: i32, %arg1: i32, %arg2: memref<1x8x8xf32, #tpu.memory_space<vmem>>, %arg3: memref<1x4x4xf32, #tpu.memory_space<vmem>>, %arg4: memref<1x2x2xf32, #tpu.memory_space<vmem>>, %arg5: memref<8x8xf32, #tpu.memory_space<vmem>>, %arg6: memref<8x16xf32, #tpu.memory_space<vmem>>, %arg7: memref<8x4xf32, #tpu.memory_space<vmem>>, %arg8: memref<4x16xf32, #tpu.memory_space<vmem>>, %arg9: memref<8x2xf32, #tpu.memory_space<vmem>>, %arg10: memref<2x16xf32, #tpu.memory_space<vmem>>, %arg11: memref<1x8x8x16xf32, #tpu.memory_space<vmem>>, %arg12: memref<1x8x1xf32, #tpu.memory_space<vmem>>, %arg13: memref<1x8x8x16xf32, #tpu.memory_space<vmem>>) attributes {dimension_semantics = [#tpu.dimension_semantics<parallel>, #tpu.dimension_semantics<parallel>], iteration_bounds = array<i64: 2, 2>, scalar_prefetch = 0 : i64, scratch_operands = 0 : i64, tpu.core_type = #tpu.core_type<tc>, window_params = [{transform_indices = @transform_0, window_bounds = array<i64: 1, 8, 8>}, {transform_indices = @transform_1, window_bounds = array<i64: 1, 4, 4>}, {transform_indices = @transform_2, window_bounds = array<i64: 1, 2, 2>}, {transform_indices = @transform_3, window_bounds = array<i64: 8, 8>}, {pipeline_mode = #tpu.pipeline_mode<synchronous>, transform_indices = @transform_4, window_bounds = array<i64: 8, 16>}, {transform_indices = @transform_5, window_bounds = array<i64: 8, 4>}, {pipeline_mode = #tpu.pipeline_mode<synchronous>, transform_indices = @transform_6, window_bounds = array<i64: 4, 16>}, {transform_indices = @transform_7, window_bounds = array<i64: 8, 2>}, {pipeline_mode = #tpu.pipeline_mode<synchronous>, transform_indices = @transform_8, window_bounds = array<i64: 2, 16>}, {transform_indices = @transform_9, window_bounds = array<i64: 1, 8, 8, 16>}, {transform_indices = @transform_10, window_bounds = array<i64: 1, 8, 1>}, {transform_indices = @transform_11, window_bounds = array<i64: 1, 8, 8, 16>}]} {
    %c0 = arith.constant 0 : index
    %c0_0 = arith.constant 0 : index
    %0 = vector.load %arg5[%c0, %c0_0] : memref<8x8xf32, #tpu.memory_space<vmem>>, vector<8x8xf32>
    %c0_1 = arith.constant 0 : index
    %c0_2 = arith.constant 0 : index
    %c0_3 = arith.constant 0 : index
    %1 = vector.load %arg2[%c0_1, %c0_2, %c0_3] : memref<1x8x8xf32, #tpu.memory_space<vmem>>, vector<1x8x8xf32>
    %2 = vector.shape_cast %1 : vector<1x8x8xf32> to vector<8x8xf32>
    %cst = arith.constant dense<0.000000e+00> : vector<8x8xf32>
    %3 = tpu.matmul %0, %2, %cst {dimension_numbers = #tpu.dot_dimension_numbers<[1], [0], [0], [1], [0, 0, 1, 1], [], []>} : vector<8x8xf32>, vector<8x8xf32>, vector<8x8xf32> -> vector<8x8xf32>
    %c0_4 = arith.constant 0 : index
    %c0_5 = arith.constant 0 : index
    %4 = vector.load %arg6[%c0_4, %c0_5] : memref<8x16xf32, #tpu.memory_space<vmem>>, vector<8x16xf32>
    %cst_6 = arith.constant dense<0.000000e+00> : vector<8x16xf32>
    %5 = tpu.matmul %3, %4, %cst_6 {dimension_numbers = #tpu.dot_dimension_numbers<[1], [0], [0], [1], [0, 0, 1, 1], [], []>} : vector<8x8xf32>, vector<8x16xf32>, vector<8x16xf32> -> vector<8x16xf32>
    %c0_7 = arith.constant 0 : index
    %c0_8 = arith.constant 0 : index
    %6 = vector.load %arg7[%c0_7, %c0_8] : memref<8x4xf32, #tpu.memory_space<vmem>>, vector<8x4xf32>
    %c0_9 = arith.constant 0 : index
    %c0_10 = arith.constant 0 : index
    %c0_11 = arith.constant 0 : index
    %7 = vector.load %arg3[%c0_9, %c0_10, %c0_11] : memref<1x4x4xf32, #tpu.memory_space<vmem>>, vector<1x4x4xf32>
    %8 = vector.shape_cast %7 : vector<1x4x4xf32> to vector<4x4xf32>
    %cst_12 = arith.constant dense<0.000000e+00> : vector<8x4xf32>
    %9 = tpu.matmul %6, %8, %cst_12 {dimension_numbers = #tpu.dot_dimension_numbers<[1], [0], [0], [1], [0, 0, 1, 1], [], []>} : vector<8x4xf32>, vector<4x4xf32>, vector<8x4xf32> -> vector<8x4xf32>
    %c0_13 = arith.constant 0 : index
    %c0_14 = arith.constant 0 : index
    %10 = vector.load %arg8[%c0_13, %c0_14] : memref<4x16xf32, #tpu.memory_space<vmem>>, vector<4x16xf32>
    %cst_15 = arith.constant dense<0.000000e+00> : vector<8x16xf32>
    %11 = tpu.matmul %9, %10, %cst_15 {dimension_numbers = #tpu.dot_dimension_numbers<[1], [0], [0], [1], [0, 0, 1, 1], [], []>} : vector<8x4xf32>, vector<4x16xf32>, vector<8x16xf32> -> vector<8x16xf32>
    %12 = arith.addf %5, %11 : vector<8x16xf32>
    %c0_16 = arith.constant 0 : index
    %c0_17 = arith.constant 0 : index
    %13 = vector.load %arg9[%c0_16, %c0_17] : memref<8x2xf32, #tpu.memory_space<vmem>>, vector<8x2xf32>
    %c0_18 = arith.constant 0 : index
    %c0_19 = arith.constant 0 : index
    %c0_20 = arith.constant 0 : index
    %14 = vector.load %arg4[%c0_18, %c0_19, %c0_20] : memref<1x2x2xf32, #tpu.memory_space<vmem>>, vector<1x2x2xf32>
    %15 = vector.shape_cast %14 : vector<1x2x2xf32> to vector<2x2xf32>
    %cst_21 = arith.constant dense<0.000000e+00> : vector<8x2xf32>
    %16 = tpu.matmul %13, %15, %cst_21 {dimension_numbers = #tpu.dot_dimension_numbers<[1], [0], [0], [1], [0, 0, 1, 1], [], []>} : vector<8x2xf32>, vector<2x2xf32>, vector<8x2xf32> -> vector<8x2xf32>
    %c0_22 = arith.constant 0 : index
    %c0_23 = arith.constant 0 : index
    %17 = vector.load %arg10[%c0_22, %c0_23] : memref<2x16xf32, #tpu.memory_space<vmem>>, vector<2x16xf32>
    %cst_24 = arith.constant dense<0.000000e+00> : vector<8x16xf32>
    %18 = tpu.matmul %16, %17, %cst_24 {dimension_numbers = #tpu.dot_dimension_numbers<[1], [0], [0], [1], [0, 0, 1, 1], [], []>} : vector<8x2xf32>, vector<2x16xf32>, vector<8x16xf32> -> vector<8x16xf32>
    %19 = arith.addf %12, %18 : vector<8x16xf32>
    %20 = arith.negf %19 : vector<8x16xf32>
    %21 = math.exp %20 : vector<8x16xf32>
    %cst_25 = arith.constant 1.000000e+00 : f32
    %22 = vector.broadcast %cst_25 : f32 to vector<8x16xf32>
    %23 = arith.addf %22, %21 : vector<8x16xf32>
    %24 = arith.divf %22, %23 : vector<8x16xf32>
    %25 = vector.shape_cast %24 : vector<8x16xf32> to vector<1x8x16xf32>
    %c0_26 = arith.constant 0 : index
    %c0_27 = arith.constant 0 : index
    %c0_28 = arith.constant 0 : index
    %c0_29 = arith.constant 0 : index
    %26 = vector.load %arg11[%c0_26, %c0_27, %c0_28, %c0_29] : memref<1x8x8x16xf32, #tpu.memory_space<vmem>>, vector<1x8x8x16xf32>
    %27 = vector.shape_cast %26 : vector<1x8x8x16xf32> to vector<8x8x16xf32>
    %28 = vector.broadcast %25 : vector<1x8x16xf32> to vector<8x8x16xf32>
    %29 = arith.mulf %28, %27 : vector<8x8x16xf32>
    %c0_30 = arith.constant 0 : index
    %c0_31 = arith.constant 0 : index
    %c0_32 = arith.constant 0 : index
    %30 = vector.load %arg12[%c0_30, %c0_31, %c0_32] : memref<1x8x1xf32, #tpu.memory_space<vmem>>, vector<1x8x1xf32>
    %31 = vector.shape_cast %30 : vector<1x8x1xf32> to vector<8x1xf32>
    %32 = vector.shape_cast %31 : vector<8x1xf32> to vector<8x1x1xf32>
    %33 = vector.broadcast %32 : vector<8x1x1xf32> to vector<8x8x16xf32>
    %34 = arith.addf %29, %33 : vector<8x8x16xf32>
    %c0_33 = arith.constant 0 : index
    %c0_34 = arith.constant 0 : index
    %c0_35 = arith.constant 0 : index
    %c0_36 = arith.constant 0 : index
    %35 = vector.load %arg13[%c0_33, %c0_34, %c0_35, %c0_36] : memref<1x8x8x16xf32, #tpu.memory_space<vmem>>, vector<1x8x8x16xf32>
    %36 = vector.shape_cast %35 : vector<1x8x8x16xf32> to vector<8x8x16xf32>
    %37 = vector.shape_cast %34 : vector<8x8x16xf32> to vector<1x8x8x16xf32>
    tpu.vector_store %arg13[%c0_33, %c0_34, %c0_35, %c0_36], %37 {strides = array<i32>} : memref<1x8x8x16xf32, #tpu.memory_space<vmem>>, vector<1x8x8x16xf32>,
    return
  }
  func.func @transform_0(%arg0: i32, %arg1: i32) -> (i32, i32, i32) {
    %c0_i32 = arith.constant 0 : i32
    %c0_i32_0 = arith.constant 0 : i32
    %c0_i32_1 = arith.constant 0 : i32
    return %arg0, %c0_i32, %c0_i32_0 : i32, i32, i32
  }
  func.func @transform_1(%arg0: i32, %arg1: i32) -> (i32, i32, i32) {
    %c0_i32 = arith.constant 0 : i32
    %c0_i32_0 = arith.constant 0 : i32
    %c0_i32_1 = arith.constant 0 : i32
    return %arg0, %c0_i32, %c0_i32_0 : i32, i32, i32
  }
  func.func @transform_2(%arg0: i32, %arg1: i32) -> (i32, i32, i32) {
    %c0_i32 = arith.constant 0 : i32
    %c0_i32_0 = arith.constant 0 : i32
    %c0_i32_1 = arith.constant 0 : i32
    return %arg0, %c0_i32, %c0_i32_0 : i32, i32, i32
  }
  func.func @transform_3(%arg0: i32, %arg1: i32) -> (i32, i32) {
    %c0_i32 = arith.constant 0 : i32
    %c0_i32_0 = arith.constant 0 : i32
    return %arg1, %c0_i32 : i32, i32
  }
  func.func @transform_4(%arg0: i32, %arg1: i32) -> (i32, i32) {
    %c0_i32 = arith.constant 0 : i32
    %c0_i32_0 = arith.constant 0 : i32
    %c0_i32_1 = arith.constant 0 : i32
    return %c0_i32, %c0_i32_0 : i32, i32
  }
  func.func @transform_5(%arg0: i32, %arg1: i32) -> (i32, i32) {
    %c0_i32 = arith.constant 0 : i32
    %c0_i32_0 = arith.constant 0 : i32
    return %arg1, %c0_i32 : i32, i32
  }
  func.func @transform_6(%arg0: i32, %arg1: i32) -> (i32, i32) {
    %c0_i32 = arith.constant 0 : i32
    %c0_i32_0 = arith.constant 0 : i32
    %c0_i32_1 = arith.constant 0 : i32
    return %c0_i32, %c0_i32_0 : i32, i32
  }
  func.func @transform_7(%arg0: i32, %arg1: i32) -> (i32, i32) {
    %c0_i32 = arith.constant 0 : i32
    %c0_i32_0 = arith.constant 0 : i32
    return %arg1, %c0_i32 : i32, i32
  }
  func.func @transform_8(%arg0: i32, %arg1: i32) -> (i32, i32) {
    %c0_i32 = arith.constant 0 : i32
    %c0_i32_0 = arith.constant 0 : i32
    %c0_i32_1 = arith.constant 0 : i32
    return %c0_i32, %c0_i32_0 : i32, i32
  }
  func.func @transform_9(%arg0: i32, %arg1: i32) -> (i32, i32, i32, i32) {
    %c0_i32 = arith.constant 0 : i32
    %c0_i32_0 = arith.constant 0 : i32
    %c0_i32_1 = arith.constant 0 : i32
    return %arg0, %c0_i32, %arg1, %c0_i32_0 : i32, i32, i32, i32
  }
  func.func @transform_10(%arg0: i32, %arg1: i32) -> (i32, i32, i32) {
    %c0_i32 = arith.constant 0 : i32
    %c0_i32_0 = arith.constant 0 : i32
    %c0_i32_1 = arith.constant 0 : i32
    return %arg0, %c0_i32, %c0_i32_0 : i32, i32, i32
  }
  func.func @transform_11(%arg0: i32, %arg1: i32) -> (i32, i32, i32, i32) {
    %c0_i32 = arith.constant 0 : i32
    %c0_i32_0 = arith.constant 0 : i32
    %c0_i32_1 = arith.constant 0 : i32
    return %arg0, %c0_i32, %arg1, %c0_i32_0 : i32, i32, i32, i32
  }
}

</mosaic_0001>

<llo_original>
// kernel: fpa_forward.12
$region0: #{fpa_forward.12}
  #allocation0 [shape = 'u32[]', space=smem, size = 0x4, offset = 0x4, fixed_abs, tag = 'smem constant byte address 0x4 - core index']
  #allocation1 [shape = 'u32[144,128]{1,0:T(1,128)}', space=vmem, size = 0x12000, scoped, tag = 'internal scratch']
  #allocation2 [shape = 'f32[1]{0:T(128)S(6)}', space=smem, size = 0x200, scoped, tag = 'scoped memory for fpa_forward.12']
  %s0 = inlined_call_operand.vmem [shape: f32[9], index: 0, kind: input, shape index: {}]
  %s1 = inlined_call_operand.<no memory space> [shape: f32[1], index: 1, kind: input, shape index: {}]
  %s2 = inlined_call_operand.vmem [shape: f32[2,4,5,5], index: 2, kind: input, shape index: {}]
  %s3 = inlined_call_operand.vmem [shape: f32[2,1,4,4], index: 3, kind: output, shape index: {}]
  %s4 = sld [smem:[#allocation0]]
  $region49: #{fpa_forward.12} parent=0
    _
  %s6 = ssub.s32 1, %s4
  %s7 = scalar_select 0, %s6, %s4
  %8 = sst [smem:[#allocation2]] %s1
  $region1: #{fpa_forward.12} parent=0
    #allocation3 [shape = 'u8[512]{0}', space=smem, size = 0x200, scoped, tag = 'input window, operand 0, single buffered']
    #allocation4 [shape = 's32[2]{0}', space=sflag, size = 0x8, scoped, tag = 'scoped memory for fpa_forward.12']
    %9 = vsyncpa [#allocation4], 0
    loop: start=0, step=1, limit=4
    $region2: #{fpa_forward.12} parent=1 // loop_pre_header
      _
    $region3: #{fpa_forward.12} parent=1 // loop_header
      %s11 = sphi 0, %s15
      %p12 = scmp.ge.s32.totalorder %s11, 4
      %s19 = sphi 0, %s19
      %s21 = sphi 0, %s19
      %s22 = sphi 0, %s21
      %s36 = sphi 0, %s22
      %s40 = sphi 0, %s40
      %s42 = sphi 0, %s40
      %s43 = sphi 0, %s42
      %s57 = sphi 0, %s43
      %s63 = sphi 0, %s65
      %s66 = sphi 0, %s63
      %s67 = sphi 0, %s66
      %s83 = sphi 0, %s67
      %s89 = sphi 0, %s91
      %s92 = sphi 0, %s89
      %s93 = sphi 0, %s92
      %s109 = sphi 0, %s93
    $region4: #{fpa_forward.12} parent=1 // loop_header_branch
      %14 = sbr.rel (%p12) target = $region8
    $region5: #{fpa_forward.12} parent=1 // loop_body
      %s16 = ssub.s32 %s11, 1
      %s17 = ssub.s32 %s11, 2
      %s18 = sadd.s32 %s11, 1
      %s20 = sadd.s32 %s19, 1
      %p23 = scmp.eq.s32.totalorder %s11, 1
      %p24 = scmp.ne.s32.totalorder %s19, %s21
      %p25 = scmp.eq.s32.totalorder %s11, 0
      %p26 = por %p24, %p25
      %p27 = scmp.ne.s32.totalorder %s19, %s21
      %p28 = scmp.eq.s32.totalorder %s16, 1
      %p29 = por %p27, %p28
      %p30 = scmp.ne.s32.totalorder %s21, %s22
      %p31 = scmp.eq.s32.totalorder %s16, 0
      %p32 = por %p30, %p31
      %p33 = scmp.ne.s32.totalorder %s21, %s22
      %p34 = scmp.eq.s32.totalorder %s17, 1
      %p35 = por %p33, %p34
      %p37 = scmp.ne.s32.totalorder %s22, %s36
      %p38 = scmp.eq.s32.totalorder %s17, 0
      %p39 = por %p37, %p38
      %s41 = sadd.s32 %s40, 1
      %p44 = scmp.eq.s32.totalorder %s11, 1
      %p45 = scmp.ne.s32.totalorder %s40, %s42
      %p46 = scmp.eq.s32.totalorder %s11, 0
      %p47 = por %p45, %p46
      %p48 = scmp.ne.s32.totalorder %s40, %s42
      %p49 = scmp.eq.s32.totalorder %s16, 1
      %p50 = por %p48, %p49
      %p51 = scmp.ne.s32.totalorder %s42, %s43
      %p52 = scmp.eq.s32.totalorder %s16, 0
      %p53 = por %p51, %p52
      %p54 = scmp.ne.s32.totalorder %s42, %s43
      %p55 = scmp.eq.s32.totalorder %s17, 1
      %p56 = por %p54, %p55
      %p58 = scmp.ne.s32.totalorder %s43, %s57
      %p59 = scmp.eq.s32.totalorder %s17, 0
      %p60 = por %p58, %p59
      %s61 = ssub.s32 %s11, %s18
      %p62 = scmp.eq.s32.totalorder %s61, 0
      %s64 = sadd.s32 %s63, 1
      %s65 = scalar_select %p62, %s63, %s64
      %p68 = pneg %p62
      %p69 = scmp.eq.s32.totalorder %s11, 1
      %p70 = por %p68, %p69
      %p71 = scmp.ne.s32.totalorder %s63, %s66
      %p72 = scmp.eq.s32.totalorder %s11, 0
      %p73 = por %p71, %p72
      %p74 = scmp.ne.s32.totalorder %s63, %s66
      %p75 = scmp.eq.s32.totalorder %s16, 1
      %p76 = por %p74, %p75
      %p77 = scmp.ne.s32.totalorder %s66, %s67
      %p78 = scmp.eq.s32.totalorder %s16, 0
      %p79 = por %p77, %p78
      %p80 = scmp.ne.s32.totalorder %s66, %s67
      %p81 = scmp.eq.s32.totalorder %s17, 1
      %p82 = por %p80, %p81
      %p84 = scmp.ne.s32.totalorder %s67, %s83
      %p85 = scmp.eq.s32.totalorder %s17, 0
      %p86 = por %p84, %p85
      %s87 = ssub.s32 %s11, %s18
      %p88 = scmp.eq.s32.totalorder %s87, 0
      %s90 = sadd.s32 %s89, 1
      %s91 = scalar_select %p88, %s89, %s90
      %p94 = pneg %p88
      %p95 = scmp.eq.s32.totalorder %s11, 1
      %p96 = por %p94, %p95
      %p97 = scmp.ne.s32.totalorder %s89, %s92
      %p98 = scmp.eq.s32.totalorder %s11, 0
      %p99 = por %p97, %p98
      %p100 = scmp.ne.s32.totalorder %s89, %s92
      %p101 = scmp.eq.s32.totalorder %s16, 1
      %p102 = por %p100, %p101
      %p103 = scmp.ne.s32.totalorder %s92, %s93
      %p104 = scmp.eq.s32.totalorder %s16, 0
      %p105 = por %p103, %p104
      %p106 = scmp.ne.s32.totalorder %s92, %s93
      %p107 = scmp.eq.s32.totalorder %s17, 1
      %p108 = por %p106, %p107
      %p110 = scmp.ne.s32.totalorder %s93, %s109
      %p111 = scmp.eq.s32.totalorder %s17, 0
      %p112 = por %p110, %p111
      %p113 = scmp.le.s32.totalorder 1, %s11
      %p114 = scmp.lt.s32.totalorder %s11, 3
      %p115 = pnand %p113, %p114
      %p116 = pneg %p115
      // Predicated region
      $region9: #{fpa_forward.12} parent=5 // pred_check
        _
      $region10: #{fpa_forward.12} parent=5 // pred_check_branch
        %118 = sbr.rel (%p115) target = $region12
      $region11: #{fpa_forward.12} parent=5 // pred_region
        %s119 = ssub.s32 %s11, 1
        // Predicated region
        $region13: #{fpa_forward.12} parent=11 // pred_check
          %p120 = pneg %p32
        $region14: #{fpa_forward.12} parent=11 // pred_check_branch
          %122 = sbr.rel (%p120) target = $region16
        $region15: #{fpa_forward.12} parent=11 // pred_region
          %s124 = ssub.s32 16, 16
          %125 = vsyncadd [#allocation4], %s124
          %s127 = sshll.u32 %s0, 4
          %s128 = int_to_ptr.vmem [resolvable:$true] %s127
          %130 = dma.vmem_to_smem %s128, 16, [#allocation3], [#allocation4]
        $region16: #{fpa_forward.12} parent=11 // pred_fallthru
          _
        // Predicated region
        $region17: #{fpa_forward.12} parent=11 // pred_check
          %p131 = pneg %p53
        $region18: #{fpa_forward.12} parent=11 // pred_check_branch
          %133 = sbr.rel (%p131) target = $region20
        $region19: #{fpa_forward.12} parent=11 // pred_region
          _
        $region20: #{fpa_forward.12} parent=11 // pred_fallthru
          _
      $region12: #{fpa_forward.12} parent=5 // pred_fallthru
        _
      %p134 = scmp.lt.s32.totalorder %s11, 2
      // Predicated region
      $region21: #{fpa_forward.12} parent=5 // pred_check
        %p135 = pneg %p134
      $region22: #{fpa_forward.12} parent=5 // pred_check_branch
        %137 = sbr.rel (%p135) target = $region24
      $region23: #{fpa_forward.12} parent=5 // pred_region
        // Predicated region
        $region25: #{fpa_forward.12} parent=23 // pred_check
          %p138 = pneg %p73
        $region26: #{fpa_forward.12} parent=23 // pred_check_branch
          %140 = sbr.rel (%p138) target = $region28
        $region27: #{fpa_forward.12} parent=23 // pred_region
          %p141 = scmp.lt.s32.totalorder %s11, 1
          %s142 = scalar_select %p141, %s11, 1
          %s143 = smul.addr %s142, 4
          %s144 = smul.addr %s143, 8
          %s145 = scalar_lea.vmem %s2, %s144
        $region28: #{fpa_forward.12} parent=23 // pred_fallthru
          _
      $region24: #{fpa_forward.12} parent=5 // pred_fallthru
        _
      %p146 = scmp.le.s32.totalorder 1, %s11
      %p147 = scmp.lt.s32.totalorder %s11, 3
      %p148 = pnand %p146, %p147
      %p149 = pneg %p148
      // Predicated region
      $region29: #{fpa_forward.12} parent=5 // pred_check
        _
      $region30: #{fpa_forward.12} parent=5 // pred_check_branch
        %151 = sbr.rel (%p148) target = $region32
      $region31: #{fpa_forward.12} parent=5 // pred_region
        %s152 = ssub.s32 %s11, 1
        // Predicated region
        $region33: #{fpa_forward.12} parent=31 // pred_check
          %p153 = pneg %p32
        $region34: #{fpa_forward.12} parent=31 // pred_check_branch
          %155 = sbr.rel (%p153) target = $region36
        $region35: #{fpa_forward.12} parent=31 // pred_region
          %156 = dma.done [#allocation4], 16
        $region36: #{fpa_forward.12} parent=31 // pred_fallthru
          _
        %157 = sfence
        %p158 = pneg %p32
        %p159 = pneg %p29
        %p160 = pneg %p53
        %p161 = pneg %p50
        %p162 = scmp.lt.s32.totalorder %s16, 1
        %s163 = scalar_select %p162, %s16, 1
        %s164 = smul.addr %s163, 4
        %s165 = smul.addr %s164, 8
        %s166 = scalar_lea.vmem %s2, %s165
        %p167 = pneg %p79
        %p168 = pneg %p76
        %p169 = pneg %p105
        %p170 = pneg %p102
        %p171 = scmp.lt.s32.totalorder %s16, 1
        %s172 = scalar_select %p171, %s16, 1
        %s173 = smul.addr %s172, 4
        %s174 = scalar_lea.vmem %s3, %s173
        %p175 = scmp.lt.s32.totalorder %s16, 1
        %s176 = scalar_select %p175, %s16, 1
        %s177 = smul.addr %s176, 4
        %s178 = smul.addr %s177, 8
        %s179 = scalar_lea.vmem %s2, %s178
        %p180 = scmp.lt.s32.totalorder %s16, 1
        %s181 = scalar_select %p180, %s16, 1
        %s182 = smul.addr %s181, 4
        %s183 = scalar_lea.vmem %s3, %s182
        %v184 = vld [vmem:[%s179] sm:$0x1f]
        %s185 = scalar_lea.vmem %s179, 8
        %v186 = vld [vmem:[%s185] sm:$0x1f]
        %s187 = scalar_lea.vmem %s179, 16
        %v188 = vld [vmem:[%s187] sm:$0x1f]
        %s189 = scalar_lea.vmem %s179, 24
        %v190 = vld [vmem:[%s189] sm:$0x1f]
        %s191 = sld [smem:[#allocation3]]
        %v192 = vstv %s191
        %v193 = vmul.f32 %v192, %v184
        %v194 = vadd.f32 %v193, 0.0
        %s195 = sld [smem:[#allocation3 + $0x1]]
        %v196 = vstv %s195
        %v197 = vmul.f32 %v196, %v186
        %v198 = vadd.f32 %v194, %v197
        %s199 = sld [smem:[#allocation3 + $0x2]]
        %v200 = vstv %s199
        %v201 = vmul.f32 %v200, %v184
        %203 = vrot.lane.b32.xlu0 %v201, 127
        %v204 = vpop.permute.xlu0 %203
        %v206 = vadd.f32 %v198, %v204
        %s207 = sld [smem:[#allocation3 + $0x3]]
        %v208 = vstv %s207
        %v209 = vmul.f32 %v208, %v188
        %v210 = vadd.f32 %v206, %v209
        %s211 = sld [smem:[#allocation3 + $0x4]]
        %v212 = vstv %s211
        %v213 = vmul.f32 %v212, %v190
        %v214 = vadd.f32 %v210, %v213
        %s215 = sld [smem:[#allocation3 + $0x5]]
        %v216 = vstv %s215
        %v217 = vmul.f32 %v216, %v188
        %219 = vrot.lane.b32.xlu0 %v217, 127
        %v220 = vpop.permute.xlu0 %219
        %v222 = vadd.f32 %v214, %v220
        %s223 = sld [smem:[#allocation3 + $0x6]]
        %v224 = vstv %s223
        %v225 = vmul.f32 %v224, %v184
        %v227 = vrot.slane %v225, 1
        %v229 = vadd.f32 %v222, %v227
        %s230 = sld [smem:[#allocation3 + $0x7]]
        %v231 = vstv %s230
        %v232 = vmul.f32 %v231, %v186
        %v234 = vrot.slane %v232, 1
        %v236 = vadd.f32 %v229, %v234
        %s237 = sld [smem:[#allocation3 + $0x8]]
        %v238 = vstv %s237
        %v239 = vmul.f32 %v238, %v184
        %v241 = vrot.slane %v239, 1
        %242 = vrot.lane.b32.xlu0 %v241, 127
        %v243 = vpop.permute.xlu0 %242
        %v245 = vadd.f32 %v236, %v243
        %s246 = sld [smem:[#allocation2]]
        %v247 = vstv %s246
        %v248 = vadd.f32 %v245, %v247
        %v249 = vmax.f32 %v248, 0.0
        %vm250 = vcmask 27648
        %251 = vst.msk [vmem:[%s183] sm:$0xf] %vm250, %v249
        %p252 = scmp.lt.s32.totalorder %s16, 1
        %s253 = scalar_select %p252, %s16, 1
        %s254 = smul.addr %s253, 4
        %s255 = scalar_lea.vmem %s3, %s254
        // Predicated region
        $region37: #{fpa_forward.12} parent=31 // pred_check
          %p256 = pneg %p102
        $region38: #{fpa_forward.12} parent=31 // pred_check_branch
          %258 = sbr.rel (%p256) target = $region40
        $region39: #{fpa_forward.12} parent=31 // pred_region
          _
        $region40: #{fpa_forward.12} parent=31 // pred_fallthru
          _
      $region32: #{fpa_forward.12} parent=5 // pred_fallthru
        _
      %p259 = scmp.le.s32.totalorder 2, %s11
      // Predicated region
      $region41: #{fpa_forward.12} parent=5 // pred_check
        %p260 = pneg %p259
      $region42: #{fpa_forward.12} parent=5 // pred_check_branch
        %262 = sbr.rel (%p260) target = $region44
      $region43: #{fpa_forward.12} parent=5 // pred_region
        %s263 = ssub.s32 %s11, 2
        // Predicated region
        $region45: #{fpa_forward.12} parent=43 // pred_check
          %p264 = pneg %p108
        $region46: #{fpa_forward.12} parent=43 // pred_check_branch
          %266 = sbr.rel (%p264) target = $region48
        $region47: #{fpa_forward.12} parent=43 // pred_region
          %p267 = scmp.lt.s32.totalorder %s17, 1
          %s268 = scalar_select %p267, %s17, 1
          %s269 = smul.addr %s268, 4
          %s270 = scalar_lea.vmem %s3, %s269
        $region48: #{fpa_forward.12} parent=43 // pred_fallthru
          _
      $region44: #{fpa_forward.12} parent=5 // pred_fallthru
        _
    $region6: #{fpa_forward.12} parent=1 // loop_footer
      %s15 = sadd.s32 1, %s11
    $region7: #{fpa_forward.12} parent=1 // loop_footer_branch
      %10 = sbr.rel target = $region3
    $region8: #{fpa_forward.12} parent=1 // loop_exit
      _
    %271 = vsyncpa [#allocation4], 1
    %s272 = scalar_lea.sflag [#allocation4], 1
    %273 = vsyncpa %s272, 1

// kernel: fpa_forward.11
$region0: #{fpa_forward.11}
  #allocation0 [shape = 'u32[]', space=smem, size = 0x4, offset = 0x4, fixed_abs, tag = 'smem constant byte address 0x4 - core index']
  #allocation1 [shape = 'u32[144,128]{1,0:T(1,128)}', space=vmem, size = 0x12000, scoped, tag = 'internal scratch']
  #allocation2 [shape = 'f32[1]{0:T(128)S(6)}', space=smem, size = 0x200, scoped, tag = 'scoped memory for fpa_forward.11']
  %s0 = inlined_call_operand.vmem [shape: f32[36], index: 0, kind: input, shape index: {}]
  %s1 = inlined_call_operand.<no memory space> [shape: f32[1], index: 1, kind: input, shape index: {}]
  %s2 = inlined_call_operand.vmem [shape: f32[2,16,9,9], index: 2, kind: input, shape index: {}]
  %s3 = inlined_call_operand.vmem [shape: f32[2,1,8,8], index: 3, kind: output, shape index: {}]
  %s4 = sld [smem:[#allocation0]]
  $region49: #{fpa_forward.11} parent=0
    _
  %s6 = ssub.s32 1, %s4
  %s7 = scalar_select 0, %s6, %s4
  %8 = sst [smem:[#allocation2]] %s1
  $region1: #{fpa_forward.11} parent=0
    #allocation3 [shape = 'u8[512]{0}', space=smem, size = 0x200, scoped, tag = 'input window, operand 0, single buffered']
    #allocation4 [shape = 's32[2]{0}', space=sflag, size = 0x8, scoped, tag = 'scoped memory for fpa_forward.11']
    %9 = vsyncpa [#allocation4], 0
    loop: start=0, step=1, limit=4
    $region2: #{fpa_forward.11} parent=1 // loop_pre_header
      _
    $region3: #{fpa_forward.11} parent=1 // loop_header
      %s11 = sphi 0, %s15
      %p12 = scmp.ge.s32.totalorder %s11, 4
      %s19 = sphi 0, %s19
      %s21 = sphi 0, %s19
      %s22 = sphi 0, %s21
      %s36 = sphi 0, %s22
      %s40 = sphi 0, %s40
      %s42 = sphi 0, %s40
      %s43 = sphi 0, %s42
      %s57 = sphi 0, %s43
      %s63 = sphi 0, %s65
      %s66 = sphi 0, %s63
      %s67 = sphi 0, %s66
      %s83 = sphi 0, %s67
      %s89 = sphi 0, %s91
      %s92 = sphi 0, %s89
      %s93 = sphi 0, %s92
      %s109 = sphi 0, %s93
    $region4: #{fpa_forward.11} parent=1 // loop_header_branch
      %14 = sbr.rel (%p12) target = $region8
    $region5: #{fpa_forward.11} parent=1 // loop_body
      %s16 = ssub.s32 %s11, 1
      %s17 = ssub.s32 %s11, 2
      %s18 = sadd.s32 %s11, 1
      %s20 = sadd.s32 %s19, 1
      %p23 = scmp.eq.s32.totalorder %s11, 1
      %p24 = scmp.ne.s32.totalorder %s19, %s21
      %p25 = scmp.eq.s32.totalorder %s11, 0
      %p26 = por %p24, %p25
      %p27 = scmp.ne.s32.totalorder %s19, %s21
      %p28 = scmp.eq.s32.totalorder %s16, 1
      %p29 = por %p27, %p28
      %p30 = scmp.ne.s32.totalorder %s21, %s22
      %p31 = scmp.eq.s32.totalorder %s16, 0
      %p32 = por %p30, %p31
      %p33 = scmp.ne.s32.totalorder %s21, %s22
      %p34 = scmp.eq.s32.totalorder %s17, 1
      %p35 = por %p33, %p34
      %p37 = scmp.ne.s32.totalorder %s22, %s36
      %p38 = scmp.eq.s32.totalorder %s17, 0
      %p39 = por %p37, %p38
      %s41 = sadd.s32 %s40, 1
      %p44 = scmp.eq.s32.totalorder %s11, 1
      %p45 = scmp.ne.s32.totalorder %s40, %s42
      %p46 = scmp.eq.s32.totalorder %s11, 0
      %p47 = por %p45, %p46
      %p48 = scmp.ne.s32.totalorder %s40, %s42
      %p49 = scmp.eq.s32.totalorder %s16, 1
      %p50 = por %p48, %p49
      %p51 = scmp.ne.s32.totalorder %s42, %s43
      %p52 = scmp.eq.s32.totalorder %s16, 0
      %p53 = por %p51, %p52
      %p54 = scmp.ne.s32.totalorder %s42, %s43
      %p55 = scmp.eq.s32.totalorder %s17, 1
      %p56 = por %p54, %p55
      %p58 = scmp.ne.s32.totalorder %s43, %s57
      %p59 = scmp.eq.s32.totalorder %s17, 0
      %p60 = por %p58, %p59
      %s61 = ssub.s32 %s11, %s18
      %p62 = scmp.eq.s32.totalorder %s61, 0
      %s64 = sadd.s32 %s63, 1
      %s65 = scalar_select %p62, %s63, %s64
      %p68 = pneg %p62
      %p69 = scmp.eq.s32.totalorder %s11, 1
      %p70 = por %p68, %p69
      %p71 = scmp.ne.s32.totalorder %s63, %s66
      %p72 = scmp.eq.s32.totalorder %s11, 0
      %p73 = por %p71, %p72
      %p74 = scmp.ne.s32.totalorder %s63, %s66
      %p75 = scmp.eq.s32.totalorder %s16, 1
      %p76 = por %p74, %p75
      %p77 = scmp.ne.s32.totalorder %s66, %s67
      %p78 = scmp.eq.s32.totalorder %s16, 0
      %p79 = por %p77, %p78
      %p80 = scmp.ne.s32.totalorder %s66, %s67
      %p81 = scmp.eq.s32.totalorder %s17, 1
      %p82 = por %p80, %p81
      %p84 = scmp.ne.s32.totalorder %s67, %s83
      %p85 = scmp.eq.s32.totalorder %s17, 0
      %p86 = por %p84, %p85
      %s87 = ssub.s32 %s11, %s18
      %p88 = scmp.eq.s32.totalorder %s87, 0
      %s90 = sadd.s32 %s89, 1
      %s91 = scalar_select %p88, %s89, %s90
      %p94 = pneg %p88
      %p95 = scmp.eq.s32.totalorder %s11, 1
      %p96 = por %p94, %p95
      %p97 = scmp.ne.s32.totalorder %s89, %s92
      %p98 = scmp.eq.s32.totalorder %s11, 0
      %p99 = por %p97, %p98
      %p100 = scmp.ne.s32.totalorder %s89, %s92
      %p101 = scmp.eq.s32.totalorder %s16, 1
      %p102 = por %p100, %p101
      %p103 = scmp.ne.s32.totalorder %s92, %s93
      %p104 = scmp.eq.s32.totalorder %s16, 0
      %p105 = por %p103, %p104
      %p106 = scmp.ne.s32.totalorder %s92, %s93
      %p107 = scmp.eq.s32.totalorder %s17, 1
      %p108 = por %p106, %p107
      %p110 = scmp.ne.s32.totalorder %s93, %s109
      %p111 = scmp.eq.s32.totalorder %s17, 0
      %p112 = por %p110, %p111
      %p113 = scmp.le.s32.totalorder 1, %s11
      %p114 = scmp.lt.s32.totalorder %s11, 3
      %p115 = pnand %p113, %p114
      %p116 = pneg %p115
      // Predicated region
      $region9: #{fpa_forward.11} parent=5 // pred_check
        _
      $region10: #{fpa_forward.11} parent=5 // pred_check_branch
        %118 = sbr.rel (%p115) target = $region12
      $region11: #{fpa_forward.11} parent=5 // pred_region
        %s119 = ssub.s32 %s11, 1
        // Predicated region
        $region13: #{fpa_forward.11} parent=11 // pred_check
          %p120 = pneg %p32
        $region14: #{fpa_forward.11} parent=11 // pred_check_branch
          %122 = sbr.rel (%p120) target = $region16
        $region15: #{fpa_forward.11} parent=11 // pred_region
          %s124 = ssub.s32 16, 16
          %125 = vsyncadd [#allocation4], %s124
          %s127 = sshll.u32 %s0, 4
          %s128 = int_to_ptr.vmem [resolvable:$true] %s127
          %130 = dma.vmem_to_smem %s128, 16, [#allocation3], [#allocation4]
        $region16: #{fpa_forward.11} parent=11 // pred_fallthru
          _
        // Predicated region
        $region17: #{fpa_forward.11} parent=11 // pred_check
          %p131 = pneg %p53
        $region18: #{fpa_forward.11} parent=11 // pred_check_branch
          %133 = sbr.rel (%p131) target = $region20
        $region19: #{fpa_forward.11} parent=11 // pred_region
          _
        $region20: #{fpa_forward.11} parent=11 // pred_fallthru
          _
      $region12: #{fpa_forward.11} parent=5 // pred_fallthru
        _
      %p134 = scmp.lt.s32.totalorder %s11, 2
      // Predicated region
      $region21: #{fpa_forward.11} parent=5 // pred_check
        %p135 = pneg %p134
      $region22: #{fpa_forward.11} parent=5 // pred_check_branch
        %137 = sbr.rel (%p135) target = $region24
      $region23: #{fpa_forward.11} parent=5 // pred_region
        // Predicated region
        $region25: #{fpa_forward.11} parent=23 // pred_check
          %p138 = pneg %p73
        $region26: #{fpa_forward.11} parent=23 // pred_check_branch
          %140 = sbr.rel (%p138) target = $region28
        $region27: #{fpa_forward.11} parent=23 // pred_region
          %p141 = scmp.lt.s32.totalorder %s11, 1
          %s142 = scalar_select %p141, %s11, 1
          %s143 = smul.addr %s142, 32
          %s144 = smul.addr %s143, 8
          %s145 = scalar_lea.vmem %s2, %s144
        $region28: #{fpa_forward.11} parent=23 // pred_fallthru
          _
      $region24: #{fpa_forward.11} parent=5 // pred_fallthru
        _
      %p146 = scmp.le.s32.totalorder 1, %s11
      %p147 = scmp.lt.s32.totalorder %s11, 3
      %p148 = pnand %p146, %p147
      %p149 = pneg %p148
      // Predicated region
      $region29: #{fpa_forward.11} parent=5 // pred_check
        _
      $region30: #{fpa_forward.11} parent=5 // pred_check_branch
        %151 = sbr.rel (%p148) target = $region32
      $region31: #{fpa_forward.11} parent=5 // pred_region
        %s152 = ssub.s32 %s11, 1
        // Predicated region
        $region33: #{fpa_forward.11} parent=31 // pred_check
          %p153 = pneg %p32
        $region34: #{fpa_forward.11} parent=31 // pred_check_branch
          %155 = sbr.rel (%p153) target = $region36
        $region35: #{fpa_forward.11} parent=31 // pred_region
          %156 = dma.done [#allocation4], 16
        $region36: #{fpa_forward.11} parent=31 // pred_fallthru
          _
        %157 = sfence
        %p158 = pneg %p32
        %p159 = pneg %p29
        %p160 = pneg %p53
        %p161 = pneg %p50
        %p162 = scmp.lt.s32.totalorder %s16, 1
        %s163 = scalar_select %p162, %s16, 1
        %s164 = smul.addr %s163, 32
        %s165 = smul.addr %s164, 8
        %s166 = scalar_lea.vmem %s2, %s165
        %p167 = pneg %p79
        %p168 = pneg %p76
        %p169 = pneg %p105
        %p170 = pneg %p102
        %p171 = scmp.lt.s32.totalorder %s16, 1
        %s172 = scalar_select %p171, %s16, 1
        %s173 = smul.addr %s172, 8
        %s174 = scalar_lea.vmem %s3, %s173
        %p175 = scmp.lt.s32.totalorder %s16, 1
        %s176 = scalar_select %p175, %s16, 1
        %s177 = smul.addr %s176, 32
        %s178 = smul.addr %s177, 8
        %s179 = scalar_lea.vmem %s2, %s178
        %p180 = scmp.lt.s32.totalorder %s16, 1
        %s181 = scalar_select %p180, %s16, 1
        %s182 = smul.addr %s181, 8
        %s183 = scalar_lea.vmem %s3, %s182
        %v184 = vld [vmem:[%s179] sm:$0xff]
        %v185 = vld [vmem:[%s179 + $0x8] sm:$0x1]
        %s186 = scalar_lea.vmem %s179, 16
        %v187 = vld [vmem:[%s186] sm:$0xff]
        %v188 = vld [vmem:[%s186 + $0x8] sm:$0x1]
        %s189 = scalar_lea.vmem %s179, 32
        %v190 = vld [vmem:[%s189] sm:$0xff]
        %v191 = vld [vmem:[%s189 + $0x8] sm:$0x1]
        %s192 = scalar_lea.vmem %s179, 48
        %v193 = vld [vmem:[%s192] sm:$0xff]
        %v194 = vld [vmem:[%s192 + $0x8] sm:$0x1]
        %s195 = scalar_lea.vmem %s179, 64
        %v196 = vld [vmem:[%s195] sm:$0xff]
        %v197 = vld [vmem:[%s195 + $0x8] sm:$0x1]
        %s198 = scalar_lea.vmem %s179, 80
        %v199 = vld [vmem:[%s198] sm:$0xff]
        %v200 = vld [vmem:[%s198 + $0x8] sm:$0x1]
        %s201 = scalar_lea.vmem %s179, 96
        %v202 = vld [vmem:[%s201] sm:$0xff]
        %v203 = vld [vmem:[%s201 + $0x8] sm:$0x1]
        %s204 = scalar_lea.vmem %s179, 112
        %v205 = vld [vmem:[%s204] sm:$0xff]
        %v206 = vld [vmem:[%s204 + $0x8] sm:$0x1]
        %s207 = scalar_lea.vmem %s179, 128
        %v208 = vld [vmem:[%s207] sm:$0xff]
        %s209 = scalar_lea.vmem %s179, 144
        %v210 = vld [vmem:[%s209] sm:$0xff]
        %s211 = scalar_lea.vmem %s179, 160
        %v212 = vld [vmem:[%s211] sm:$0xff]
        %s213 = scalar_lea.vmem %s179, 176
        %v214 = vld [vmem:[%s213] sm:$0xff]
        %s215 = scalar_lea.vmem %s179, 192
        %v216 = vld [vmem:[%s215] sm:$0xff]
        %s217 = scalar_lea.vmem %s179, 208
        %v218 = vld [vmem:[%s217] sm:$0xff]
        %s219 = scalar_lea.vmem %s179, 224
        %v220 = vld [vmem:[%s219] sm:$0xff]
        %s221 = scalar_lea.vmem %s179, 240
        %v222 = vld [vmem:[%s221] sm:$0xff]
        %s223 = sld [smem:[#allocation3]]
        %v224 = vstv %s223
        %v225 = vmul.f32 %v224, %v184
        %v226 = vadd.f32 %v225, 0.0
        %s227 = sld [smem:[#allocation3 + $0x1]]
        %v228 = vstv %s227
        %v229 = vmul.f32 %v228, %v196
        %v230 = vadd.f32 %v226, %v229
        %s231 = sld [smem:[#allocation3 + $0x2]]
        %v232 = vstv %s231
        %v233 = vmul.f32 %v232, %v184
        %235 = vrot.lane.b32.xlu0 %v233, 127
        %v236 = vpop.permute.xlu0 %235
        %v238 = vadd.f32 %v230, %v236
        %s239 = sld [smem:[#allocation3 + $0x3]]
        %v240 = vstv %s239
        %v241 = vmul.f32 %v240, %v208
        %v242 = vadd.f32 %v238, %v241
        %s243 = sld [smem:[#allocation3 + $0x4]]
        %v244 = vstv %s243
        %v245 = vmul.f32 %v244, %v216
        %v246 = vadd.f32 %v242, %v245
        %s247 = sld [smem:[#allocation3 + $0x5]]
        %v248 = vstv %s247
        %v249 = vmul.f32 %v248, %v208
        %251 = vrot.lane.b32.xlu0 %v249, 127
        %v252 = vpop.permute.xlu0 %251
        %v254 = vadd.f32 %v246, %v252
        %s255 = sld [smem:[#allocation3 + $0x6]]
        %v256 = vstv %s255
        %v257 = vmul.f32 %v256, %v184
        %v258 = vmul.f32 %v256, %v185
        %vm261 = vcmask 1046528
        %v262 = vrot.slane %v257, 1
        %v263 = vrot.slane %v258, 1
        %v264 = vsel %vm261, %v262, %v263
        %v266 = vadd.f32 %v254, %v264
        %s267 = sld [smem:[#allocation3 + $0x7]]
        %v268 = vstv %s267
        %v269 = vmul.f32 %v268, %v196
        %v270 = vmul.f32 %v268, %v197
        %v273 = vrot.slane %v269, 1
        %v274 = vrot.slane %v270, 1
        %v275 = vsel %vm261, %v273, %v274
        %v277 = vadd.f32 %v266, %v275
        %s278 = sld [smem:[#allocation3 + $0x8]]
        %v279 = vstv %s278
        %v280 = vmul.f32 %v279, %v184
        %v281 = vmul.f32 %v279, %v185
        %v284 = vrot.slane %v280, 1
        %v285 = vrot.slane %v281, 1
        %v286 = vsel %vm261, %v284, %v285
        %287 = vrot.lane.b32.xlu0 %v286, 127
        %v288 = vpop.permute.xlu0 %287
        %v290 = vadd.f32 %v277, %v288
        %s291 = sld [smem:[#allocation3 + $0x9]]
        %v292 = vstv %s291
        %v293 = vmul.f32 %v292, %v187
        %v294 = vadd.f32 %v290, %v293
        %s295 = sld [smem:[#allocation3 + $0xa]]
        %v296 = vstv %s295
        %v297 = vmul.f32 %v296, %v199
        %v298 = vadd.f32 %v294, %v297
        %s299 = sld [smem:[#allocation3 + $0xb]]
        %v300 = vstv %s299
        %v301 = vmul.f32 %v300, %v187
        %303 = vrot.lane.b32.xlu0 %v301, 127
        %v304 = vpop.permute.xlu0 %303
        %v306 = vadd.f32 %v298, %v304
        %s307 = sld [smem:[#allocation3 + $0xc]]
        %v308 = vstv %s307
        %v309 = vmul.f32 %v308, %v210
        %v310 = vadd.f32 %v306, %v309
        %s311 = sld [smem:[#allocation3 + $0xd]]
        %v312 = vstv %s311
        %v313 = vmul.f32 %v312, %v218
        %v314 = vadd.f32 %v310, %v313
        %s315 = sld [smem:[#allocation3 + $0xe]]
        %v316 = vstv %s315
        %v317 = vmul.f32 %v316, %v210
        %319 = vrot.lane.b32.xlu0 %v317, 127
        %v320 = vpop.permute.xlu0 %319
        %v322 = vadd.f32 %v314, %v320
        %s323 = sld [smem:[#allocation3 + $0xf]]
        %v324 = vstv %s323
        %v325 = vmul.f32 %v324, %v187
        %v326 = vmul.f32 %v324, %v188
        %v329 = vrot.slane %v325, 1
        %v330 = vrot.slane %v326, 1
        %v331 = vsel %vm261, %v329, %v330
        %v333 = vadd.f32 %v322, %v331
        %s334 = sld [smem:[#allocation3 + $0x10]]
        %v335 = vstv %s334
        %v336 = vmul.f32 %v335, %v199
        %v337 = vmul.f32 %v335, %v200
        %v340 = vrot.slane %v336, 1
        %v341 = vrot.slane %v337, 1
        %v342 = vsel %vm261, %v340, %v341
        %v344 = vadd.f32 %v333, %v342
        %s345 = sld [smem:[#allocation3 + $0x11]]
        %v346 = vstv %s345
        %v347 = vmul.f32 %v346, %v187
        %v348 = vmul.f32 %v346, %v188
        %v351 = vrot.slane %v347, 1
        %v352 = vrot.slane %v348, 1
        %v353 = vsel %vm261, %v351, %v352
        %354 = vrot.lane.b32.xlu0 %v353, 127
        %v355 = vpop.permute.xlu0 %354
        %v357 = vadd.f32 %v344, %v355
        %s358 = sld [smem:[#allocation3 + $0x12]]
        %v359 = vstv %s358
        %v360 = vmul.f32 %v359, %v190
        %v361 = vadd.f32 %v357, %v360
        %s362 = sld [smem:[#allocation3 + $0x13]]
        %v363 = vstv %s362
        %v364 = vmul.f32 %v363, %v202
        %v365 = vadd.f32 %v361, %v364
        %s366 = sld [smem:[#allocation3 + $0x14]]
        %v367 = vstv %s366
        %v368 = vmul.f32 %v367, %v190
        %370 = vrot.lane.b32.xlu0 %v368, 127
        %v371 = vpop.permute.xlu0 %370
        %v373 = vadd.f32 %v365, %v371
        %s374 = sld [smem:[#allocation3 + $0x15]]
        %v375 = vstv %s374
        %v376 = vmul.f32 %v375, %v212
        %v377 = vadd.f32 %v373, %v376
        %s378 = sld [smem:[#allocation3 + $0x16]]
        %v379 = vstv %s378
        %v380 = vmul.f32 %v379, %v220
        %v381 = vadd.f32 %v377, %v380
        %s382 = sld [smem:[#allocation3 + $0x17]]
        %v383 = vstv %s382
        %v384 = vmul.f32 %v383, %v212
        %386 = vrot.lane.b32.xlu0 %v384, 127
        %v387 = vpop.permute.xlu0 %386
        %v389 = vadd.f32 %v381, %v387
        %s390 = sld [smem:[#allocation3 + $0x18]]
        %v391 = vstv %s390
        %v392 = vmul.f32 %v391, %v190
        %v393 = vmul.f32 %v391, %v191
        %v396 = vrot.slane %v392, 1
        %v397 = vrot.slane %v393, 1
        %v398 = vsel %vm261, %v396, %v397
        %v400 = vadd.f32 %v389, %v398
        %s401 = sld [smem:[#allocation3 + $0x19]]
        %v402 = vstv %s401
        %v403 = vmul.f32 %v402, %v202
        %v404 = vmul.f32 %v402, %v203
        %v407 = vrot.slane %v403, 1
        %v408 = vrot.slane %v404, 1
        %v409 = vsel %vm261, %v407, %v408
        %v411 = vadd.f32 %v400, %v409
        %s412 = sld [smem:[#allocation3 + $0x1a]]
        %v413 = vstv %s412
        %v414 = vmul.f32 %v413, %v190
        %v415 = vmul.f32 %v413, %v191
        %v418 = vrot.slane %v414, 1
        %v419 = vrot.slane %v415, 1
        %v420 = vsel %vm261, %v418, %v419
        %421 = vrot.lane.b32.xlu0 %v420, 127
        %v422 = vpop.permute.xlu0 %421
        %v424 = vadd.f32 %v411, %v422
        %s425 = sld [smem:[#allocation3 + $0x1b]]
        %v426 = vstv %s425
        %v427 = vmul.f32 %v426, %v193
        %v428 = vadd.f32 %v424, %v427
        %s429 = sld [smem:[#allocation3 + $0x1c]]
        %v430 = vstv %s429
        %v431 = vmul.f32 %v430, %v205
        %v432 = vadd.f32 %v428, %v431
        %s433 = sld [smem:[#allocation3 + $0x1d]]
        %v434 = vstv %s433
        %v435 = vmul.f32 %v434, %v193
        %437 = vrot.lane.b32.xlu0 %v435, 127
        %v438 = vpop.permute.xlu0 %437
        %v440 = vadd.f32 %v432, %v438
        %s441 = sld [smem:[#allocation3 + $0x1e]]
        %v442 = vstv %s441
        %v443 = vmul.f32 %v442, %v214
        %v444 = vadd.f32 %v440, %v443
        %s445 = sld [smem:[#allocation3 + $0x1f]]
        %v446 = vstv %s445
        %v447 = vmul.f32 %v446, %v222
        %v448 = vadd.f32 %v444, %v447
        %s449 = sld [smem:[#allocation3 + $0x20]]
        %v450 = vstv %s449
        %v451 = vmul.f32 %v450, %v214
        %453 = vrot.lane.b32.xlu0 %v451, 127
        %v454 = vpop.permute.xlu0 %453
        %v456 = vadd.f32 %v448, %v454
        %s457 = sld [smem:[#allocation3 + $0x21]]
        %v458 = vstv %s457
        %v459 = vmul.f32 %v458, %v193
        %v460 = vmul.f32 %v458, %v194
        %v463 = vrot.slane %v459, 1
        %v464 = vrot.slane %v460, 1
        %v465 = vsel %vm261, %v463, %v464
        %v467 = vadd.f32 %v456, %v465
        %s468 = sld [smem:[#allocation3 + $0x22]]
        %v469 = vstv %s468
        %v470 = vmul.f32 %v469, %v205
        %v471 = vmul.f32 %v469, %v206
        %v474 = vrot.slane %v470, 1
        %v475 = vrot.slane %v471, 1
        %v476 = vsel %vm261, %v474, %v475
        %v478 = vadd.f32 %v467, %v476
        %s479 = sld [smem:[#allocation3 + $0x23]]
        %v480 = vstv %s479
        %v481 = vmul.f32 %v480, %v193
        %v482 = vmul.f32 %v480, %v194
        %v485 = vrot.slane %v481, 1
        %v486 = vrot.slane %v482, 1
        %v487 = vsel %vm261, %v485, %v486
        %488 = vrot.lane.b32.xlu0 %v487, 127
        %v489 = vpop.permute.xlu0 %488
        %v491 = vadd.f32 %v478, %v489
        %s492 = sld [smem:[#allocation2]]
        %v493 = vstv %s492
        %v494 = vadd.f32 %v491, %v493
        %v495 = vmax.f32 %v494, 0.0
        %vm496 = vcmask 64512
        %497 = vst.msk [vmem:[%s183] sm:$0xff] %vm496, %v495
        %p498 = scmp.lt.s32.totalorder %s16, 1
        %s499 = scalar_select %p498, %s16, 1
        %s500 = smul.addr %s499, 8
        %s501 = scalar_lea.vmem %s3, %s500
        // Predicated region
        $region37: #{fpa_forward.11} parent=31 // pred_check
          %p502 = pneg %p102
        $region38: #{fpa_forward.11} parent=31 // pred_check_branch
          %504 = sbr.rel (%p502) target = $region40
        $region39: #{fpa_forward.11} parent=31 // pred_region
          _
        $region40: #{fpa_forward.11} parent=31 // pred_fallthru
          _
      $region32: #{fpa_forward.11} parent=5 // pred_fallthru
        _
      %p505 = scmp.le.s32.totalorder 2, %s11
      // Predicated region
      $region41: #{fpa_forward.11} parent=5 // pred_check
        %p506 = pneg %p505
      $region42: #{fpa_forward.11} parent=5 // pred_check_branch
        %508 = sbr.rel (%p506) target = $region44
      $region43: #{fpa_forward.11} parent=5 // pred_region
        %s509 = ssub.s32 %s11, 2
        // Predicated region
        $region45: #{fpa_forward.11} parent=43 // pred_check
          %p510 = pneg %p108
        $region46: #{fpa_forward.11} parent=43 // pred_check_branch
          %512 = sbr.rel (%p510) target = $region48
        $region47: #{fpa_forward.11} parent=43 // pred_region
          %p513 = scmp.lt.s32.totalorder %s17, 1
          %s514 = scalar_select %p513, %s17, 1
          %s515 = smul.addr %s514, 8
          %s516 = scalar_lea.vmem %s3, %s515
        $region48: #{fpa_forward.11} parent=43 // pred_fallthru
          _
      $region44: #{fpa_forward.11} parent=5 // pred_fallthru
        _
    $region6: #{fpa_forward.11} parent=1 // loop_footer
      %s15 = sadd.s32 1, %s11
    $region7: #{fpa_forward.11} parent=1 // loop_footer_branch
      %10 = sbr.rel target = $region3
    $region8: #{fpa_forward.11} parent=1 // loop_exit
      _
    %517 = vsyncpa [#allocation4], 1
    %s518 = scalar_lea.sflag [#allocation4], 1
    %519 = vsyncpa %s518, 1

// kernel: fpa_forward.13
$region0: #{fpa_forward.13}
  #allocation0 [shape = 'u32[]', space=smem, size = 0x4, offset = 0x4, fixed_abs, tag = 'smem constant byte address 0x4 - core index']
  #allocation1 [shape = 'u32[144,128]{1,0:T(1,128)}', space=vmem, size = 0x12000, scoped, tag = 'internal scratch']
  #allocation2 [shape = 'f32[1]{0:T(128)S(6)}', space=smem, size = 0x200, scoped, tag = 'scoped memory for fpa_forward.13']
  %s0 = inlined_call_operand.vmem [shape: f32[9], index: 0, kind: input, shape index: {}]
  %s1 = inlined_call_operand.<no memory space> [shape: f32[1], index: 1, kind: input, shape index: {}]
  %s2 = inlined_call_operand.vmem [shape: f32[2,4,3,3], index: 2, kind: input, shape index: {}]
  %s3 = inlined_call_operand.vmem [shape: f32[2,1,2,2], index: 3, kind: output, shape index: {}]
  %s4 = sld [smem:[#allocation0]]
  $region49: #{fpa_forward.13} parent=0
    _
  %s6 = ssub.s32 1, %s4
  %s7 = scalar_select 0, %s6, %s4
  %8 = sst [smem:[#allocation2]] %s1
  $region1: #{fpa_forward.13} parent=0
    #allocation3 [shape = 'u8[512]{0}', space=smem, size = 0x200, scoped, tag = 'input window, operand 0, single buffered']
    #allocation4 [shape = 's32[2]{0}', space=sflag, size = 0x8, scoped, tag = 'scoped memory for fpa_forward.13']
    %9 = vsyncpa [#allocation4], 0
    loop: start=0, step=1, limit=4
    $region2: #{fpa_forward.13} parent=1 // loop_pre_header
      _
    $region3: #{fpa_forward.13} parent=1 // loop_header
      %s11 = sphi 0, %s15
      %p12 = scmp.ge.s32.totalorder %s11, 4
      %s19 = sphi 0, %s19
      %s21 = sphi 0, %s19
      %s22 = sphi 0, %s21
      %s36 = sphi 0, %s22
      %s40 = sphi 0, %s40
      %s42 = sphi 0, %s40
      %s43 = sphi 0, %s42
      %s57 = sphi 0, %s43
      %s63 = sphi 0, %s65
      %s66 = sphi 0, %s63
      %s67 = sphi 0, %s66
      %s83 = sphi 0, %s67
      %s89 = sphi 0, %s91
      %s92 = sphi 0, %s89
      %s93 = sphi 0, %s92
      %s109 = sphi 0, %s93
    $region4: #{fpa_forward.13} parent=1 // loop_header_branch
      %14 = sbr.rel (%p12) target = $region8
    $region5: #{fpa_forward.13} parent=1 // loop_body
      %s16 = ssub.s32 %s11, 1
      %s17 = ssub.s32 %s11, 2
      %s18 = sadd.s32 %s11, 1
      %s20 = sadd.s32 %s19, 1
      %p23 = scmp.eq.s32.totalorder %s11, 1
      %p24 = scmp.ne.s32.totalorder %s19, %s21
      %p25 = scmp.eq.s32.totalorder %s11, 0
      %p26 = por %p24, %p25
      %p27 = scmp.ne.s32.totalorder %s19, %s21
      %p28 = scmp.eq.s32.totalorder %s16, 1
      %p29 = por %p27, %p28
      %p30 = scmp.ne.s32.totalorder %s21, %s22
      %p31 = scmp.eq.s32.totalorder %s16, 0
      %p32 = por %p30, %p31
      %p33 = scmp.ne.s32.totalorder %s21, %s22
      %p34 = scmp.eq.s32.totalorder %s17, 1
      %p35 = por %p33, %p34
      %p37 = scmp.ne.s32.totalorder %s22, %s36
      %p38 = scmp.eq.s32.totalorder %s17, 0
      %p39 = por %p37, %p38
      %s41 = sadd.s32 %s40, 1
      %p44 = scmp.eq.s32.totalorder %s11, 1
      %p45 = scmp.ne.s32.totalorder %s40, %s42
      %p46 = scmp.eq.s32.totalorder %s11, 0
      %p47 = por %p45, %p46
      %p48 = scmp.ne.s32.totalorder %s40, %s42
      %p49 = scmp.eq.s32.totalorder %s16, 1
      %p50 = por %p48, %p49
      %p51 = scmp.ne.s32.totalorder %s42, %s43
      %p52 = scmp.eq.s32.totalorder %s16, 0
      %p53 = por %p51, %p52
      %p54 = scmp.ne.s32.totalorder %s42, %s43
      %p55 = scmp.eq.s32.totalorder %s17, 1
      %p56 = por %p54, %p55
      %p58 = scmp.ne.s32.totalorder %s43, %s57
      %p59 = scmp.eq.s32.totalorder %s17, 0
      %p60 = por %p58, %p59
      %s61 = ssub.s32 %s11, %s18
      %p62 = scmp.eq.s32.totalorder %s61, 0
      %s64 = sadd.s32 %s63, 1
      %s65 = scalar_select %p62, %s63, %s64
      %p68 = pneg %p62
      %p69 = scmp.eq.s32.totalorder %s11, 1
      %p70 = por %p68, %p69
      %p71 = scmp.ne.s32.totalorder %s63, %s66
      %p72 = scmp.eq.s32.totalorder %s11, 0
      %p73 = por %p71, %p72
      %p74 = scmp.ne.s32.totalorder %s63, %s66
      %p75 = scmp.eq.s32.totalorder %s16, 1
      %p76 = por %p74, %p75
      %p77 = scmp.ne.s32.totalorder %s66, %s67
      %p78 = scmp.eq.s32.totalorder %s16, 0
      %p79 = por %p77, %p78
      %p80 = scmp.ne.s32.totalorder %s66, %s67
      %p81 = scmp.eq.s32.totalorder %s17, 1
      %p82 = por %p80, %p81
      %p84 = scmp.ne.s32.totalorder %s67, %s83
      %p85 = scmp.eq.s32.totalorder %s17, 0
      %p86 = por %p84, %p85
      %s87 = ssub.s32 %s11, %s18
      %p88 = scmp.eq.s32.totalorder %s87, 0
      %s90 = sadd.s32 %s89, 1
      %s91 = scalar_select %p88, %s89, %s90
      %p94 = pneg %p88
      %p95 = scmp.eq.s32.totalorder %s11, 1
      %p96 = por %p94, %p95
      %p97 = scmp.ne.s32.totalorder %s89, %s92
      %p98 = scmp.eq.s32.totalorder %s11, 0
      %p99 = por %p97, %p98
      %p100 = scmp.ne.s32.totalorder %s89, %s92
      %p101 = scmp.eq.s32.totalorder %s16, 1
      %p102 = por %p100, %p101
      %p103 = scmp.ne.s32.totalorder %s92, %s93
      %p104 = scmp.eq.s32.totalorder %s16, 0
      %p105 = por %p103, %p104
      %p106 = scmp.ne.s32.totalorder %s92, %s93
      %p107 = scmp.eq.s32.totalorder %s17, 1
      %p108 = por %p106, %p107
      %p110 = scmp.ne.s32.totalorder %s93, %s109
      %p111 = scmp.eq.s32.totalorder %s17, 0
      %p112 = por %p110, %p111
      %p113 = scmp.le.s32.totalorder 1, %s11
      %p114 = scmp.lt.s32.totalorder %s11, 3
      %p115 = pnand %p113, %p114
      %p116 = pneg %p115
      // Predicated region
      $region9: #{fpa_forward.13} parent=5 // pred_check
        _
      $region10: #{fpa_forward.13} parent=5 // pred_check_branch
        %118 = sbr.rel (%p115) target = $region12
      $region11: #{fpa_forward.13} parent=5 // pred_region
        %s119 = ssub.s32 %s11, 1
        // Predicated region
        $region13: #{fpa_forward.13} parent=11 // pred_check
          %p120 = pneg %p32
        $region14: #{fpa_forward.13} parent=11 // pred_check_branch
          %122 = sbr.rel (%p120) target = $region16
        $region15: #{fpa_forward.13} parent=11 // pred_region
          %s124 = ssub.s32 16, 16
          %125 = vsyncadd [#allocation4], %s124
          %s127 = sshll.u32 %s0, 4
          %s128 = int_to_ptr.vmem [resolvable:$true] %s127
          %130 = dma.vmem_to_smem %s128, 16, [#allocation3], [#allocation4]
        $region16: #{fpa_forward.13} parent=11 // pred_fallthru
          _
        // Predicated region
        $region17: #{fpa_forward.13} parent=11 // pred_check
          %p131 = pneg %p53
        $region18: #{fpa_forward.13} parent=11 // pred_check_branch
          %133 = sbr.rel (%p131) target = $region20
        $region19: #{fpa_forward.13} parent=11 // pred_region
          _
        $region20: #{fpa_forward.13} parent=11 // pred_fallthru
          _
      $region12: #{fpa_forward.13} parent=5 // pred_fallthru
        _
      %p134 = scmp.lt.s32.totalorder %s11, 2
      // Predicated region
      $region21: #{fpa_forward.13} parent=5 // pred_check
        %p135 = pneg %p134
      $region22: #{fpa_forward.13} parent=5 // pred_check_branch
        %137 = sbr.rel (%p135) target = $region24
      $region23: #{fpa_forward.13} parent=5 // pred_region
        // Predicated region
        $region25: #{fpa_forward.13} parent=23 // pred_check
          %p138 = pneg %p73
        $region26: #{fpa_forward.13} parent=23 // pred_check_branch
          %140 = sbr.rel (%p138) target = $region28
        $region27: #{fpa_forward.13} parent=23 // pred_region
          %p141 = scmp.lt.s32.totalorder %s11, 1
          %s142 = scalar_select %p141, %s11, 1
          %s143 = smul.addr %s142, 4
          %s144 = smul.addr %s143, 4
          %s145 = scalar_lea.vmem %s2, %s144
        $region28: #{fpa_forward.13} parent=23 // pred_fallthru
          _
      $region24: #{fpa_forward.13} parent=5 // pred_fallthru
        _
      %p146 = scmp.le.s32.totalorder 1, %s11
      %p147 = scmp.lt.s32.totalorder %s11, 3
      %p148 = pnand %p146, %p147
      %p149 = pneg %p148
      // Predicated region
      $region29: #{fpa_forward.13} parent=5 // pred_check
        _
      $region30: #{fpa_forward.13} parent=5 // pred_check_branch
        %151 = sbr.rel (%p148) target = $region32
      $region31: #{fpa_forward.13} parent=5 // pred_region
        %s152 = ssub.s32 %s11, 1
        // Predicated region
        $region33: #{fpa_forward.13} parent=31 // pred_check
          %p153 = pneg %p32
        $region34: #{fpa_forward.13} parent=31 // pred_check_branch
          %155 = sbr.rel (%p153) target = $region36
        $region35: #{fpa_forward.13} parent=31 // pred_region
          %156 = dma.done [#allocation4], 16
        $region36: #{fpa_forward.13} parent=31 // pred_fallthru
          _
        %157 = sfence
        %p158 = pneg %p32
        %p159 = pneg %p29
        %p160 = pneg %p53
        %p161 = pneg %p50
        %p162 = scmp.lt.s32.totalorder %s16, 1
        %s163 = scalar_select %p162, %s16, 1
        %s164 = smul.addr %s163, 4
        %s165 = smul.addr %s164, 4
        %s166 = scalar_lea.vmem %s2, %s165
        %p167 = pneg %p79
        %p168 = pneg %p76
        %p169 = pneg %p105
        %p170 = pneg %p102
        %p171 = scmp.lt.s32.totalorder %s16, 1
        %s172 = scalar_select %p171, %s16, 1
        %s173 = smul.addr %s172, 2
        %s174 = scalar_lea.vmem %s3, %s173
        %p175 = scmp.lt.s32.totalorder %s16, 1
        %s176 = scalar_select %p175, %s16, 1
        %s177 = smul.addr %s176, 4
        %s178 = smul.addr %s177, 4
        %s179 = scalar_lea.vmem %s2, %s178
        %p180 = scmp.lt.s32.totalorder %s16, 1
        %s181 = scalar_select %p180, %s16, 1
        %s182 = smul.addr %s181, 2
        %s183 = scalar_lea.vmem %s3, %s182
        %v184 = vld [vmem:[%s179] sm:$0x7]
        %s185 = scalar_lea.vmem %s179, 4
        %v186 = vld [vmem:[%s185] sm:$0x7]
        %s187 = scalar_lea.vmem %s179, 8
        %v188 = vld [vmem:[%s187] sm:$0x7]
        %s189 = scalar_lea.vmem %s179, 12
        %v190 = vld [vmem:[%s189] sm:$0x7]
        %s191 = sld [smem:[#allocation3]]
        %v192 = vstv %s191
        %v193 = vmul.f32 %v192, %v184
        %v194 = vadd.f32 %v193, 0.0
        %s195 = sld [smem:[#allocation3 + $0x1]]
        %v196 = vstv %s195
        %v197 = vmul.f32 %v196, %v186
        %v198 = vadd.f32 %v194, %v197
        %s199 = sld [smem:[#allocation3 + $0x2]]
        %v200 = vstv %s199
        %v201 = vmul.f32 %v200, %v184
        %203 = vrot.lane.b32.xlu0 %v201, 127
        %v204 = vpop.permute.xlu0 %203
        %v206 = vadd.f32 %v198, %v204
        %s207 = sld [smem:[#allocation3 + $0x3]]
        %v208 = vstv %s207
        %v209 = vmul.f32 %v208, %v188
        %v210 = vadd.f32 %v206, %v209
        %s211 = sld [smem:[#allocation3 + $0x4]]
        %v212 = vstv %s211
        %v213 = vmul.f32 %v212, %v190
        %v214 = vadd.f32 %v210, %v213
        %s215 = sld [smem:[#allocation3 + $0x5]]
        %v216 = vstv %s215
        %v217 = vmul.f32 %v216, %v188
        %219 = vrot.lane.b32.xlu0 %v217, 127
        %v220 = vpop.permute.xlu0 %219
        %v222 = vadd.f32 %v214, %v220
        %s223 = sld [smem:[#allocation3 + $0x6]]
        %v224 = vstv %s223
        %v225 = vmul.f32 %v224, %v184
        %v227 = vrot.slane %v225, 1
        %v229 = vadd.f32 %v222, %v227
        %s230 = sld [smem:[#allocation3 + $0x7]]
        %v231 = vstv %s230
        %v232 = vmul.f32 %v231, %v186
        %v234 = vrot.slane %v232, 1
        %v236 = vadd.f32 %v229, %v234
        %s237 = sld [smem:[#allocation3 + $0x8]]
        %v238 = vstv %s237
        %v239 = vmul.f32 %v238, %v184
        %v241 = vrot.slane %v239, 1
        %242 = vrot.lane.b32.xlu0 %v241, 127
        %v243 = vpop.permute.xlu0 %242
        %v245 = vadd.f32 %v236, %v243
        %s246 = sld [smem:[#allocation2]]
        %v247 = vstv %s246
        %v248 = vadd.f32 %v245, %v247
        %v249 = vmax.f32 %v248, 0.0
        %vm250 = vcmask 9216
        %251 = vst.msk [vmem:[%s183] sm:$0x3] %vm250, %v249
        %p252 = scmp.lt.s32.totalorder %s16, 1
        %s253 = scalar_select %p252, %s16, 1
        %s254 = smul.addr %s253, 2
        %s255 = scalar_lea.vmem %s3, %s254
        // Predicated region
        $region37: #{fpa_forward.13} parent=31 // pred_check
          %p256 = pneg %p102
        $region38: #{fpa_forward.13} parent=31 // pred_check_branch
          %258 = sbr.rel (%p256) target = $region40
        $region39: #{fpa_forward.13} parent=31 // pred_region
          _
        $region40: #{fpa_forward.13} parent=31 // pred_fallthru
          _
      $region32: #{fpa_forward.13} parent=5 // pred_fallthru
        _
      %p259 = scmp.le.s32.totalorder 2, %s11
      // Predicated region
      $region41: #{fpa_forward.13} parent=5 // pred_check
        %p260 = pneg %p259
      $region42: #{fpa_forward.13} parent=5 // pred_check_branch
        %262 = sbr.rel (%p260) target = $region44
      $region43: #{fpa_forward.13} parent=5 // pred_region
        %s263 = ssub.s32 %s11, 2
        // Predicated region
        $region45: #{fpa_forward.13} parent=43 // pred_check
          %p264 = pneg %p108
        $region46: #{fpa_forward.13} parent=43 // pred_check_branch
          %266 = sbr.rel (%p264) target = $region48
        $region47: #{fpa_forward.13} parent=43 // pred_region
          %p267 = scmp.lt.s32.totalorder %s17, 1
          %s268 = scalar_select %p267, %s17, 1
          %s269 = smul.addr %s268, 2
          %s270 = scalar_lea.vmem %s3, %s269
        $region48: #{fpa_forward.13} parent=43 // pred_fallthru
          _
      $region44: #{fpa_forward.13} parent=5 // pred_fallthru
        _
    $region6: #{fpa_forward.13} parent=1 // loop_footer
      %s15 = sadd.s32 1, %s11
    $region7: #{fpa_forward.13} parent=1 // loop_footer_branch
      %10 = sbr.rel target = $region3
    $region8: #{fpa_forward.13} parent=1 // loop_exit
      _
    %271 = vsyncpa [#allocation4], 1
    %s272 = scalar_lea.sflag [#allocation4], 1
    %273 = vsyncpa %s272, 1

// kernel: fpa_forward.16
$region0: #{fpa_forward.16}
  #allocation0 [shape = 'u32[]', space=smem, size = 0x4, offset = 0x4, fixed_abs, tag = 'smem constant byte address 0x4 - core index']
  #allocation1 [shape = 'u32[144,128]{1,0:T(1,128)}', space=vmem, size = 0x12000, scoped, tag = 'internal scratch']
  #allocation2 [shape = 'f32[1]{0:T(128)S(6)}', space=smem, size = 0x200, scoped, tag = 'scoped memory for fpa_forward.16']
  %s0 = inlined_call_operand.vmem [shape: f32[18], index: 0, kind: input, shape index: {}]
  %s1 = inlined_call_operand.<no memory space> [shape: f32[1], index: 1, kind: input, shape index: {}]
  %s2 = inlined_call_operand.vmem [shape: f32[2,1,4,4], index: 2, kind: input, shape index: {}]
  %s3 = inlined_call_operand.vmem [shape: f32[2,2,2], index: 3, kind: output, shape index: {}]
  %s4 = sld [smem:[#allocation0]]
  $region49: #{fpa_forward.16} parent=0
    _
  %s6 = ssub.s32 1, %s4
  %s7 = scalar_select 0, %s6, %s4
  %8 = sst [smem:[#allocation2]] %s1
  $region1: #{fpa_forward.16} parent=0
    #allocation3 [shape = 'u8[512]{0}', space=smem, size = 0x200, scoped, tag = 'input window, operand 0, single buffered']
    #allocation4 [shape = 's32[2]{0}', space=sflag, size = 0x8, scoped, tag = 'scoped memory for fpa_forward.16']
    %9 = vsyncpa [#allocation4], 0
    loop: start=0, step=1, limit=4
    $region2: #{fpa_forward.16} parent=1 // loop_pre_header
      _
    $region3: #{fpa_forward.16} parent=1 // loop_header
      %s11 = sphi 0, %s15
      %p12 = scmp.ge.s32.totalorder %s11, 4
      %s19 = sphi 0, %s19
      %s21 = sphi 0, %s19
      %s22 = sphi 0, %s21
      %s36 = sphi 0, %s22
      %s40 = sphi 0, %s40
      %s42 = sphi 0, %s40
      %s43 = sphi 0, %s42
      %s57 = sphi 0, %s43
      %s63 = sphi 0, %s65
      %s66 = sphi 0, %s63
      %s67 = sphi 0, %s66
      %s83 = sphi 0, %s67
      %s89 = sphi 0, %s91
      %s92 = sphi 0, %s89
      %s93 = sphi 0, %s92
      %s109 = sphi 0, %s93
    $region4: #{fpa_forward.16} parent=1 // loop_header_branch
      %14 = sbr.rel (%p12) target = $region8
    $region5: #{fpa_forward.16} parent=1 // loop_body
      %s16 = ssub.s32 %s11, 1
      %s17 = ssub.s32 %s11, 2
      %s18 = sadd.s32 %s11, 1
      %s20 = sadd.s32 %s19, 1
      %p23 = scmp.eq.s32.totalorder %s11, 1
      %p24 = scmp.ne.s32.totalorder %s19, %s21
      %p25 = scmp.eq.s32.totalorder %s11, 0
      %p26 = por %p24, %p25
      %p27 = scmp.ne.s32.totalorder %s19, %s21
      %p28 = scmp.eq.s32.totalorder %s16, 1
      %p29 = por %p27, %p28
      %p30 = scmp.ne.s32.totalorder %s21, %s22
      %p31 = scmp.eq.s32.totalorder %s16, 0
      %p32 = por %p30, %p31
      %p33 = scmp.ne.s32.totalorder %s21, %s22
      %p34 = scmp.eq.s32.totalorder %s17, 1
      %p35 = por %p33, %p34
      %p37 = scmp.ne.s32.totalorder %s22, %s36
      %p38 = scmp.eq.s32.totalorder %s17, 0
      %p39 = por %p37, %p38
      %s41 = sadd.s32 %s40, 1
      %p44 = scmp.eq.s32.totalorder %s11, 1
      %p45 = scmp.ne.s32.totalorder %s40, %s42
      %p46 = scmp.eq.s32.totalorder %s11, 0
      %p47 = por %p45, %p46
      %p48 = scmp.ne.s32.totalorder %s40, %s42
      %p49 = scmp.eq.s32.totalorder %s16, 1
      %p50 = por %p48, %p49
      %p51 = scmp.ne.s32.totalorder %s42, %s43
      %p52 = scmp.eq.s32.totalorder %s16, 0
      %p53 = por %p51, %p52
      %p54 = scmp.ne.s32.totalorder %s42, %s43
      %p55 = scmp.eq.s32.totalorder %s17, 1
      %p56 = por %p54, %p55
      %p58 = scmp.ne.s32.totalorder %s43, %s57
      %p59 = scmp.eq.s32.totalorder %s17, 0
      %p60 = por %p58, %p59
      %s61 = ssub.s32 %s11, %s18
      %p62 = scmp.eq.s32.totalorder %s61, 0
      %s64 = sadd.s32 %s63, 1
      %s65 = scalar_select %p62, %s63, %s64
      %p68 = pneg %p62
      %p69 = scmp.eq.s32.totalorder %s11, 1
      %p70 = por %p68, %p69
      %p71 = scmp.ne.s32.totalorder %s63, %s66
      %p72 = scmp.eq.s32.totalorder %s11, 0
      %p73 = por %p71, %p72
      %p74 = scmp.ne.s32.totalorder %s63, %s66
      %p75 = scmp.eq.s32.totalorder %s16, 1
      %p76 = por %p74, %p75
      %p77 = scmp.ne.s32.totalorder %s66, %s67
      %p78 = scmp.eq.s32.totalorder %s16, 0
      %p79 = por %p77, %p78
      %p80 = scmp.ne.s32.totalorder %s66, %s67
      %p81 = scmp.eq.s32.totalorder %s17, 1
      %p82 = por %p80, %p81
      %p84 = scmp.ne.s32.totalorder %s67, %s83
      %p85 = scmp.eq.s32.totalorder %s17, 0
      %p86 = por %p84, %p85
      %s87 = ssub.s32 %s11, %s18
      %p88 = scmp.eq.s32.totalorder %s87, 0
      %s90 = sadd.s32 %s89, 1
      %s91 = scalar_select %p88, %s89, %s90
      %p94 = pneg %p88
      %p95 = scmp.eq.s32.totalorder %s11, 1
      %p96 = por %p94, %p95
      %p97 = scmp.ne.s32.totalorder %s89, %s92
      %p98 = scmp.eq.s32.totalorder %s11, 0
      %p99 = por %p97, %p98
      %p100 = scmp.ne.s32.totalorder %s89, %s92
      %p101 = scmp.eq.s32.totalorder %s16, 1
      %p102 = por %p100, %p101
      %p103 = scmp.ne.s32.totalorder %s92, %s93
      %p104 = scmp.eq.s32.totalorder %s16, 0
      %p105 = por %p103, %p104
      %p106 = scmp.ne.s32.totalorder %s92, %s93
      %p107 = scmp.eq.s32.totalorder %s17, 1
      %p108 = por %p106, %p107
      %p110 = scmp.ne.s32.totalorder %s93, %s109
      %p111 = scmp.eq.s32.totalorder %s17, 0
      %p112 = por %p110, %p111
      %p113 = scmp.le.s32.totalorder 1, %s11
      %p114 = scmp.lt.s32.totalorder %s11, 3
      %p115 = pnand %p113, %p114
      %p116 = pneg %p115
      // Predicated region
      $region9: #{fpa_forward.16} parent=5 // pred_check
        _
      $region10: #{fpa_forward.16} parent=5 // pred_check_branch
        %118 = sbr.rel (%p115) target = $region12
      $region11: #{fpa_forward.16} parent=5 // pred_region
        %s119 = ssub.s32 %s11, 1
        // Predicated region
        $region13: #{fpa_forward.16} parent=11 // pred_check
          %p120 = pneg %p32
        $region14: #{fpa_forward.16} parent=11 // pred_check_branch
          %122 = sbr.rel (%p120) target = $region16
        $region15: #{fpa_forward.16} parent=11 // pred_region
          %s124 = ssub.s32 16, 16
          %125 = vsyncadd [#allocation4], %s124
          %s127 = sshll.u32 %s0, 4
          %s128 = int_to_ptr.vmem [resolvable:$true] %s127
          %130 = dma.vmem_to_smem %s128, 16, [#allocation3], [#allocation4]
        $region16: #{fpa_forward.16} parent=11 // pred_fallthru
          _
        // Predicated region
        $region17: #{fpa_forward.16} parent=11 // pred_check
          %p131 = pneg %p53
        $region18: #{fpa_forward.16} parent=11 // pred_check_branch
          %133 = sbr.rel (%p131) target = $region20
        $region19: #{fpa_forward.16} parent=11 // pred_region
          _
        $region20: #{fpa_forward.16} parent=11 // pred_fallthru
          _
      $region12: #{fpa_forward.16} parent=5 // pred_fallthru
        _
      %p134 = scmp.lt.s32.totalorder %s11, 2
      // Predicated region
      $region21: #{fpa_forward.16} parent=5 // pred_check
        %p135 = pneg %p134
      $region22: #{fpa_forward.16} parent=5 // pred_check_branch
        %137 = sbr.rel (%p135) target = $region24
      $region23: #{fpa_forward.16} parent=5 // pred_region
        // Predicated region
        $region25: #{fpa_forward.16} parent=23 // pred_check
          %p138 = pneg %p73
        $region26: #{fpa_forward.16} parent=23 // pred_check_branch
          %140 = sbr.rel (%p138) target = $region28
        $region27: #{fpa_forward.16} parent=23 // pred_region
          %p141 = scmp.lt.s32.totalorder %s11, 1
          %s142 = scalar_select %p141, %s11, 1
          %s143 = smul.addr %s142, 4
          %s144 = scalar_lea.vmem %s2, %s143
        $region28: #{fpa_forward.16} parent=23 // pred_fallthru
          _
      $region24: #{fpa_forward.16} parent=5 // pred_fallthru
        _
      %p145 = scmp.le.s32.totalorder 1, %s11
      %p146 = scmp.lt.s32.totalorder %s11, 3
      %p147 = pnand %p145, %p146
      %p148 = pneg %p147
      // Predicated region
      $region29: #{fpa_forward.16} parent=5 // pred_check
        _
      $region30: #{fpa_forward.16} parent=5 // pred_check_branch
        %150 = sbr.rel (%p147) target = $region32
      $region31: #{fpa_forward.16} parent=5 // pred_region
        %s151 = ssub.s32 %s11, 1
        // Predicated region
        $region33: #{fpa_forward.16} parent=31 // pred_check
          %p152 = pneg %p32
        $region34: #{fpa_forward.16} parent=31 // pred_check_branch
          %154 = sbr.rel (%p152) target = $region36
        $region35: #{fpa_forward.16} parent=31 // pred_region
          %155 = dma.done [#allocation4], 16
        $region36: #{fpa_forward.16} parent=31 // pred_fallthru
          _
        %156 = sfence
        %p157 = pneg %p32
        %p158 = pneg %p29
        %p159 = pneg %p53
        %p160 = pneg %p50
        %p161 = scmp.lt.s32.totalorder %s16, 1
        %s162 = scalar_select %p161, %s16, 1
        %s163 = smul.addr %s162, 4
        %s164 = scalar_lea.vmem %s2, %s163
        %p165 = pneg %p79
        %p166 = pneg %p76
        %p167 = pneg %p105
        %p168 = pneg %p102
        %p169 = scmp.lt.s32.totalorder %s16, 1
        %s170 = scalar_select %p169, %s16, 1
        %s171 = smul.addr %s170, 2
        %s172 = scalar_lea.vmem %s3, %s171
        %p173 = scmp.lt.s32.totalorder %s16, 1
        %s174 = scalar_select %p173, %s16, 1
        %s175 = smul.addr %s174, 4
        %s176 = scalar_lea.vmem %s2, %s175
        %p177 = scmp.lt.s32.totalorder %s16, 1
        %s178 = scalar_select %p177, %s16, 1
        %s179 = smul.addr %s178, 2
        %s180 = scalar_lea.vmem %s3, %s179
        %v181 = vld [vmem:[%s176] sm:$0xf]
        %v182 = vadd.f32 %v181, 0.0
        %s183 = sld [smem:[#allocation3]]
        %v184 = vstv %s183
        %v185 = vmul.f32 %v184, %v181
        %v186 = vadd.f32 %v185, 0.0
        %s187 = sld [smem:[#allocation3 + $0x9]]
        %v188 = vstv %s187
        %v189 = vmul.f32 %v188, %v182
        %v190 = vadd.f32 %v186, %v189
        %s191 = sld [smem:[#allocation3 + $0x1]]
        %v192 = vstv %s191
        %v193 = vmul.f32 %v192, %v181
        %195 = vrot.lane.b32.xlu0 %v193, 127
        %v196 = vpop.permute.xlu0 %195
        %v198 = vadd.f32 %v190, %v196
        %s199 = sld [smem:[#allocation3 + $0xa]]
        %v200 = vstv %s199
        %v201 = vmul.f32 %v200, %v182
        %203 = vrot.lane.b32.xlu0 %v201, 127
        %v204 = vpop.permute.xlu0 %203
        %v206 = vadd.f32 %v198, %v204
        %s207 = sld [smem:[#allocation3 + $0x2]]
        %v208 = vstv %s207
        %v209 = vmul.f32 %v208, %v181
        %211 = vrot.lane.b32.xlu0 %v209, 126
        %v212 = vpop.permute.xlu0 %211
        %v214 = vadd.f32 %v206, %v212
        %s215 = sld [smem:[#allocation3 + $0xb]]
        %v216 = vstv %s215
        %v217 = vmul.f32 %v216, %v182
        %219 = vrot.lane.b32.xlu0 %v217, 126
        %v220 = vpop.permute.xlu0 %219
        %v222 = vadd.f32 %v214, %v220
        %s223 = sld [smem:[#allocation3 + $0x3]]
        %v224 = vstv %s223
        %v225 = vmul.f32 %v224, %v181
        %v227 = vrot.slane %v225, 1
        %v229 = vadd.f32 %v222, %v227
        %s230 = sld [smem:[#allocation3 + $0xc]]
        %v231 = vstv %s230
        %v232 = vmul.f32 %v231, %v182
        %v234 = vrot.slane %v232, 1
        %v236 = vadd.f32 %v229, %v234
        %s237 = sld [smem:[#allocation3 + $0x4]]
        %v238 = vstv %s237
        %v239 = vmul.f32 %v238, %v181
        %v241 = vrot.slane %v239, 1
        %242 = vrot.lane.b32.xlu0 %v241, 127
        %v243 = vpop.permute.xlu0 %242
        %v245 = vadd.f32 %v236, %v243
        %s246 = sld [smem:[#allocation3 + $0xd]]
        %v247 = vstv %s246
        %v248 = vmul.f32 %v247, %v182
        %v250 = vrot.slane %v248, 1
        %251 = vrot.lane.b32.xlu0 %v250, 127
        %v252 = vpop.permute.xlu0 %251
        %v254 = vadd.f32 %v245, %v252
        %s255 = sld [smem:[#allocation3 + $0x5]]
        %v256 = vstv %s255
        %v257 = vmul.f32 %v256, %v181
        %v259 = vrot.slane %v257, 1
        %260 = vrot.lane.b32.xlu0 %v259, 126
        %v261 = vpop.permute.xlu0 %260
        %v263 = vadd.f32 %v254, %v261
        %s264 = sld [smem:[#allocation3 + $0xe]]
        %v265 = vstv %s264
        %v266 = vmul.f32 %v265, %v182
        %v268 = vrot.slane %v266, 1
        %269 = vrot.lane.b32.xlu0 %v268, 126
        %v270 = vpop.permute.xlu0 %269
        %v272 = vadd.f32 %v263, %v270
        %s273 = sld [smem:[#allocation3 + $0x6]]
        %v274 = vstv %s273
        %v275 = vmul.f32 %v274, %v181
        %v277 = vrot.slane %v275, 2
        %v279 = vadd.f32 %v272, %v277
        %s280 = sld [smem:[#allocation3 + $0xf]]
        %v281 = vstv %s280
        %v282 = vmul.f32 %v281, %v182
        %v284 = vrot.slane %v282, 2
        %v286 = vadd.f32 %v279, %v284
        %s287 = sld [smem:[#allocation3 + $0x7]]
        %v288 = vstv %s287
        %v289 = vmul.f32 %v288, %v181
        %v291 = vrot.slane %v289, 2
        %292 = vrot.lane.b32.xlu0 %v291, 127
        %v293 = vpop.permute.xlu0 %292
        %v295 = vadd.f32 %v286, %v293
        %s296 = sld [smem:[#allocation3 + $0x10]]
        %v297 = vstv %s296
        %v298 = vmul.f32 %v297, %v182
        %v300 = vrot.slane %v298, 2
        %301 = vrot.lane.b32.xlu0 %v300, 127
        %v302 = vpop.permute.xlu0 %301
        %v304 = vadd.f32 %v295, %v302
        %s305 = sld [smem:[#allocation3 + $0x8]]
        %v306 = vstv %s305
        %v307 = vmul.f32 %v306, %v181
        %v309 = vrot.slane %v307, 2
        %310 = vrot.lane.b32.xlu0 %v309, 126
        %v311 = vpop.permute.xlu0 %310
        %v313 = vadd.f32 %v304, %v311
        %s314 = sld [smem:[#allocation3 + $0x11]]
        %v315 = vstv %s314
        %v316 = vmul.f32 %v315, %v182
        %v318 = vrot.slane %v316, 2
        %319 = vrot.lane.b32.xlu0 %v318, 126
        %v320 = vpop.permute.xlu0 %319
        %v322 = vadd.f32 %v313, %v320
        %s323 = sld [smem:[#allocation2]]
        %v324 = vstv %s323
        %v325 = vadd.f32 %v322, %v324
        %vm326 = vcmask 9216
        %327 = vst.msk [vmem:[%s180] sm:$0x3] %vm326, %v325
        %p328 = scmp.lt.s32.totalorder %s16, 1
        %s329 = scalar_select %p328, %s16, 1
        %s330 = smul.addr %s329, 2
        %s331 = scalar_lea.vmem %s3, %s330
        // Predicated region
        $region37: #{fpa_forward.16} parent=31 // pred_check
          %p332 = pneg %p102
        $region38: #{fpa_forward.16} parent=31 // pred_check_branch
          %334 = sbr.rel (%p332) target = $region40
        $region39: #{fpa_forward.16} parent=31 // pred_region
          _
        $region40: #{fpa_forward.16} parent=31 // pred_fallthru
          _
      $region32: #{fpa_forward.16} parent=5 // pred_fallthru
        _
      %p335 = scmp.le.s32.totalorder 2, %s11
      // Predicated region
      $region41: #{fpa_forward.16} parent=5 // pred_check
        %p336 = pneg %p335
      $region42: #{fpa_forward.16} parent=5 // pred_check_branch
        %338 = sbr.rel (%p336) target = $region44
      $region43: #{fpa_forward.16} parent=5 // pred_region
        %s339 = ssub.s32 %s11, 2
        // Predicated region
        $region45: #{fpa_forward.16} parent=43 // pred_check
          %p340 = pneg %p108
        $region46: #{fpa_forward.16} parent=43 // pred_check_branch
          %342 = sbr.rel (%p340) target = $region48
        $region47: #{fpa_forward.16} parent=43 // pred_region
          %p343 = scmp.lt.s32.totalorder %s17, 1
          %s344 = scalar_select %p343, %s17, 1
          %s345 = smul.addr %s344, 2
          %s346 = scalar_lea.vmem %s3, %s345
        $region48: #{fpa_forward.16} parent=43 // pred_fallthru
          _
      $region44: #{fpa_forward.16} parent=5 // pred_fallthru
        _
    $region6: #{fpa_forward.16} parent=1 // loop_footer
      %s15 = sadd.s32 1, %s11
    $region7: #{fpa_forward.16} parent=1 // loop_footer_branch
      %10 = sbr.rel target = $region3
    $region8: #{fpa_forward.16} parent=1 // loop_exit
      _
    %347 = vsyncpa [#allocation4], 1
    %s348 = scalar_lea.sflag [#allocation4], 1
    %349 = vsyncpa %s348, 1

// kernel: fpa_forward.14
$region0: #{fpa_forward.14}
  #allocation0 [shape = 'u32[]', space=smem, size = 0x4, offset = 0x4, fixed_abs, tag = 'smem constant byte address 0x4 - core index']
  #allocation1 [shape = 'u32[144,128]{1,0:T(1,128)}', space=vmem, size = 0x12000, scoped, tag = 'internal scratch']
  #allocation2 [shape = 'f32[1]{0:T(128)S(6)}', space=smem, size = 0x200, scoped, tag = 'scoped memory for fpa_forward.14']
  %s0 = inlined_call_operand.vmem [shape: f32[18], index: 0, kind: input, shape index: {}]
  %s1 = inlined_call_operand.<no memory space> [shape: f32[1], index: 1, kind: input, shape index: {}]
  %s2 = inlined_call_operand.vmem [shape: f32[2,1,10,10], index: 2, kind: input, shape index: {}]
  %s3 = inlined_call_operand.vmem [shape: f32[2,8,8], index: 3, kind: output, shape index: {}]
  %s4 = sld [smem:[#allocation0]]
  $region49: #{fpa_forward.14} parent=0
    _
  %s6 = ssub.s32 1, %s4
  %s7 = scalar_select 0, %s6, %s4
  %8 = sst [smem:[#allocation2]] %s1
  $region1: #{fpa_forward.14} parent=0
    #allocation3 [shape = 'u8[512]{0}', space=smem, size = 0x200, scoped, tag = 'input window, operand 0, single buffered']
    #allocation4 [shape = 's32[2]{0}', space=sflag, size = 0x8, scoped, tag = 'scoped memory for fpa_forward.14']
    %9 = vsyncpa [#allocation4], 0
    loop: start=0, step=1, limit=4
    $region2: #{fpa_forward.14} parent=1 // loop_pre_header
      _
    $region3: #{fpa_forward.14} parent=1 // loop_header
      %s11 = sphi 0, %s15
      %p12 = scmp.ge.s32.totalorder %s11, 4
      %s19 = sphi 0, %s19
      %s21 = sphi 0, %s19
      %s22 = sphi 0, %s21
      %s36 = sphi 0, %s22
      %s40 = sphi 0, %s40
      %s42 = sphi 0, %s40
      %s43 = sphi 0, %s42
      %s57 = sphi 0, %s43
      %s63 = sphi 0, %s65
      %s66 = sphi 0, %s63
      %s67 = sphi 0, %s66
      %s83 = sphi 0, %s67
      %s89 = sphi 0, %s91
      %s92 = sphi 0, %s89
      %s93 = sphi 0, %s92
      %s109 = sphi 0, %s93
    $region4: #{fpa_forward.14} parent=1 // loop_header_branch
      %14 = sbr.rel (%p12) target = $region8
    $region5: #{fpa_forward.14} parent=1 // loop_body
      %s16 = ssub.s32 %s11, 1
      %s17 = ssub.s32 %s11, 2
      %s18 = sadd.s32 %s11, 1
      %s20 = sadd.s32 %s19, 1
      %p23 = scmp.eq.s32.totalorder %s11, 1
      %p24 = scmp.ne.s32.totalorder %s19, %s21
      %p25 = scmp.eq.s32.totalorder %s11, 0
      %p26 = por %p24, %p25
      %p27 = scmp.ne.s32.totalorder %s19, %s21
      %p28 = scmp.eq.s32.totalorder %s16, 1
      %p29 = por %p27, %p28
      %p30 = scmp.ne.s32.totalorder %s21, %s22
      %p31 = scmp.eq.s32.totalorder %s16, 0
      %p32 = por %p30, %p31
      %p33 = scmp.ne.s32.totalorder %s21, %s22
      %p34 = scmp.eq.s32.totalorder %s17, 1
      %p35 = por %p33, %p34
      %p37 = scmp.ne.s32.totalorder %s22, %s36
      %p38 = scmp.eq.s32.totalorder %s17, 0
      %p39 = por %p37, %p38
      %s41 = sadd.s32 %s40, 1
      %p44 = scmp.eq.s32.totalorder %s11, 1
      %p45 = scmp.ne.s32.totalorder %s40, %s42
      %p46 = scmp.eq.s32.totalorder %s11, 0
      %p47 = por %p45, %p46
      %p48 = scmp.ne.s32.totalorder %s40, %s42
      %p49 = scmp.eq.s32.totalorder %s16, 1
      %p50 = por %p48, %p49
      %p51 = scmp.ne.s32.totalorder %s42, %s43
      %p52 = scmp.eq.s32.totalorder %s16, 0
      %p53 = por %p51, %p52
      %p54 = scmp.ne.s32.totalorder %s42, %s43
      %p55 = scmp.eq.s32.totalorder %s17, 1
      %p56 = por %p54, %p55
      %p58 = scmp.ne.s32.totalorder %s43, %s57
      %p59 = scmp.eq.s32.totalorder %s17, 0
      %p60 = por %p58, %p59
      %s61 = ssub.s32 %s11, %s18
      %p62 = scmp.eq.s32.totalorder %s61, 0
      %s64 = sadd.s32 %s63, 1
      %s65 = scalar_select %p62, %s63, %s64
      %p68 = pneg %p62
      %p69 = scmp.eq.s32.totalorder %s11, 1
      %p70 = por %p68, %p69
      %p71 = scmp.ne.s32.totalorder %s63, %s66
      %p72 = scmp.eq.s32.totalorder %s11, 0
      %p73 = por %p71, %p72
      %p74 = scmp.ne.s32.totalorder %s63, %s66
      %p75 = scmp.eq.s32.totalorder %s16, 1
      %p76 = por %p74, %p75
      %p77 = scmp.ne.s32.totalorder %s66, %s67
      %p78 = scmp.eq.s32.totalorder %s16, 0
      %p79 = por %p77, %p78
      %p80 = scmp.ne.s32.totalorder %s66, %s67
      %p81 = scmp.eq.s32.totalorder %s17, 1
      %p82 = por %p80, %p81
      %p84 = scmp.ne.s32.totalorder %s67, %s83
      %p85 = scmp.eq.s32.totalorder %s17, 0
      %p86 = por %p84, %p85
      %s87 = ssub.s32 %s11, %s18
      %p88 = scmp.eq.s32.totalorder %s87, 0
      %s90 = sadd.s32 %s89, 1
      %s91 = scalar_select %p88, %s89, %s90
      %p94 = pneg %p88
      %p95 = scmp.eq.s32.totalorder %s11, 1
      %p96 = por %p94, %p95
      %p97 = scmp.ne.s32.totalorder %s89, %s92
      %p98 = scmp.eq.s32.totalorder %s11, 0
      %p99 = por %p97, %p98
      %p100 = scmp.ne.s32.totalorder %s89, %s92
      %p101 = scmp.eq.s32.totalorder %s16, 1
      %p102 = por %p100, %p101
      %p103 = scmp.ne.s32.totalorder %s92, %s93
      %p104 = scmp.eq.s32.totalorder %s16, 0
      %p105 = por %p103, %p104
      %p106 = scmp.ne.s32.totalorder %s92, %s93
      %p107 = scmp.eq.s32.totalorder %s17, 1
      %p108 = por %p106, %p107
      %p110 = scmp.ne.s32.totalorder %s93, %s109
      %p111 = scmp.eq.s32.totalorder %s17, 0
      %p112 = por %p110, %p111
      %p113 = scmp.le.s32.totalorder 1, %s11
      %p114 = scmp.lt.s32.totalorder %s11, 3
      %p115 = pnand %p113, %p114
      %p116 = pneg %p115
      // Predicated region
      $region9: #{fpa_forward.14} parent=5 // pred_check
        _
      $region10: #{fpa_forward.14} parent=5 // pred_check_branch
        %118 = sbr.rel (%p115) target = $region12
      $region11: #{fpa_forward.14} parent=5 // pred_region
        %s119 = ssub.s32 %s11, 1
        // Predicated region
        $region13: #{fpa_forward.14} parent=11 // pred_check
          %p120 = pneg %p32
        $region14: #{fpa_forward.14} parent=11 // pred_check_branch
          %122 = sbr.rel (%p120) target = $region16
        $region15: #{fpa_forward.14} parent=11 // pred_region
          %s124 = ssub.s32 16, 16
          %125 = vsyncadd [#allocation4], %s124
          %s127 = sshll.u32 %s0, 4
          %s128 = int_to_ptr.vmem [resolvable:$true] %s127
          %130 = dma.vmem_to_smem %s128, 16, [#allocation3], [#allocation4]
        $region16: #{fpa_forward.14} parent=11 // pred_fallthru
          _
        // Predicated region
        $region17: #{fpa_forward.14} parent=11 // pred_check
          %p131 = pneg %p53
        $region18: #{fpa_forward.14} parent=11 // pred_check_branch
          %133 = sbr.rel (%p131) target = $region20
        $region19: #{fpa_forward.14} parent=11 // pred_region
          _
        $region20: #{fpa_forward.14} parent=11 // pred_fallthru
          _
      $region12: #{fpa_forward.14} parent=5 // pred_fallthru
        _
      %p134 = scmp.lt.s32.totalorder %s11, 2
      // Predicated region
      $region21: #{fpa_forward.14} parent=5 // pred_check
        %p135 = pneg %p134
      $region22: #{fpa_forward.14} parent=5 // pred_check_branch
        %137 = sbr.rel (%p135) target = $region24
      $region23: #{fpa_forward.14} parent=5 // pred_region
        // Predicated region
        $region25: #{fpa_forward.14} parent=23 // pred_check
          %p138 = pneg %p73
        $region26: #{fpa_forward.14} parent=23 // pred_check_branch
          %140 = sbr.rel (%p138) target = $region28
        $region27: #{fpa_forward.14} parent=23 // pred_region
          %p141 = scmp.lt.s32.totalorder %s11, 1
          %s142 = scalar_select %p141, %s11, 1
          %s143 = smul.addr %s142, 2
          %s144 = smul.addr %s143, 8
          %s145 = scalar_lea.vmem %s2, %s144
        $region28: #{fpa_forward.14} parent=23 // pred_fallthru
          _
      $region24: #{fpa_forward.14} parent=5 // pred_fallthru
        _
      %p146 = scmp.le.s32.totalorder 1, %s11
      %p147 = scmp.lt.s32.totalorder %s11, 3
      %p148 = pnand %p146, %p147
      %p149 = pneg %p148
      // Predicated region
      $region29: #{fpa_forward.14} parent=5 // pred_check
        _
      $region30: #{fpa_forward.14} parent=5 // pred_check_branch
        %151 = sbr.rel (%p148) target = $region32
      $region31: #{fpa_forward.14} parent=5 // pred_region
        %s152 = ssub.s32 %s11, 1
        // Predicated region
        $region33: #{fpa_forward.14} parent=31 // pred_check
          %p153 = pneg %p32
        $region34: #{fpa_forward.14} parent=31 // pred_check_branch
          %155 = sbr.rel (%p153) target = $region36
        $region35: #{fpa_forward.14} parent=31 // pred_region
          %156 = dma.done [#allocation4], 16
        $region36: #{fpa_forward.14} parent=31 // pred_fallthru
          _
        %157 = sfence
        %p158 = pneg %p32
        %p159 = pneg %p29
        %p160 = pneg %p53
        %p161 = pneg %p50
        %p162 = scmp.lt.s32.totalorder %s16, 1
        %s163 = scalar_select %p162, %s16, 1
        %s164 = smul.addr %s163, 2
        %s165 = smul.addr %s164, 8
        %s166 = scalar_lea.vmem %s2, %s165
        %p167 = pneg %p79
        %p168 = pneg %p76
        %p169 = pneg %p105
        %p170 = pneg %p102
        %p171 = scmp.lt.s32.totalorder %s16, 1
        %s172 = scalar_select %p171, %s16, 1
        %s173 = smul.addr %s172, 8
        %s174 = scalar_lea.vmem %s3, %s173
        %p175 = scmp.lt.s32.totalorder %s16, 1
        %s176 = scalar_select %p175, %s16, 1
        %s177 = smul.addr %s176, 2
        %s178 = smul.addr %s177, 8
        %s179 = scalar_lea.vmem %s2, %s178
        %p180 = scmp.lt.s32.totalorder %s16, 1
        %s181 = scalar_select %p180, %s16, 1
        %s182 = smul.addr %s181, 8
        %s183 = scalar_lea.vmem %s3, %s182
        %v184 = vld [vmem:[%s179] sm:$0xff]
        %v185 = vld [vmem:[%s179 + $0x8] sm:$0x3]
        %v186 = vadd.f32 %v184, 0.0
        %v187 = vadd.f32 %v185, 0.0
        %s188 = sld [smem:[#allocation3]]
        %v189 = vstv %s188
        %v190 = vmul.f32 %v189, %v184
        %v191 = vadd.f32 %v190, 0.0
        %s192 = sld [smem:[#allocation3 + $0x9]]
        %v193 = vstv %s192
        %v194 = vmul.f32 %v193, %v186
        %v195 = vadd.f32 %v191, %v194
        %s196 = sld [smem:[#allocation3 + $0x1]]
        %v197 = vstv %s196
        %v198 = vmul.f32 %v197, %v184
        %200 = vrot.lane.b32.xlu0 %v198, 127
        %v201 = vpop.permute.xlu0 %200
        %v203 = vadd.f32 %v195, %v201
        %s204 = sld [smem:[#allocation3 + $0xa]]
        %v205 = vstv %s204
        %v206 = vmul.f32 %v205, %v186
        %208 = vrot.lane.b32.xlu0 %v206, 127
        %v209 = vpop.permute.xlu0 %208
        %v211 = vadd.f32 %v203, %v209
        %s212 = sld [smem:[#allocation3 + $0x2]]
        %v213 = vstv %s212
        %v214 = vmul.f32 %v213, %v184
        %216 = vrot.lane.b32.xlu0 %v214, 126
        %v217 = vpop.permute.xlu0 %216
        %v219 = vadd.f32 %v211, %v217
        %s220 = sld [smem:[#allocation3 + $0xb]]
        %v221 = vstv %s220
        %v222 = vmul.f32 %v221, %v186
        %224 = vrot.lane.b32.xlu0 %v222, 126
        %v225 = vpop.permute.xlu0 %224
        %v227 = vadd.f32 %v219, %v225
        %s228 = sld [smem:[#allocation3 + $0x3]]
        %v229 = vstv %s228
        %v230 = vmul.f32 %v229, %v184
        %v231 = vmul.f32 %v229, %v185
        %vm234 = vcmask 1046528
        %v235 = vrot.slane %v230, 1
        %v236 = vrot.slane %v231, 1
        %v237 = vsel %vm234, %v235, %v236
        %v239 = vadd.f32 %v227, %v237
        %s240 = sld [smem:[#allocation3 + $0xc]]
        %v241 = vstv %s240
        %v242 = vmul.f32 %v241, %v186
        %v243 = vmul.f32 %v241, %v187
        %v246 = vrot.slane %v242, 1
        %v247 = vrot.slane %v243, 1
        %v248 = vsel %vm234, %v246, %v247
        %v250 = vadd.f32 %v239, %v248
        %s251 = sld [smem:[#allocation3 + $0x4]]
        %v252 = vstv %s251
        %v253 = vmul.f32 %v252, %v184
        %v254 = vmul.f32 %v252, %v185
        %v257 = vrot.slane %v253, 1
        %v258 = vrot.slane %v254, 1
        %v259 = vsel %vm234, %v257, %v258
        %260 = vrot.lane.b32.xlu0 %v259, 127
        %v261 = vpop.permute.xlu0 %260
        %v263 = vadd.f32 %v250, %v261
        %s264 = sld [smem:[#allocation3 + $0xd]]
        %v265 = vstv %s264
        %v266 = vmul.f32 %v265, %v186
        %v267 = vmul.f32 %v265, %v187
        %v270 = vrot.slane %v266, 1
        %v271 = vrot.slane %v267, 1
        %v272 = vsel %vm234, %v270, %v271
        %273 = vrot.lane.b32.xlu0 %v272, 127
        %v274 = vpop.permute.xlu0 %273
        %v276 = vadd.f32 %v263, %v274
        %s277 = sld [smem:[#allocation3 + $0x5]]
        %v278 = vstv %s277
        %v279 = vmul.f32 %v278, %v184
        %v280 = vmul.f32 %v278, %v185
        %v283 = vrot.slane %v279, 1
        %v284 = vrot.slane %v280, 1
        %v285 = vsel %vm234, %v283, %v284
        %286 = vrot.lane.b32.xlu0 %v285, 126
        %v287 = vpop.permute.xlu0 %286
        %v289 = vadd.f32 %v276, %v287
        %s290 = sld [smem:[#allocation3 + $0xe]]
        %v291 = vstv %s290
        %v292 = vmul.f32 %v291, %v186
        %v293 = vmul.f32 %v291, %v187
        %v296 = vrot.slane %v292, 1
        %v297 = vrot.slane %v293, 1
        %v298 = vsel %vm234, %v296, %v297
        %299 = vrot.lane.b32.xlu0 %v298, 126
        %v300 = vpop.permute.xlu0 %299
        %v302 = vadd.f32 %v289, %v300
        %s303 = sld [smem:[#allocation3 + $0x6]]
        %v304 = vstv %s303
        %v305 = vmul.f32 %v304, %v184
        %v306 = vmul.f32 %v304, %v185
        %vm309 = vcmask 1045504
        %v310 = vrot.slane %v305, 2
        %v311 = vrot.slane %v306, 2
        %v312 = vsel %vm309, %v310, %v311
        %v314 = vadd.f32 %v302, %v312
        %s315 = sld [smem:[#allocation3 + $0xf]]
        %v316 = vstv %s315
        %v317 = vmul.f32 %v316, %v186
        %v318 = vmul.f32 %v316, %v187
        %v321 = vrot.slane %v317, 2
        %v322 = vrot.slane %v318, 2
        %v323 = vsel %vm309, %v321, %v322
        %v325 = vadd.f32 %v314, %v323
        %s326 = sld [smem:[#allocation3 + $0x7]]
        %v327 = vstv %s326
        %v328 = vmul.f32 %v327, %v184
        %v329 = vmul.f32 %v327, %v185
        %v332 = vrot.slane %v328, 2
        %v333 = vrot.slane %v329, 2
        %v334 = vsel %vm309, %v332, %v333
        %335 = vrot.lane.b32.xlu0 %v334, 127
        %v336 = vpop.permute.xlu0 %335
        %v338 = vadd.f32 %v325, %v336
        %s339 = sld [smem:[#allocation3 + $0x10]]
        %v340 = vstv %s339
        %v341 = vmul.f32 %v340, %v186
        %v342 = vmul.f32 %v340, %v187
        %v345 = vrot.slane %v341, 2
        %v346 = vrot.slane %v342, 2
        %v347 = vsel %vm309, %v345, %v346
        %348 = vrot.lane.b32.xlu0 %v347, 127
        %v349 = vpop.permute.xlu0 %348
        %v351 = vadd.f32 %v338, %v349
        %s352 = sld [smem:[#allocation3 + $0x8]]
        %v353 = vstv %s352
        %v354 = vmul.f32 %v353, %v184
        %v355 = vmul.f32 %v353, %v185
        %v358 = vrot.slane %v354, 2
        %v359 = vrot.slane %v355, 2
        %v360 = vsel %vm309, %v358, %v359
        %361 = vrot.lane.b32.xlu0 %v360, 126
        %v362 = vpop.permute.xlu0 %361
        %v364 = vadd.f32 %v351, %v362
        %s365 = sld [smem:[#allocation3 + $0x11]]
        %v366 = vstv %s365
        %v367 = vmul.f32 %v366, %v186
        %v368 = vmul.f32 %v366, %v187
        %v371 = vrot.slane %v367, 2
        %v372 = vrot.slane %v368, 2
        %v373 = vsel %vm309, %v371, %v372
        %374 = vrot.lane.b32.xlu0 %v373, 126
        %v375 = vpop.permute.xlu0 %374
        %v377 = vadd.f32 %v364, %v375
        %s378 = sld [smem:[#allocation2]]
        %v379 = vstv %s378
        %v380 = vadd.f32 %v377, %v379
        %vm381 = vcmask 64512
        %382 = vst.msk [vmem:[%s183] sm:$0xff] %vm381, %v380
        %p383 = scmp.lt.s32.totalorder %s16, 1
        %s384 = scalar_select %p383, %s16, 1
        %s385 = smul.addr %s384, 8
        %s386 = scalar_lea.vmem %s3, %s385
        // Predicated region
        $region37: #{fpa_forward.14} parent=31 // pred_check
          %p387 = pneg %p102
        $region38: #{fpa_forward.14} parent=31 // pred_check_branch
          %389 = sbr.rel (%p387) target = $region40
        $region39: #{fpa_forward.14} parent=31 // pred_region
          _
        $region40: #{fpa_forward.14} parent=31 // pred_fallthru
          _
      $region32: #{fpa_forward.14} parent=5 // pred_fallthru
        _
      %p390 = scmp.le.s32.totalorder 2, %s11
      // Predicated region
      $region41: #{fpa_forward.14} parent=5 // pred_check
        %p391 = pneg %p390
      $region42: #{fpa_forward.14} parent=5 // pred_check_branch
        %393 = sbr.rel (%p391) target = $region44
      $region43: #{fpa_forward.14} parent=5 // pred_region
        %s394 = ssub.s32 %s11, 2
        // Predicated region
        $region45: #{fpa_forward.14} parent=43 // pred_check
          %p395 = pneg %p108
        $region46: #{fpa_forward.14} parent=43 // pred_check_branch
          %397 = sbr.rel (%p395) target = $region48
        $region47: #{fpa_forward.14} parent=43 // pred_region
          %p398 = scmp.lt.s32.totalorder %s17, 1
          %s399 = scalar_select %p398, %s17, 1
          %s400 = smul.addr %s399, 8
          %s401 = scalar_lea.vmem %s3, %s400
        $region48: #{fpa_forward.14} parent=43 // pred_fallthru
          _
      $region44: #{fpa_forward.14} parent=5 // pred_fallthru
        _
    $region6: #{fpa_forward.14} parent=1 // loop_footer
      %s15 = sadd.s32 1, %s11
    $region7: #{fpa_forward.14} parent=1 // loop_footer_branch
      %10 = sbr.rel target = $region3
    $region8: #{fpa_forward.14} parent=1 // loop_exit
      _
    %402 = vsyncpa [#allocation4], 1
    %s403 = scalar_lea.sflag [#allocation4], 1
    %404 = vsyncpa %s403, 1

// kernel: fpa_forward.15
$region0: #{fpa_forward.15}
  #allocation0 [shape = 'u32[]', space=smem, size = 0x4, offset = 0x4, fixed_abs, tag = 'smem constant byte address 0x4 - core index']
  #allocation1 [shape = 'u32[144,128]{1,0:T(1,128)}', space=vmem, size = 0x12000, scoped, tag = 'internal scratch']
  #allocation2 [shape = 'f32[1]{0:T(128)S(6)}', space=smem, size = 0x200, scoped, tag = 'scoped memory for fpa_forward.15']
  %s0 = inlined_call_operand.vmem [shape: f32[18], index: 0, kind: input, shape index: {}]
  %s1 = inlined_call_operand.<no memory space> [shape: f32[1], index: 1, kind: input, shape index: {}]
  %s2 = inlined_call_operand.vmem [shape: f32[2,1,6,6], index: 2, kind: input, shape index: {}]
  %s3 = inlined_call_operand.vmem [shape: f32[2,4,4], index: 3, kind: output, shape index: {}]
  %s4 = sld [smem:[#allocation0]]
  $region49: #{fpa_forward.15} parent=0
    _
  %s6 = ssub.s32 1, %s4
  %s7 = scalar_select 0, %s6, %s4
  %8 = sst [smem:[#allocation2]] %s1
  $region1: #{fpa_forward.15} parent=0
    #allocation3 [shape = 'u8[512]{0}', space=smem, size = 0x200, scoped, tag = 'input window, operand 0, single buffered']
    #allocation4 [shape = 's32[2]{0}', space=sflag, size = 0x8, scoped, tag = 'scoped memory for fpa_forward.15']
    %9 = vsyncpa [#allocation4], 0
    loop: start=0, step=1, limit=4
    $region2: #{fpa_forward.15} parent=1 // loop_pre_header
      _
    $region3: #{fpa_forward.15} parent=1 // loop_header
      %s11 = sphi 0, %s15
      %p12 = scmp.ge.s32.totalorder %s11, 4
      %s19 = sphi 0, %s19
      %s21 = sphi 0, %s19
      %s22 = sphi 0, %s21
      %s36 = sphi 0, %s22
      %s40 = sphi 0, %s40
      %s42 = sphi 0, %s40
      %s43 = sphi 0, %s42
      %s57 = sphi 0, %s43
      %s63 = sphi 0, %s65
      %s66 = sphi 0, %s63
      %s67 = sphi 0, %s66
      %s83 = sphi 0, %s67
      %s89 = sphi 0, %s91
      %s92 = sphi 0, %s89
      %s93 = sphi 0, %s92
      %s109 = sphi 0, %s93
    $region4: #{fpa_forward.15} parent=1 // loop_header_branch
      %14 = sbr.rel (%p12) target = $region8
    $region5: #{fpa_forward.15} parent=1 // loop_body
      %s16 = ssub.s32 %s11, 1
      %s17 = ssub.s32 %s11, 2
      %s18 = sadd.s32 %s11, 1
      %s20 = sadd.s32 %s19, 1
      %p23 = scmp.eq.s32.totalorder %s11, 1
      %p24 = scmp.ne.s32.totalorder %s19, %s21
      %p25 = scmp.eq.s32.totalorder %s11, 0
      %p26 = por %p24, %p25
      %p27 = scmp.ne.s32.totalorder %s19, %s21
      %p28 = scmp.eq.s32.totalorder %s16, 1
      %p29 = por %p27, %p28
      %p30 = scmp.ne.s32.totalorder %s21, %s22
      %p31 = scmp.eq.s32.totalorder %s16, 0
      %p32 = por %p30, %p31
      %p33 = scmp.ne.s32.totalorder %s21, %s22
      %p34 = scmp.eq.s32.totalorder %s17, 1
      %p35 = por %p33, %p34
      %p37 = scmp.ne.s32.totalorder %s22, %s36
      %p38 = scmp.eq.s32.totalorder %s17, 0
      %p39 = por %p37, %p38
      %s41 = sadd.s32 %s40, 1
      %p44 = scmp.eq.s32.totalorder %s11, 1
      %p45 = scmp.ne.s32.totalorder %s40, %s42
      %p46 = scmp.eq.s32.totalorder %s11, 0
      %p47 = por %p45, %p46
      %p48 = scmp.ne.s32.totalorder %s40, %s42
      %p49 = scmp.eq.s32.totalorder %s16, 1
      %p50 = por %p48, %p49
      %p51 = scmp.ne.s32.totalorder %s42, %s43
      %p52 = scmp.eq.s32.totalorder %s16, 0
      %p53 = por %p51, %p52
      %p54 = scmp.ne.s32.totalorder %s42, %s43
      %p55 = scmp.eq.s32.totalorder %s17, 1
      %p56 = por %p54, %p55
      %p58 = scmp.ne.s32.totalorder %s43, %s57
      %p59 = scmp.eq.s32.totalorder %s17, 0
      %p60 = por %p58, %p59
      %s61 = ssub.s32 %s11, %s18
      %p62 = scmp.eq.s32.totalorder %s61, 0
      %s64 = sadd.s32 %s63, 1
      %s65 = scalar_select %p62, %s63, %s64
      %p68 = pneg %p62
      %p69 = scmp.eq.s32.totalorder %s11, 1
      %p70 = por %p68, %p69
      %p71 = scmp.ne.s32.totalorder %s63, %s66
      %p72 = scmp.eq.s32.totalorder %s11, 0
      %p73 = por %p71, %p72
      %p74 = scmp.ne.s32.totalorder %s63, %s66
      %p75 = scmp.eq.s32.totalorder %s16, 1
      %p76 = por %p74, %p75
      %p77 = scmp.ne.s32.totalorder %s66, %s67
      %p78 = scmp.eq.s32.totalorder %s16, 0
      %p79 = por %p77, %p78
      %p80 = scmp.ne.s32.totalorder %s66, %s67
      %p81 = scmp.eq.s32.totalorder %s17, 1
      %p82 = por %p80, %p81
      %p84 = scmp.ne.s32.totalorder %s67, %s83
      %p85 = scmp.eq.s32.totalorder %s17, 0
      %p86 = por %p84, %p85
      %s87 = ssub.s32 %s11, %s18
      %p88 = scmp.eq.s32.totalorder %s87, 0
      %s90 = sadd.s32 %s89, 1
      %s91 = scalar_select %p88, %s89, %s90
      %p94 = pneg %p88
      %p95 = scmp.eq.s32.totalorder %s11, 1
      %p96 = por %p94, %p95
      %p97 = scmp.ne.s32.totalorder %s89, %s92
      %p98 = scmp.eq.s32.totalorder %s11, 0
      %p99 = por %p97, %p98
      %p100 = scmp.ne.s32.totalorder %s89, %s92
      %p101 = scmp.eq.s32.totalorder %s16, 1
      %p102 = por %p100, %p101
      %p103 = scmp.ne.s32.totalorder %s92, %s93
      %p104 = scmp.eq.s32.totalorder %s16, 0
      %p105 = por %p103, %p104
      %p106 = scmp.ne.s32.totalorder %s92, %s93
      %p107 = scmp.eq.s32.totalorder %s17, 1
      %p108 = por %p106, %p107
      %p110 = scmp.ne.s32.totalorder %s93, %s109
      %p111 = scmp.eq.s32.totalorder %s17, 0
      %p112 = por %p110, %p111
      %p113 = scmp.le.s32.totalorder 1, %s11
      %p114 = scmp.lt.s32.totalorder %s11, 3
      %p115 = pnand %p113, %p114
      %p116 = pneg %p115
      // Predicated region
      $region9: #{fpa_forward.15} parent=5 // pred_check
        _
      $region10: #{fpa_forward.15} parent=5 // pred_check_branch
        %118 = sbr.rel (%p115) target = $region12
      $region11: #{fpa_forward.15} parent=5 // pred_region
        %s119 = ssub.s32 %s11, 1
        // Predicated region
        $region13: #{fpa_forward.15} parent=11 // pred_check
          %p120 = pneg %p32
        $region14: #{fpa_forward.15} parent=11 // pred_check_branch
          %122 = sbr.rel (%p120) target = $region16
        $region15: #{fpa_forward.15} parent=11 // pred_region
          %s124 = ssub.s32 16, 16
          %125 = vsyncadd [#allocation4], %s124
          %s127 = sshll.u32 %s0, 4
          %s128 = int_to_ptr.vmem [resolvable:$true] %s127
          %130 = dma.vmem_to_smem %s128, 16, [#allocation3], [#allocation4]
        $region16: #{fpa_forward.15} parent=11 // pred_fallthru
          _
        // Predicated region
        $region17: #{fpa_forward.15} parent=11 // pred_check
          %p131 = pneg %p53
        $region18: #{fpa_forward.15} parent=11 // pred_check_branch
          %133 = sbr.rel (%p131) target = $region20
        $region19: #{fpa_forward.15} parent=11 // pred_region
          _
        $region20: #{fpa_forward.15} parent=11 // pred_fallthru
          _
      $region12: #{fpa_forward.15} parent=5 // pred_fallthru
        _
      %p134 = scmp.lt.s32.totalorder %s11, 2
      // Predicated region
      $region21: #{fpa_forward.15} parent=5 // pred_check
        %p135 = pneg %p134
      $region22: #{fpa_forward.15} parent=5 // pred_check_branch
        %137 = sbr.rel (%p135) target = $region24
      $region23: #{fpa_forward.15} parent=5 // pred_region
        // Predicated region
        $region25: #{fpa_forward.15} parent=23 // pred_check
          %p138 = pneg %p73
        $region26: #{fpa_forward.15} parent=23 // pred_check_branch
          %140 = sbr.rel (%p138) target = $region28
        $region27: #{fpa_forward.15} parent=23 // pred_region
          %p141 = scmp.lt.s32.totalorder %s11, 1
          %s142 = scalar_select %p141, %s11, 1
          %s143 = smul.addr %s142, 8
          %s144 = scalar_lea.vmem %s2, %s143
        $region28: #{fpa_forward.15} parent=23 // pred_fallthru
          _
      $region24: #{fpa_forward.15} parent=5 // pred_fallthru
        _
      %p145 = scmp.le.s32.totalorder 1, %s11
      %p146 = scmp.lt.s32.totalorder %s11, 3
      %p147 = pnand %p145, %p146
      %p148 = pneg %p147
      // Predicated region
      $region29: #{fpa_forward.15} parent=5 // pred_check
        _
      $region30: #{fpa_forward.15} parent=5 // pred_check_branch
        %150 = sbr.rel (%p147) target = $region32
      $region31: #{fpa_forward.15} parent=5 // pred_region
        %s151 = ssub.s32 %s11, 1
        // Predicated region
        $region33: #{fpa_forward.15} parent=31 // pred_check
          %p152 = pneg %p32
        $region34: #{fpa_forward.15} parent=31 // pred_check_branch
          %154 = sbr.rel (%p152) target = $region36
        $region35: #{fpa_forward.15} parent=31 // pred_region
          %155 = dma.done [#allocation4], 16
        $region36: #{fpa_forward.15} parent=31 // pred_fallthru
          _
        %156 = sfence
        %p157 = pneg %p32
        %p158 = pneg %p29
        %p159 = pneg %p53
        %p160 = pneg %p50
        %p161 = scmp.lt.s32.totalorder %s16, 1
        %s162 = scalar_select %p161, %s16, 1
        %s163 = smul.addr %s162, 8
        %s164 = scalar_lea.vmem %s2, %s163
        %p165 = pneg %p79
        %p166 = pneg %p76
        %p167 = pneg %p105
        %p168 = pneg %p102
        %p169 = scmp.lt.s32.totalorder %s16, 1
        %s170 = scalar_select %p169, %s16, 1
        %s171 = smul.addr %s170, 4
        %s172 = scalar_lea.vmem %s3, %s171
        %p173 = scmp.lt.s32.totalorder %s16, 1
        %s174 = scalar_select %p173, %s16, 1
        %s175 = smul.addr %s174, 8
        %s176 = scalar_lea.vmem %s2, %s175
        %p177 = scmp.lt.s32.totalorder %s16, 1
        %s178 = scalar_select %p177, %s16, 1
        %s179 = smul.addr %s178, 4
        %s180 = scalar_lea.vmem %s3, %s179
        %v181 = vld [vmem:[%s176] sm:$0x3f]
        %v182 = vadd.f32 %v181, 0.0
        %s183 = sld [smem:[#allocation3]]
        %v184 = vstv %s183
        %v185 = vmul.f32 %v184, %v181
        %v186 = vadd.f32 %v185, 0.0
        %s187 = sld [smem:[#allocation3 + $0x9]]
        %v188 = vstv %s187
        %v189 = vmul.f32 %v188, %v182
        %v190 = vadd.f32 %v186, %v189
        %s191 = sld [smem:[#allocation3 + $0x1]]
        %v192 = vstv %s191
        %v193 = vmul.f32 %v192, %v181
        %195 = vrot.lane.b32.xlu0 %v193, 127
        %v196 = vpop.permute.xlu0 %195
        %v198 = vadd.f32 %v190, %v196
        %s199 = sld [smem:[#allocation3 + $0xa]]
        %v200 = vstv %s199
        %v201 = vmul.f32 %v200, %v182
        %203 = vrot.lane.b32.xlu0 %v201, 127
        %v204 = vpop.permute.xlu0 %203
        %v206 = vadd.f32 %v198, %v204
        %s207 = sld [smem:[#allocation3 + $0x2]]
        %v208 = vstv %s207
        %v209 = vmul.f32 %v208, %v181
        %211 = vrot.lane.b32.xlu0 %v209, 126
        %v212 = vpop.permute.xlu0 %211
        %v214 = vadd.f32 %v206, %v212
        %s215 = sld [smem:[#allocation3 + $0xb]]
        %v216 = vstv %s215
        %v217 = vmul.f32 %v216, %v182
        %219 = vrot.lane.b32.xlu0 %v217, 126
        %v220 = vpop.permute.xlu0 %219
        %v222 = vadd.f32 %v214, %v220
        %s223 = sld [smem:[#allocation3 + $0x3]]
        %v224 = vstv %s223
        %v225 = vmul.f32 %v224, %v181
        %v227 = vrot.slane %v225, 1
        %v229 = vadd.f32 %v222, %v227
        %s230 = sld [smem:[#allocation3 + $0xc]]
        %v231 = vstv %s230
        %v232 = vmul.f32 %v231, %v182
        %v234 = vrot.slane %v232, 1
        %v236 = vadd.f32 %v229, %v234
        %s237 = sld [smem:[#allocation3 + $0x4]]
        %v238 = vstv %s237
        %v239 = vmul.f32 %v238, %v181
        %v241 = vrot.slane %v239, 1
        %242 = vrot.lane.b32.xlu0 %v241, 127
        %v243 = vpop.permute.xlu0 %242
        %v245 = vadd.f32 %v236, %v243
        %s246 = sld [smem:[#allocation3 + $0xd]]
        %v247 = vstv %s246
        %v248 = vmul.f32 %v247, %v182
        %v250 = vrot.slane %v248, 1
        %251 = vrot.lane.b32.xlu0 %v250, 127
        %v252 = vpop.permute.xlu0 %251
        %v254 = vadd.f32 %v245, %v252
        %s255 = sld [smem:[#allocation3 + $0x5]]
        %v256 = vstv %s255
        %v257 = vmul.f32 %v256, %v181
        %v259 = vrot.slane %v257, 1
        %260 = vrot.lane.b32.xlu0 %v259, 126
        %v261 = vpop.permute.xlu0 %260
        %v263 = vadd.f32 %v254, %v261
        %s264 = sld [smem:[#allocation3 + $0xe]]
        %v265 = vstv %s264
        %v266 = vmul.f32 %v265, %v182
        %v268 = vrot.slane %v266, 1
        %269 = vrot.lane.b32.xlu0 %v268, 126
        %v270 = vpop.permute.xlu0 %269
        %v272 = vadd.f32 %v263, %v270
        %s273 = sld [smem:[#allocation3 + $0x6]]
        %v274 = vstv %s273
        %v275 = vmul.f32 %v274, %v181
        %v277 = vrot.slane %v275, 2
        %v279 = vadd.f32 %v272, %v277
        %s280 = sld [smem:[#allocation3 + $0xf]]
        %v281 = vstv %s280
        %v282 = vmul.f32 %v281, %v182
        %v284 = vrot.slane %v282, 2
        %v286 = vadd.f32 %v279, %v284
        %s287 = sld [smem:[#allocation3 + $0x7]]
        %v288 = vstv %s287
        %v289 = vmul.f32 %v288, %v181
        %v291 = vrot.slane %v289, 2
        %292 = vrot.lane.b32.xlu0 %v291, 127
        %v293 = vpop.permute.xlu0 %292
        %v295 = vadd.f32 %v286, %v293
        %s296 = sld [smem:[#allocation3 + $0x10]]
        %v297 = vstv %s296
        %v298 = vmul.f32 %v297, %v182
        %v300 = vrot.slane %v298, 2
        %301 = vrot.lane.b32.xlu0 %v300, 127
        %v302 = vpop.permute.xlu0 %301
        %v304 = vadd.f32 %v295, %v302
        %s305 = sld [smem:[#allocation3 + $0x8]]
        %v306 = vstv %s305
        %v307 = vmul.f32 %v306, %v181
        %v309 = vrot.slane %v307, 2
        %310 = vrot.lane.b32.xlu0 %v309, 126
        %v311 = vpop.permute.xlu0 %310
        %v313 = vadd.f32 %v304, %v311
        %s314 = sld [smem:[#allocation3 + $0x11]]
        %v315 = vstv %s314
        %v316 = vmul.f32 %v315, %v182
        %v318 = vrot.slane %v316, 2
        %319 = vrot.lane.b32.xlu0 %v318, 126
        %v320 = vpop.permute.xlu0 %319
        %v322 = vadd.f32 %v313, %v320
        %s323 = sld [smem:[#allocation2]]
        %v324 = vstv %s323
        %v325 = vadd.f32 %v322, %v324
        %vm326 = vcmask 27648
        %327 = vst.msk [vmem:[%s180] sm:$0xf] %vm326, %v325
        %p328 = scmp.lt.s32.totalorder %s16, 1
        %s329 = scalar_select %p328, %s16, 1
        %s330 = smul.addr %s329, 4
        %s331 = scalar_lea.vmem %s3, %s330
        // Predicated region
        $region37: #{fpa_forward.15} parent=31 // pred_check
          %p332 = pneg %p102
        $region38: #{fpa_forward.15} parent=31 // pred_check_branch
          %334 = sbr.rel (%p332) target = $region40
        $region39: #{fpa_forward.15} parent=31 // pred_region
          _
        $region40: #{fpa_forward.15} parent=31 // pred_fallthru
          _
      $region32: #{fpa_forward.15} parent=5 // pred_fallthru
        _
      %p335 = scmp.le.s32.totalorder 2, %s11
      // Predicated region
      $region41: #{fpa_forward.15} parent=5 // pred_check
        %p336 = pneg %p335
      $region42: #{fpa_forward.15} parent=5 // pred_check_branch
        %338 = sbr.rel (%p336) target = $region44
      $region43: #{fpa_forward.15} parent=5 // pred_region
        %s339 = ssub.s32 %s11, 2
        // Predicated region
        $region45: #{fpa_forward.15} parent=43 // pred_check
          %p340 = pneg %p108
        $region46: #{fpa_forward.15} parent=43 // pred_check_branch
          %342 = sbr.rel (%p340) target = $region48
        $region47: #{fpa_forward.15} parent=43 // pred_region
          %p343 = scmp.lt.s32.totalorder %s17, 1
          %s344 = scalar_select %p343, %s17, 1
          %s345 = smul.addr %s344, 4
          %s346 = scalar_lea.vmem %s3, %s345
        $region48: #{fpa_forward.15} parent=43 // pred_fallthru
          _
      $region44: #{fpa_forward.15} parent=5 // pred_fallthru
        _
    $region6: #{fpa_forward.15} parent=1 // loop_footer
      %s15 = sadd.s32 1, %s11
    $region7: #{fpa_forward.15} parent=1 // loop_footer_branch
      %10 = sbr.rel target = $region3
    $region8: #{fpa_forward.15} parent=1 // loop_exit
      _
    %347 = vsyncpa [#allocation4], 1
    %s348 = scalar_lea.sflag [#allocation4], 1
    %349 = vsyncpa %s348, 1

// kernel: fpa_forward.10
$region0: #{fpa_forward.10}
  #allocation0 [shape = 'u32[]', space=smem, size = 0x4, offset = 0x4, fixed_abs, tag = 'smem constant byte address 0x4 - core index']
  #allocation1 [shape = 'u32[144,128]{1,0:T(1,128)}', space=vmem, size = 0x12000, scoped, tag = 'internal scratch']
  #allocation2 [shape = 'f32[8,128]{1,0:T(8,128)}', space=vmem, size = 0x1000, scoped, tag = 'scratch operand']
  %s0 = inlined_call_operand.vmem [shape: bf16[8,4], index: 0, kind: input, shape index: {}]
  %s1 = inlined_call_operand.vmem [shape: f32[8,1], index: 1, kind: input, shape index: {}]
  %s2 = inlined_call_operand.vmem [shape: bf16[2,4,256], index: 2, kind: input, shape index: {}]
  %s3 = inlined_call_operand.vmem [shape: f32[2,8,256], index: 3, kind: output, shape index: {}]
  %s4 = sld [smem:[#allocation0]]
  $region53: #{fpa_forward.10} parent=0
    _
  %s6 = ssub.s32 1, %s4
  %s7 = scalar_select 0, %s6, %s4
  loop: start=0, step=1, limit=6
  $region2: #{fpa_forward.10} parent=0 // loop_pre_header
    _
  $region3: #{fpa_forward.10} parent=0 // loop_header
    %s9 = sphi 0, %s13
    %p10 = scmp.ge.s32.totalorder %s9, 6
    %s16 = sphi 0, %s35
    %s17 = sphi 0, %s31
    %s18 = sphi 0, %s27
    %s19 = sphi 0, %s16
    %s20 = sphi 0, %s17
    %s21 = sphi 0, %s18
    %s22 = sphi 0, %s19
    %s23 = sphi 0, %s20
    %s24 = sphi 0, %s21
    %s38 = sphi 0, %s40
    %s41 = sphi 0, %s38
    %s42 = sphi 0, %s41
    %s58 = sphi 0, %s42
    %s62 = sphi 0, %s62
    %s64 = sphi 0, %s62
    %s65 = sphi 0, %s64
    %s79 = sphi 0, %s65
    %s89 = sphi 0, %s91
    %s92 = sphi 0, %s89
    %s93 = sphi 0, %s92
    %s109 = sphi 0, %s93
    %s117 = sphi 0, %s119
    %s120 = sphi 0, %s117
    %s121 = sphi 0, %s120
    %s137 = sphi 0, %s121
  $region4: #{fpa_forward.10} parent=0 // loop_header_branch
    %12 = sbr.rel (%p10) target = $region8
  $region5: #{fpa_forward.10} parent=0 // loop_body
    %s14 = ssub.s32 %s9, 1
    %s15 = ssub.s32 %s9, 2
    %s25 = sadd.s32 1, %s18
    %p26 = scmp.ge.s32.totalorder %s25, 1
    %s27 = scalar_select %p26, 0, %s25
    %s28 = sadd.s32 1, %s17
    %s29 = scalar_select %p26, %s28, %s17
    %p30 = scmp.ge.s32.totalorder %s29, 2
    %s31 = scalar_select %p30, 0, %s29
    %s32 = sadd.s32 1, %s16
    %s33 = scalar_select %p30, %s32, %s16
    %p34 = scmp.ge.s32.totalorder %s33, 2
    %s35 = scalar_select %p34, 0, %s33
    %s36 = ssub.s32 %s18, %s27
    %p37 = scmp.eq.s32.totalorder %s36, 0
    %s39 = sadd.s32 %s38, 1
    %s40 = scalar_select %p37, %s38, %s39
    %p43 = pneg %p37
    %p44 = scmp.eq.s32.totalorder %s9, 3
    %p45 = por %p43, %p44
    %p46 = scmp.ne.s32.totalorder %s38, %s41
    %p47 = scmp.eq.s32.totalorder %s9, 0
    %p48 = por %p46, %p47
    %p49 = scmp.ne.s32.totalorder %s38, %s41
    %p50 = scmp.eq.s32.totalorder %s14, 3
    %p51 = por %p49, %p50
    %p52 = scmp.ne.s32.totalorder %s41, %s42
    %p53 = scmp.eq.s32.totalorder %s14, 0
    %p54 = por %p52, %p53
    %p55 = scmp.ne.s32.totalorder %s41, %s42
    %p56 = scmp.eq.s32.totalorder %s15, 3
    %p57 = por %p55, %p56
    %p59 = scmp.ne.s32.totalorder %s42, %s58
    %p60 = scmp.eq.s32.totalorder %s15, 0
    %p61 = por %p59, %p60
    %s63 = sadd.s32 %s62, 1
    %p66 = scmp.eq.s32.totalorder %s9, 3
    %p67 = scmp.ne.s32.totalorder %s62, %s64
    %p68 = scmp.eq.s32.totalorder %s9, 0
    %p69 = por %p67, %p68
    %p70 = scmp.ne.s32.totalorder %s62, %s64
    %p71 = scmp.eq.s32.totalorder %s14, 3
    %p72 = por %p70, %p71
    %p73 = scmp.ne.s32.totalorder %s64, %s65
    %p74 = scmp.eq.s32.totalorder %s14, 0
    %p75 = por %p73, %p74
    %p76 = scmp.ne.s32.totalorder %s64, %s65
    %p77 = scmp.eq.s32.totalorder %s15, 3
    %p78 = por %p76, %p77
    %p80 = scmp.ne.s32.totalorder %s65, %s79
    %p81 = scmp.eq.s32.totalorder %s15, 0
    %p82 = por %p80, %p81
    %s83 = ssub.s32 %s16, %s35
    %s84 = ssub.s32 %s18, %s27
    %s85 = sor.u32 %s83, %s84
    %s86 = ssub.s32 %s17, %s31
    %s87 = sor.u32 %s85, %s86
    %p88 = scmp.eq.s32.totalorder %s87, 0
    %s90 = sadd.s32 %s89, 1
    %s91 = scalar_select %p88, %s89, %s90
    %p94 = pneg %p88
    %p95 = scmp.eq.s32.totalorder %s9, 3
    %p96 = por %p94, %p95
    %p97 = scmp.ne.s32.totalorder %s89, %s92
    %p98 = scmp.eq.s32.totalorder %s9, 0
    %p99 = por %p97, %p98
    %p100 = scmp.ne.s32.totalorder %s89, %s92
    %p101 = scmp.eq.s32.totalorder %s14, 3
    %p102 = por %p100, %p101
    %p103 = scmp.ne.s32.totalorder %s92, %s93
    %p104 = scmp.eq.s32.totalorder %s14, 0
    %p105 = por %p103, %p104
    %p106 = scmp.ne.s32.totalorder %s92, %s93
    %p107 = scmp.eq.s32.totalorder %s15, 3
    %p108 = por %p106, %p107
    %p110 = scmp.ne.s32.totalorder %s93, %s109
    %p111 = scmp.eq.s32.totalorder %s15, 0
    %p112 = por %p110, %p111
    %s113 = ssub.s32 %s16, %s35
    %s114 = ssub.s32 %s17, %s31
    %s115 = sor.u32 %s113, %s114
    %p116 = scmp.eq.s32.totalorder %s115, 0
    %s118 = sadd.s32 %s117, 1
    %s119 = scalar_select %p116, %s117, %s118
    %p122 = pneg %p116
    %p123 = scmp.eq.s32.totalorder %s9, 3
    %p124 = por %p122, %p123
    %p125 = scmp.ne.s32.totalorder %s117, %s120
    %p126 = scmp.eq.s32.totalorder %s9, 0
    %p127 = por %p125, %p126
    %p128 = scmp.ne.s32.totalorder %s117, %s120
    %p129 = scmp.eq.s32.totalorder %s14, 3
    %p130 = por %p128, %p129
    %p131 = scmp.ne.s32.totalorder %s120, %s121
    %p132 = scmp.eq.s32.totalorder %s14, 0
    %p133 = por %p131, %p132
    %p134 = scmp.ne.s32.totalorder %s120, %s121
    %p135 = scmp.eq.s32.totalorder %s15, 3
    %p136 = por %p134, %p135
    %p138 = scmp.ne.s32.totalorder %s121, %s137
    %p139 = scmp.eq.s32.totalorder %s15, 0
    %p140 = por %p138, %p139
    %p141 = scmp.le.s32.totalorder 1, %s9
    %p142 = scmp.lt.s32.totalorder %s9, 5
    %p143 = pnand %p141, %p142
    %p144 = pneg %p143
    // Predicated region
    $region9: #{fpa_forward.10} parent=5 // pred_check
      _
    $region10: #{fpa_forward.10} parent=5 // pred_check_branch
      %146 = sbr.rel (%p143) target = $region12
    $region11: #{fpa_forward.10} parent=5 // pred_region
      %s147 = ssub.s32 %s9, 1
      // Predicated region
      $region13: #{fpa_forward.10} parent=11 // pred_check
        %p148 = pneg %p54
      $region14: #{fpa_forward.10} parent=11 // pred_check_branch
        %150 = sbr.rel (%p148) target = $region16
      $region15: #{fpa_forward.10} parent=11 // pred_region
        %p151 = scmp.lt.s32.totalorder %s21, 0
        %s152 = scalar_select %p151, %s21, 0
        %s153 = smul.addr %s152, 4
        %s154 = scalar_lea.vmem %s0, %s153
      $region16: #{fpa_forward.10} parent=11 // pred_fallthru
        _
      // Predicated region
      $region17: #{fpa_forward.10} parent=11 // pred_check
        %p155 = pneg %p75
      $region18: #{fpa_forward.10} parent=11 // pred_check_branch
        %157 = sbr.rel (%p155) target = $region20
      $region19: #{fpa_forward.10} parent=11 // pred_region
        _
      $region20: #{fpa_forward.10} parent=11 // pred_fallthru
        _
    $region12: #{fpa_forward.10} parent=5 // pred_fallthru
      _
    %p158 = scmp.lt.s32.totalorder %s9, 4
    // Predicated region
    $region21: #{fpa_forward.10} parent=5 // pred_check
      %p159 = pneg %p158
    $region22: #{fpa_forward.10} parent=5 // pred_check_branch
      %161 = sbr.rel (%p159) target = $region24
    $region23: #{fpa_forward.10} parent=5 // pred_region
      // Predicated region
      $region25: #{fpa_forward.10} parent=23 // pred_check
        %p162 = pneg %p99
      $region26: #{fpa_forward.10} parent=23 // pred_check_branch
        %164 = sbr.rel (%p162) target = $region28
      $region27: #{fpa_forward.10} parent=23 // pred_region
        %p165 = scmp.lt.s32.totalorder %s16, 1
        %s166 = scalar_select %p165, %s16, 1
        %p167 = scmp.lt.s32.totalorder %s18, 0
        %s168 = scalar_select %p167, %s18, 0
        %p169 = scmp.lt.s32.totalorder %s17, 1
        %s170 = scalar_select %p169, %s17, 1
        %s171 = smul.addr %s168, 2
        %s172 = sadd.s32 %s170, %s171
        %s173 = smul.addr %s166, 2
        %s174 = sadd.s32 %s172, %s173
        %s175 = smul.addr %s174, 2
        %s176 = scalar_lea.vmem %s2, %s175
      $region28: #{fpa_forward.10} parent=23 // pred_fallthru
        _
    $region24: #{fpa_forward.10} parent=5 // pred_fallthru
      _
    %p177 = scmp.le.s32.totalorder 1, %s9
    %p178 = scmp.lt.s32.totalorder %s9, 5
    %p179 = pnand %p177, %p178
    %p180 = pneg %p179
    // Predicated region
    $region29: #{fpa_forward.10} parent=5 // pred_check
      _
    $region30: #{fpa_forward.10} parent=5 // pred_check_branch
      %182 = sbr.rel (%p179) target = $region32
    $region31: #{fpa_forward.10} parent=5 // pred_region
      %s183 = ssub.s32 %s9, 1
      %p184 = scmp.lt.s32.totalorder %s21, 0
      %s185 = scalar_select %p184, %s21, 0
      %s186 = smul.addr %s185, 4
      %s187 = scalar_lea.vmem %s0, %s186
      %p188 = pneg %p54
      %p189 = pneg %p51
      %p190 = pneg %p75
      %p191 = pneg %p72
      %p192 = scmp.lt.s32.totalorder %s19, 1
      %s193 = scalar_select %p192, %s19, 1
      %p194 = scmp.lt.s32.totalorder %s21, 0
      %s195 = scalar_select %p194, %s21, 0
      %p196 = scmp.lt.s32.totalorder %s20, 1
      %s197 = scalar_select %p196, %s20, 1
      %s198 = smul.addr %s195, 2
      %s199 = sadd.s32 %s197, %s198
      %s200 = smul.addr %s193, 2
      %s201 = sadd.s32 %s199, %s200
      %s202 = smul.addr %s201, 2
      %s203 = scalar_lea.vmem %s2, %s202
      %p204 = pneg %p105
      %p205 = pneg %p102
      %p206 = pneg %p133
      %p207 = pneg %p130
      %p208 = scmp.lt.s32.totalorder %s19, 1
      %s209 = scalar_select %p208, %s19, 1
      %p210 = scmp.lt.s32.totalorder %s20, 1
      %s211 = scalar_select %p210, %s20, 1
      %s212 = smul.addr %s209, 2
      %s213 = sadd.s32 %s211, %s212
      %s214 = smul.addr %s213, 8
      %s215 = scalar_lea.vmem %s3, %s214
      %p216 = scmp.lt.s32.totalorder %s21, 0
      %s217 = scalar_select %p216, %s21, 0
      %s218 = smul.addr %s217, 4
      %s219 = scalar_lea.vmem %s0, %s218
      %p220 = scmp.lt.s32.totalorder %s19, 1
      %s221 = scalar_select %p220, %s19, 1
      %p222 = scmp.lt.s32.totalorder %s21, 0
      %s223 = scalar_select %p222, %s21, 0
      %p224 = scmp.lt.s32.totalorder %s20, 1
      %s225 = scalar_select %p224, %s20, 1
      %s226 = smul.addr %s223, 2
      %s227 = sadd.s32 %s225, %s226
      %s228 = smul.addr %s221, 2
      %s229 = sadd.s32 %s227, %s228
      %s230 = smul.addr %s229, 2
      %s231 = scalar_lea.vmem %s2, %s230
      %p232 = scmp.lt.s32.totalorder %s19, 1
      %s233 = scalar_select %p232, %s19, 1
      %p234 = scmp.lt.s32.totalorder %s20, 1
      %s235 = scalar_select %p234, %s20, 1
      %s236 = smul.addr %s233, 2
      %s237 = sadd.s32 %s235, %s236
      %s238 = smul.addr %s237, 8
      %s239 = scalar_lea.vmem %s3, %s238
      %p241 = scmp.eq.s32.totalorder %s21, 0
      // Predicated region
      $region33: #{fpa_forward.10} parent=31 // pred_check
        %p242 = pneg %p241
      $region34: #{fpa_forward.10} parent=31 // pred_check_branch
        %244 = sbr.rel (%p242) target = $region36
      $region35: #{fpa_forward.10} parent=31 // pred_region
        %245 = vst [vmem:[#allocation2] sm:$0xff] 0.0
      $region36: #{fpa_forward.10} parent=31 // pred_fallthru
        _
      %v246 = vld [vmem:[#allocation2] sm:$0xff]
      %v247 = vld [vmem:[%s219] sm:$0xf]
      %v248 = vld [vmem:[%s231] sm:$0x3]
      %vm249 = vcmask 31744
      %v251 = vsel %vm249, %v247, 0
      %vm253 = vcmask 1041408
      %v255 = vsel %vm253, %v248, 0
      %257 = vmatprep.subr.bf16.mxu0 0
      %258 = vmatpush1.bf16.msra.mxu0 %v255
      %259 = vmatprep.subr.bf16.mxu0 0
      %260 = vmatpush1.bf16.msra.mxu0 0
      %261 = vmatprep.subr.bf16.mxu0 0
      %262 = vmatpush1.bf16.msra.mxu0 0
      %263 = vmatprep.subr.bf16.mxu0 0
      %264 = vmatpush1.bf16.msra.mxu0 0
      %265 = vmatprep.subr.bf16.mxu0 0
      %266 = vmatpush1.bf16.msra.mxu0 0
      %267 = vmatprep.subr.bf16.mxu0 0
      %268 = vmatpush1.bf16.msra.mxu0 0
      %269 = vmatprep.subr.bf16.mxu0 0
      %270 = vmatpush1.bf16.msra.mxu0 0
      %271 = vmatprep.subr.bf16.mxu0 0
      %272 = vmatpush1.bf16.msra.mxu0 0
      %273 = vmatprep.subr.bf16.mxu0 0
      %274 = vmatpush1.bf16.msra.mxu0 0
      %275 = vmatprep.subr.bf16.mxu0 0
      %276 = vmatpush1.bf16.msra.mxu0 0
      %277 = vmatprep.subr.bf16.mxu0 0
      %278 = vmatpush1.bf16.msra.mxu0 0
      %279 = vmatprep.subr.bf16.mxu0 0
      %280 = vmatpush1.bf16.msra.mxu0 0
      %281 = vmatprep.subr.bf16.mxu0 0
      %282 = vmatpush1.bf16.msra.mxu0 0
      %283 = vmatprep.subr.bf16.mxu0 0
      %284 = vmatpush1.bf16.msra.mxu0 0
      %285 = vmatprep.subr.bf16.mxu0 0
      %286 = vmatpush1.bf16.msra.mxu0 0
      %287 = vmatprep.subr.bf16.mxu0 0
      %288 = vmatpush1.bf16.msra.mxu0 0
      %289 = vmatprep.mubr.bf16.mxu0 0
      %290 = vmatmul.mubr.bf16.gmra.mrb[0].mxu0 %v251
      %v291 = vpop.f32.mrb[0].mxu0
      %v292 = vadd.f32 0.0, %v291
      %v293 = vpop.f32.mrb[0].mxu0
      %v294 = vpop.f32.mrb[0].mxu0
      %v295 = vpop.f32.mrb[0].mxu0
      %296 = vdwg.mxu0
      %v297 = vadd.f32 %v246, %v292
      %298 = vst [vmem:[#allocation2] sm:$0xff] %v297
      // Predicated region
      $region37: #{fpa_forward.10} parent=31 // pred_check
        %p299 = pneg %p241
      $region38: #{fpa_forward.10} parent=31 // pred_check_branch
        %301 = sbr.rel (%p299) target = $region40
      $region39: #{fpa_forward.10} parent=31 // pred_region
        %v302 = vld [vmem:[#allocation2] sm:$0xff]
        %v303 = vld [vmem:[%s1] sm:$0xff]
        %305 = vset.pattern.permute.xlu0 0
        %306 = vperm.xlu0 %305, %v303
        %v307 = vpop.permute.xlu0 %306
        %v309 = vadd.f32 %v302, %v307
        %v310 = vmax.f32 %v309, 0.0
        %311 = vst [vmem:[%s239] sm:$0xff] %v310
      $region40: #{fpa_forward.10} parent=31 // pred_fallthru
        _
      %p312 = scmp.lt.s32.totalorder %s19, 1
      %s313 = scalar_select %p312, %s19, 1
      %p314 = scmp.lt.s32.totalorder %s20, 1
      %s315 = scalar_select %p314, %s20, 1
      %s316 = smul.addr %s313, 2
      %s317 = sadd.s32 %s315, %s316
      %s318 = smul.addr %s317, 8
      %s319 = scalar_lea.vmem %s3, %s318
      // Predicated region
      $region41: #{fpa_forward.10} parent=31 // pred_check
        %p320 = pneg %p130
      $region42: #{fpa_forward.10} parent=31 // pred_check_branch
        %322 = sbr.rel (%p320) target = $region44
      $region43: #{fpa_forward.10} parent=31 // pred_region
        _
      $region44: #{fpa_forward.10} parent=31 // pred_fallthru
        _
    $region32: #{fpa_forward.10} parent=5 // pred_fallthru
      _
    %p323 = scmp.le.s32.totalorder 2, %s9
    // Predicated region
    $region45: #{fpa_forward.10} parent=5 // pred_check
      %p324 = pneg %p323
    $region46: #{fpa_forward.10} parent=5 // pred_check_branch
      %326 = sbr.rel (%p324) target = $region48
    $region47: #{fpa_forward.10} parent=5 // pred_region
      %s327 = ssub.s32 %s9, 2
      // Predicated region
      $region49: #{fpa_forward.10} parent=47 // pred_check
        %p328 = pneg %p136
      $region50: #{fpa_forward.10} parent=47 // pred_check_branch
        %330 = sbr.rel (%p328) target = $region52
      $region51: #{fpa_forward.10} parent=47 // pred_region
        %p331 = scmp.lt.s32.totalorder %s22, 1
        %s332 = scalar_select %p331, %s22, 1
        %p333 = scmp.lt.s32.totalorder %s23, 1
        %s334 = scalar_select %p333, %s23, 1
        %s335 = smul.addr %s332, 2
        %s336 = sadd.s32 %s334, %s335
        %s337 = smul.addr %s336, 8
        %s338 = scalar_lea.vmem %s3, %s337
      $region52: #{fpa_forward.10} parent=47 // pred_fallthru
        _
    $region48: #{fpa_forward.10} parent=5 // pred_fallthru
      _
  $region6: #{fpa_forward.10} parent=0 // loop_footer
    %s13 = sadd.s32 1, %s9
  $region7: #{fpa_forward.10} parent=0 // loop_footer_branch
    %8 = sbr.rel target = $region3
  $region8: #{fpa_forward.10} parent=0 // loop_exit
    _

// kernel: fpa_forward.9
$region0: #{fpa_forward.9}
  #allocation0 [shape = 'u32[]', space=smem, size = 0x4, offset = 0x4, fixed_abs, tag = 'smem constant byte address 0x4 - core index']
  #allocation1 [shape = 'u32[144,128]{1,0:T(1,128)}', space=vmem, size = 0x12000, scoped, tag = 'internal scratch']
  %s0 = inlined_call_operand.vmem [shape: f32[8,4], index: 0, kind: input, shape index: {}]
  %s1 = inlined_call_operand.vmem [shape: f32[8,1], index: 1, kind: input, shape index: {}]
  %s2 = inlined_call_operand.vmem [shape: f32[2,4,256], index: 2, kind: input, shape index: {}]
  %s3 = inlined_call_operand.vmem [shape: f32[2,8,1], index: 3, kind: output, shape index: {}]
  %s4 = sld [smem:[#allocation0]]
  $region45: #{fpa_forward.9} parent=0
    _
  %s6 = ssub.s32 1, %s4
  %s7 = scalar_select 0, %s6, %s4
  loop: start=0, step=1, limit=4
  $region2: #{fpa_forward.9} parent=0 // loop_pre_header
    _
  $region3: #{fpa_forward.9} parent=0 // loop_header
    %s9 = sphi 0, %s13
    %p10 = scmp.ge.s32.totalorder %s9, 4
    %s17 = sphi 0, %s17
    %s19 = sphi 0, %s17
    %s20 = sphi 0, %s19
    %s34 = sphi 0, %s20
    %s38 = sphi 0, %s38
    %s40 = sphi 0, %s38
    %s41 = sphi 0, %s40
    %s55 = sphi 0, %s41
    %s61 = sphi 0, %s63
    %s64 = sphi 0, %s61
    %s65 = sphi 0, %s64
    %s81 = sphi 0, %s65
    %s87 = sphi 0, %s89
    %s90 = sphi 0, %s87
    %s91 = sphi 0, %s90
    %s107 = sphi 0, %s91
  $region4: #{fpa_forward.9} parent=0 // loop_header_branch
    %12 = sbr.rel (%p10) target = $region8
  $region5: #{fpa_forward.9} parent=0 // loop_body
    %s14 = ssub.s32 %s9, 1
    %s15 = ssub.s32 %s9, 2
    %s16 = sadd.s32 %s9, 1
    %s18 = sadd.s32 %s17, 1
    %p21 = scmp.eq.s32.totalorder %s9, 1
    %p22 = scmp.ne.s32.totalorder %s17, %s19
    %p23 = scmp.eq.s32.totalorder %s9, 0
    %p24 = por %p22, %p23
    %p25 = scmp.ne.s32.totalorder %s17, %s19
    %p26 = scmp.eq.s32.totalorder %s14, 1
    %p27 = por %p25, %p26
    %p28 = scmp.ne.s32.totalorder %s19, %s20
    %p29 = scmp.eq.s32.totalorder %s14, 0
    %p30 = por %p28, %p29
    %p31 = scmp.ne.s32.totalorder %s19, %s20
    %p32 = scmp.eq.s32.totalorder %s15, 1
    %p33 = por %p31, %p32
    %p35 = scmp.ne.s32.totalorder %s20, %s34
    %p36 = scmp.eq.s32.totalorder %s15, 0
    %p37 = por %p35, %p36
    %s39 = sadd.s32 %s38, 1
    %p42 = scmp.eq.s32.totalorder %s9, 1
    %p43 = scmp.ne.s32.totalorder %s38, %s40
    %p44 = scmp.eq.s32.totalorder %s9, 0
    %p45 = por %p43, %p44
    %p46 = scmp.ne.s32.totalorder %s38, %s40
    %p47 = scmp.eq.s32.totalorder %s14, 1
    %p48 = por %p46, %p47
    %p49 = scmp.ne.s32.totalorder %s40, %s41
    %p50 = scmp.eq.s32.totalorder %s14, 0
    %p51 = por %p49, %p50
    %p52 = scmp.ne.s32.totalorder %s40, %s41
    %p53 = scmp.eq.s32.totalorder %s15, 1
    %p54 = por %p52, %p53
    %p56 = scmp.ne.s32.totalorder %s41, %s55
    %p57 = scmp.eq.s32.totalorder %s15, 0
    %p58 = por %p56, %p57
    %s59 = ssub.s32 %s9, %s16
    %p60 = scmp.eq.s32.totalorder %s59, 0
    %s62 = sadd.s32 %s61, 1
    %s63 = scalar_select %p60, %s61, %s62
    %p66 = pneg %p60
    %p67 = scmp.eq.s32.totalorder %s9, 1
    %p68 = por %p66, %p67
    %p69 = scmp.ne.s32.totalorder %s61, %s64
    %p70 = scmp.eq.s32.totalorder %s9, 0
    %p71 = por %p69, %p70
    %p72 = scmp.ne.s32.totalorder %s61, %s64
    %p73 = scmp.eq.s32.totalorder %s14, 1
    %p74 = por %p72, %p73
    %p75 = scmp.ne.s32.totalorder %s64, %s65
    %p76 = scmp.eq.s32.totalorder %s14, 0
    %p77 = por %p75, %p76
    %p78 = scmp.ne.s32.totalorder %s64, %s65
    %p79 = scmp.eq.s32.totalorder %s15, 1
    %p80 = por %p78, %p79
    %p82 = scmp.ne.s32.totalorder %s65, %s81
    %p83 = scmp.eq.s32.totalorder %s15, 0
    %p84 = por %p82, %p83
    %s85 = ssub.s32 %s9, %s16
    %p86 = scmp.eq.s32.totalorder %s85, 0
    %s88 = sadd.s32 %s87, 1
    %s89 = scalar_select %p86, %s87, %s88
    %p92 = pneg %p86
    %p93 = scmp.eq.s32.totalorder %s9, 1
    %p94 = por %p92, %p93
    %p95 = scmp.ne.s32.totalorder %s87, %s90
    %p96 = scmp.eq.s32.totalorder %s9, 0
    %p97 = por %p95, %p96
    %p98 = scmp.ne.s32.totalorder %s87, %s90
    %p99 = scmp.eq.s32.totalorder %s14, 1
    %p100 = por %p98, %p99
    %p101 = scmp.ne.s32.totalorder %s90, %s91
    %p102 = scmp.eq.s32.totalorder %s14, 0
    %p103 = por %p101, %p102
    %p104 = scmp.ne.s32.totalorder %s90, %s91
    %p105 = scmp.eq.s32.totalorder %s15, 1
    %p106 = por %p104, %p105
    %p108 = scmp.ne.s32.totalorder %s91, %s107
    %p109 = scmp.eq.s32.totalorder %s15, 0
    %p110 = por %p108, %p109
    %p111 = scmp.le.s32.totalorder 1, %s9
    %p112 = scmp.lt.s32.totalorder %s9, 3
    %p113 = pnand %p111, %p112
    %p114 = pneg %p113
    // Predicated region
    $region9: #{fpa_forward.9} parent=5 // pred_check
      _
    $region10: #{fpa_forward.9} parent=5 // pred_check_branch
      %116 = sbr.rel (%p113) target = $region12
    $region11: #{fpa_forward.9} parent=5 // pred_region
      %s117 = ssub.s32 %s9, 1
      // Predicated region
      $region13: #{fpa_forward.9} parent=11 // pred_check
        %p118 = pneg %p30
      $region14: #{fpa_forward.9} parent=11 // pred_check_branch
        %120 = sbr.rel (%p118) target = $region16
      $region15: #{fpa_forward.9} parent=11 // pred_region
        _
      $region16: #{fpa_forward.9} parent=11 // pred_fallthru
        _
      // Predicated region
      $region17: #{fpa_forward.9} parent=11 // pred_check
        %p121 = pneg %p51
      $region18: #{fpa_forward.9} parent=11 // pred_check_branch
        %123 = sbr.rel (%p121) target = $region20
      $region19: #{fpa_forward.9} parent=11 // pred_region
        _
      $region20: #{fpa_forward.9} parent=11 // pred_fallthru
        _
    $region12: #{fpa_forward.9} parent=5 // pred_fallthru
      _
    %p124 = scmp.lt.s32.totalorder %s9, 2
    // Predicated region
    $region21: #{fpa_forward.9} parent=5 // pred_check
      %p125 = pneg %p124
    $region22: #{fpa_forward.9} parent=5 // pred_check_branch
      %127 = sbr.rel (%p125) target = $region24
    $region23: #{fpa_forward.9} parent=5 // pred_region
      // Predicated region
      $region25: #{fpa_forward.9} parent=23 // pred_check
        %p128 = pneg %p71
      $region26: #{fpa_forward.9} parent=23 // pred_check_branch
        %130 = sbr.rel (%p128) target = $region28
      $region27: #{fpa_forward.9} parent=23 // pred_region
        %p131 = scmp.lt.s32.totalorder %s9, 1
        %s132 = scalar_select %p131, %s9, 1
        %s133 = smul.addr %s132, 2
        %s134 = smul.addr %s133, 4
        %s135 = scalar_lea.vmem %s2, %s134
      $region28: #{fpa_forward.9} parent=23 // pred_fallthru
        _
    $region24: #{fpa_forward.9} parent=5 // pred_fallthru
      _
    %p136 = scmp.le.s32.totalorder 1, %s9
    %p137 = scmp.lt.s32.totalorder %s9, 3
    %p138 = pnand %p136, %p137
    %p139 = pneg %p138
    // Predicated region
    $region29: #{fpa_forward.9} parent=5 // pred_check
      _
    $region30: #{fpa_forward.9} parent=5 // pred_check_branch
      %141 = sbr.rel (%p138) target = $region32
    $region31: #{fpa_forward.9} parent=5 // pred_region
      %s142 = ssub.s32 %s9, 1
      %p143 = pneg %p30
      %p144 = pneg %p27
      %p145 = pneg %p51
      %p146 = pneg %p48
      %p147 = scmp.lt.s32.totalorder %s14, 1
      %s148 = scalar_select %p147, %s14, 1
      %s149 = smul.addr %s148, 2
      %s150 = smul.addr %s149, 4
      %s151 = scalar_lea.vmem %s2, %s150
      %p152 = pneg %p77
      %p153 = pneg %p74
      %p154 = pneg %p103
      %p155 = pneg %p100
      %p156 = scmp.lt.s32.totalorder %s14, 1
      %s157 = scalar_select %p156, %s14, 1
      %s158 = smul.addr %s157, 8
      %s159 = scalar_lea.vmem %s3, %s158
      %p160 = scmp.lt.s32.totalorder %s14, 1
      %s161 = scalar_select %p160, %s14, 1
      %s162 = smul.addr %s161, 2
      %s163 = smul.addr %s162, 4
      %s164 = scalar_lea.vmem %s2, %s163
      %p165 = scmp.lt.s32.totalorder %s14, 1
      %s166 = scalar_select %p165, %s14, 1
      %s167 = smul.addr %s166, 8
      %s168 = scalar_lea.vmem %s3, %s167
      %v169 = vld [vmem:[%s164] sm:$0xff]
      %v171 = vcombine.high %v169, %v169
      %vm173 = vcmask 1043456
      %v174 = vsel %vm173, %v169, 0.0
      %v175 = vsel %vm173, %v171, 0.0
      %v176 = vadd.f32 %v174, %v175
      %177 = vadd.xlane.f32.xlu0 %v176
      %v178 = vpop.xlane.xlu0 %177
      %v179 = vmul.f32 %v178, 0.00390625
      %v180 = vld [vmem:[%s0] sm:$0xff]
      %v181 = vld [vmem:[%s1] sm:$0xff]
      %vm182 = vcmask 31744
      %v184 = vsel %vm182, %v180, 0
      %v187 = vsel %vm173, %v179, 0
      %189 = vmatprep.subr.mxu0 0.0
      %190 = vmatpush1.msra.mxu0 %v187
      %191 = vmatprep.subr.mxu0 0.0
      %192 = vmatpush1.msra.mxu0 0.0
      %193 = vmatprep.subr.mxu0 0.0
      %194 = vmatpush1.msra.mxu0 0.0
      %195 = vmatprep.subr.mxu0 0.0
      %196 = vmatpush1.msra.mxu0 0.0
      %197 = vmatprep.subr.mxu0 0.0
      %198 = vmatpush1.msra.mxu0 0.0
      %199 = vmatprep.subr.mxu0 0.0
      %200 = vmatpush1.msra.mxu0 0.0
      %201 = vmatprep.subr.mxu0 0.0
      %202 = vmatpush1.msra.mxu0 0.0
      %203 = vmatprep.subr.mxu0 0.0
      %204 = vmatpush1.msra.mxu0 0.0
      %205 = vmatprep.subr.mxu0 0.0
      %206 = vmatpush1.msra.mxu0 0.0
      %207 = vmatprep.subr.mxu0 0.0
      %208 = vmatpush1.msra.mxu0 0.0
      %209 = vmatprep.subr.mxu0 0.0
      %210 = vmatpush1.msra.mxu0 0.0
      %211 = vmatprep.subr.mxu0 0.0
      %212 = vmatpush1.msra.mxu0 0.0
      %213 = vmatprep.subr.mxu0 0.0
      %214 = vmatpush1.msra.mxu0 0.0
      %215 = vmatprep.subr.mxu0 0.0
      %216 = vmatpush1.msra.mxu0 0.0
      %217 = vmatprep.subr.mxu0 0.0
      %218 = vmatpush1.msra.mxu0 0.0
      %219 = vmatprep.subr.mxu0 0.0
      %220 = vmatpush1.msra.mxu0 0.0
      %221 = vmatprep.subr.mxu0 0.0
      %222 = vmatpush1.msra.mxu0 0.0
      %223 = vmatprep.subr.mxu0 0.0
      %224 = vmatpush1.msra.mxu0 0.0
      %225 = vmatprep.subr.mxu0 0.0
      %226 = vmatpush1.msra.mxu0 0.0
      %227 = vmatprep.subr.mxu0 0.0
      %228 = vmatpush1.msra.mxu0 0.0
      %229 = vmatprep.subr.mxu0 0.0
      %230 = vmatpush1.msra.mxu0 0.0
      %231 = vmatprep.subr.mxu0 0.0
      %232 = vmatpush1.msra.mxu0 0.0
      %233 = vmatprep.subr.mxu0 0.0
      %234 = vmatpush1.msra.mxu0 0.0
      %235 = vmatprep.subr.mxu0 0.0
      %236 = vmatpush1.msra.mxu0 0.0
      %237 = vmatprep.subr.mxu0 0.0
      %238 = vmatpush1.msra.mxu0 0.0
      %239 = vmatprep.subr.mxu0 0.0
      %240 = vmatpush1.msra.mxu0 0.0
      %241 = vmatprep.subr.mxu0 0.0
      %242 = vmatpush1.msra.mxu0 0.0
      %243 = vmatprep.subr.mxu0 0.0
      %244 = vmatpush1.msra.mxu0 0.0
      %245 = vmatprep.subr.mxu0 0.0
      %246 = vmatpush1.msra.mxu0 0.0
      %247 = vmatprep.subr.mxu0 0.0
      %248 = vmatpush1.msra.mxu0 0.0
      %249 = vmatprep.subr.mxu0 0.0
      %250 = vmatpush1.msra.mxu0 0.0
      %251 = vmatprep.subr.mxu0 0.0
      %252 = vmatpush1.msra.mxu0 0.0
      %253 = vmatprep.mubr.f32.mxu0 0.0
      %254 = vmatmul.mubr.f32.gmra.mrb[0].mxu0 %v184
      %v255 = vpop.f32.mrb[0].mxu0
      %v256 = vadd.f32 %v181, %v255
      %v257 = vpop.f32.mrb[0].mxu0
      %258 = vdwg.mxu0
      %v259 = vmax.f32 %v256, 0.0
      %vm260 = vcmask 7168
      %261 = vst.msk [vmem:[%s168] sm:$0xff] %vm260, %v259
      %p262 = scmp.lt.s32.totalorder %s14, 1
      %s263 = scalar_select %p262, %s14, 1
      %s264 = smul.addr %s263, 8
      %s265 = scalar_lea.vmem %s3, %s264
      // Predicated region
      $region33: #{fpa_forward.9} parent=31 // pred_check
        %p266 = pneg %p100
      $region34: #{fpa_forward.9} parent=31 // pred_check_branch
        %268 = sbr.rel (%p266) target = $region36
      $region35: #{fpa_forward.9} parent=31 // pred_region
        _
      $region36: #{fpa_forward.9} parent=31 // pred_fallthru
        _
    $region32: #{fpa_forward.9} parent=5 // pred_fallthru
      _
    %p269 = scmp.le.s32.totalorder 2, %s9
    // Predicated region
    $region37: #{fpa_forward.9} parent=5 // pred_check
      %p270 = pneg %p269
    $region38: #{fpa_forward.9} parent=5 // pred_check_branch
      %272 = sbr.rel (%p270) target = $region40
    $region39: #{fpa_forward.9} parent=5 // pred_region
      %s273 = ssub.s32 %s9, 2
      // Predicated region
      $region41: #{fpa_forward.9} parent=39 // pred_check
        %p274 = pneg %p106
      $region42: #{fpa_forward.9} parent=39 // pred_check_branch
        %276 = sbr.rel (%p274) target = $region44
      $region43: #{fpa_forward.9} parent=39 // pred_region
        %p277 = scmp.lt.s32.totalorder %s15, 1
        %s278 = scalar_select %p277, %s15, 1
        %s279 = smul.addr %s278, 8
        %s280 = scalar_lea.vmem %s3, %s279
      $region44: #{fpa_forward.9} parent=39 // pred_fallthru
        _
    $region40: #{fpa_forward.9} parent=5 // pred_fallthru
      _
  $region6: #{fpa_forward.9} parent=0 // loop_footer
    %s13 = sadd.s32 1, %s9
  $region7: #{fpa_forward.9} parent=0 // loop_footer_branch
    %8 = sbr.rel target = $region3
  $region8: #{fpa_forward.9} parent=0 // loop_exit
    _

// kernel: fpa_forward.17
$region0: #{fpa_forward.17}
  #allocation0 [shape = 'u32[]', space=smem, size = 0x4, offset = 0x4, fixed_abs, tag = 'smem constant byte address 0x4 - core index']
  #allocation1 [shape = 'u32[144,128]{1,0:T(1,128)}', space=vmem, size = 0x12000, scoped, tag = 'internal scratch']
  %s0 = inlined_call_operand.vmem [shape: f32[2,8,8], index: 0, kind: input, shape index: {}]
  %s1 = inlined_call_operand.vmem [shape: f32[2,4,4], index: 1, kind: input, shape index: {}]
  %s2 = inlined_call_operand.vmem [shape: f32[2,2,2], index: 2, kind: input, shape index: {}]
  %s3 = inlined_call_operand.vmem [shape: f32[16,8], index: 3, kind: input, shape index: {}]
  %s4 = inlined_call_operand.vmem [shape: f32[8,16], index: 4, kind: input, shape index: {}]
  %s5 = inlined_call_operand.vmem [shape: f32[16,4], index: 5, kind: input, shape index: {}]
  %s6 = inlined_call_operand.vmem [shape: f32[4,16], index: 6, kind: input, shape index: {}]
  %s7 = inlined_call_operand.vmem [shape: f32[16,2], index: 7, kind: input, shape index: {}]
  %s8 = inlined_call_operand.vmem [shape: f32[2,16], index: 8, kind: input, shape index: {}]
  %s9 = inlined_call_operand.vmem [shape: f32[2,8,16,16], index: 9, kind: input, shape index: {}]
  %s10 = inlined_call_operand.vmem [shape: f32[2,8,1], index: 10, kind: input, shape index: {}]
  %s11 = inlined_call_operand.hbm [shape: f32[2,8,16,16], index: 11, kind: output, shape index: {}]
  %s12 = sld [smem:[#allocation0]]
  $region115: #{fpa_forward.17} parent=0
    _
  %s14 = ssub.s32 1, %s12
  %s15 = scalar_select 0, %s14, %s12
  $region1: #{fpa_forward.17} parent=0
    #allocation2 [shape = 'u8[65536]{0}', space=vmem, size = 0x10000, scoped, tag = 'input window, operand 9']
    #allocation3 [shape = 'u8[65536]{0}', space=vmem, size = 0x10000, scoped, tag = 'output window, operand 0']
    #allocation4 [shape = 's32[2]{0}', space=sflag, size = 0x8, scoped, tag = 'scoped memory for fpa_forward.17']
    %16 = vsyncpa [#allocation4], 0
    %s17 = scalar_lea.sflag [#allocation4], 1
    %18 = vsyncpa %s17, 0
    loop: start=0, step=1, limit=6
    $region2: #{fpa_forward.17} parent=1 // loop_pre_header
      _
    $region3: #{fpa_forward.17} parent=1 // loop_header
      %s20 = sphi 0, %s24
      %p21 = scmp.ge.s32.totalorder %s20, 6
      %s27 = sphi 0, %s39
      %s28 = sphi 0, %s35
      %s29 = sphi 0, %s27
      %s30 = sphi 0, %s28
      %s31 = sphi 0, %s29
      %s32 = sphi 0, %s30
      %s42 = sphi 0, %s44
      %s45 = sphi 0, %s42
      %s46 = sphi 0, %s45
      %s62 = sphi 0, %s46
      %s68 = sphi 0, %s70
      %s71 = sphi 0, %s68
      %s72 = sphi 0, %s71
      %s88 = sphi 0, %s72
      %s94 = sphi 0, %s96
      %s97 = sphi 0, %s94
      %s98 = sphi 0, %s97
      %s114 = sphi 0, %s98
      %s120 = sphi 0, %s122
      %s123 = sphi 0, %s120
      %s124 = sphi 0, %s123
      %s140 = sphi 0, %s124
      %s144 = sphi 0, %s144
      %s146 = sphi 0, %s144
      %s147 = sphi 0, %s146
      %s161 = sphi 0, %s147
      %s167 = sphi 0, %s169
      %s170 = sphi 0, %s167
      %s171 = sphi 0, %s170
      %s187 = sphi 0, %s171
      %s191 = sphi 0, %s191
      %s193 = sphi 0, %s191
      %s194 = sphi 0, %s193
      %s208 = sphi 0, %s194
      %s214 = sphi 0, %s216
      %s217 = sphi 0, %s214
      %s218 = sphi 0, %s217
      %s234 = sphi 0, %s218
      %s238 = sphi 0, %s238
      %s240 = sphi 0, %s238
      %s241 = sphi 0, %s240
      %s255 = sphi 0, %s241
      %s263 = sphi 0, %s265
      %s266 = sphi 0, %s263
      %s267 = sphi 0, %s266
      %s283 = sphi 0, %s267
      %s289 = sphi 0, %s291
      %s292 = sphi 0, %s289
      %s293 = sphi 0, %s292
      %s309 = sphi 0, %s293
      %s317 = sphi 0, %s319
      %s320 = sphi 0, %s317
      %s321 = sphi 0, %s320
      %s337 = sphi 0, %s321
    $region4: #{fpa_forward.17} parent=1 // loop_header_branch
      %23 = sbr.rel (%p21) target = $region8
    $region5: #{fpa_forward.17} parent=1 // loop_body
      %s25 = ssub.s32 %s20, 1
      %s26 = ssub.s32 %s20, 2
      %s33 = sadd.s32 1, %s28
      %p34 = scmp.ge.s32.totalorder %s33, 2
      %s35 = scalar_select %p34, 0, %s33
      %s36 = sadd.s32 1, %s27
      %s37 = scalar_select %p34, %s36, %s27
      %p38 = scmp.ge.s32.totalorder %s37, 2
      %s39 = scalar_select %p38, 0, %s37
      %s40 = ssub.s32 %s27, %s39
      %p41 = scmp.eq.s32.totalorder %s40, 0
      %s43 = sadd.s32 %s42, 1
      %s44 = scalar_select %p41, %s42, %s43
      %p47 = pneg %p41
      %p48 = scmp.eq.s32.totalorder %s20, 3
      %p49 = por %p47, %p48
      %p50 = scmp.ne.s32.totalorder %s42, %s45
      %p51 = scmp.eq.s32.totalorder %s20, 0
      %p52 = por %p50, %p51
      %p53 = scmp.ne.s32.totalorder %s42, %s45
      %p54 = scmp.eq.s32.totalorder %s25, 3
      %p55 = por %p53, %p54
      %p56 = scmp.ne.s32.totalorder %s45, %s46
      %p57 = scmp.eq.s32.totalorder %s25, 0
      %p58 = por %p56, %p57
      %p59 = scmp.ne.s32.totalorder %s45, %s46
      %p60 = scmp.eq.s32.totalorder %s26, 3
      %p61 = por %p59, %p60
      %p63 = scmp.ne.s32.totalorder %s46, %s62
      %p64 = scmp.eq.s32.totalorder %s26, 0
      %p65 = por %p63, %p64
      %s66 = ssub.s32 %s27, %s39
      %p67 = scmp.eq.s32.totalorder %s66, 0
      %s69 = sadd.s32 %s68, 1
      %s70 = scalar_select %p67, %s68, %s69
      %p73 = pneg %p67
      %p74 = scmp.eq.s32.totalorder %s20, 3
      %p75 = por %p73, %p74
      %p76 = scmp.ne.s32.totalorder %s68, %s71
      %p77 = scmp.eq.s32.totalorder %s20, 0
      %p78 = por %p76, %p77
      %p79 = scmp.ne.s32.totalorder %s68, %s71
      %p80 = scmp.eq.s32.totalorder %s25, 3
      %p81 = por %p79, %p80
      %p82 = scmp.ne.s32.totalorder %s71, %s72
      %p83 = scmp.eq.s32.totalorder %s25, 0
      %p84 = por %p82, %p83
      %p85 = scmp.ne.s32.totalorder %s71, %s72
      %p86 = scmp.eq.s32.totalorder %s26, 3
      %p87 = por %p85, %p86
      %p89 = scmp.ne.s32.totalorder %s72, %s88
      %p90 = scmp.eq.s32.totalorder %s26, 0
      %p91 = por %p89, %p90
      %s92 = ssub.s32 %s27, %s39
      %p93 = scmp.eq.s32.totalorder %s92, 0
      %s95 = sadd.s32 %s94, 1
      %s96 = scalar_select %p93, %s94, %s95
      %p99 = pneg %p93
      %p100 = scmp.eq.s32.totalorder %s20, 3
      %p101 = por %p99, %p100
      %p102 = scmp.ne.s32.totalorder %s94, %s97
      %p103 = scmp.eq.s32.totalorder %s20, 0
      %p104 = por %p102, %p103
      %p105 = scmp.ne.s32.totalorder %s94, %s97
      %p106 = scmp.eq.s32.totalorder %s25, 3
      %p107 = por %p105, %p106
      %p108 = scmp.ne.s32.totalorder %s97, %s98
      %p109 = scmp.eq.s32.totalorder %s25, 0
      %p110 = por %p108, %p109
      %p111 = scmp.ne.s32.totalorder %s97, %s98
      %p112 = scmp.eq.s32.totalorder %s26, 3
      %p113 = por %p111, %p112
      %p115 = scmp.ne.s32.totalorder %s98, %s114
      %p116 = scmp.eq.s32.totalorder %s26, 0
      %p117 = por %p115, %p116
      %s118 = ssub.s32 %s28, %s35
      %p119 = scmp.eq.s32.totalorder %s118, 0
      %s121 = sadd.s32 %s120, 1
      %s122 = scalar_select %p119, %s120, %s121
      %p125 = pneg %p119
      %p126 = scmp.eq.s32.totalorder %s20, 3
      %p127 = por %p125, %p126
      %p128 = scmp.ne.s32.totalorder %s120, %s123
      %p129 = scmp.eq.s32.totalorder %s20, 0
      %p130 = por %p128, %p129
      %p131 = scmp.ne.s32.totalorder %s120, %s123
      %p132 = scmp.eq.s32.totalorder %s25, 3
      %p133 = por %p131, %p132
      %p134 = scmp.ne.s32.totalorder %s123, %s124
      %p135 = scmp.eq.s32.totalorder %s25, 0
      %p136 = por %p134, %p135
      %p137 = scmp.ne.s32.totalorder %s123, %s124
      %p138 = scmp.eq.s32.totalorder %s26, 3
      %p139 = por %p137, %p138
      %p141 = scmp.ne.s32.totalorder %s124, %s140
      %p142 = scmp.eq.s32.totalorder %s26, 0
      %p143 = por %p141, %p142
      %s145 = sadd.s32 %s144, 1
      %p148 = scmp.eq.s32.totalorder %s20, 3
      %p149 = scmp.ne.s32.totalorder %s144, %s146
      %p150 = scmp.eq.s32.totalorder %s20, 0
      %p151 = por %p149, %p150
      %p152 = scmp.ne.s32.totalorder %s144, %s146
      %p153 = scmp.eq.s32.totalorder %s25, 3
      %p154 = por %p152, %p153
      %p155 = scmp.ne.s32.totalorder %s146, %s147
      %p156 = scmp.eq.s32.totalorder %s25, 0
      %p157 = por %p155, %p156
      %p158 = scmp.ne.s32.totalorder %s146, %s147
      %p159 = scmp.eq.s32.totalorder %s26, 3
      %p160 = por %p158, %p159
      %p162 = scmp.ne.s32.totalorder %s147, %s161
      %p163 = scmp.eq.s32.totalorder %s26, 0
      %p164 = por %p162, %p163
      %s165 = ssub.s32 %s28, %s35
      %p166 = scmp.eq.s32.totalorder %s165, 0
      %s168 = sadd.s32 %s167, 1
      %s169 = scalar_select %p166, %s167, %s168
      %p172 = pneg %p166
      %p173 = scmp.eq.s32.totalorder %s20, 3
      %p174 = por %p172, %p173
      %p175 = scmp.ne.s32.totalorder %s167, %s170
      %p176 = scmp.eq.s32.totalorder %s20, 0
      %p177 = por %p175, %p176
      %p178 = scmp.ne.s32.totalorder %s167, %s170
      %p179 = scmp.eq.s32.totalorder %s25, 3
      %p180 = por %p178, %p179
      %p181 = scmp.ne.s32.totalorder %s170, %s171
      %p182 = scmp.eq.s32.totalorder %s25, 0
      %p183 = por %p181, %p182
      %p184 = scmp.ne.s32.totalorder %s170, %s171
      %p185 = scmp.eq.s32.totalorder %s26, 3
      %p186 = por %p184, %p185
      %p188 = scmp.ne.s32.totalorder %s171, %s187
      %p189 = scmp.eq.s32.totalorder %s26, 0
      %p190 = por %p188, %p189
      %s192 = sadd.s32 %s191, 1
      %p195 = scmp.eq.s32.totalorder %s20, 3
      %p196 = scmp.ne.s32.totalorder %s191, %s193
      %p197 = scmp.eq.s32.totalorder %s20, 0
      %p198 = por %p196, %p197
      %p199 = scmp.ne.s32.totalorder %s191, %s193
      %p200 = scmp.eq.s32.totalorder %s25, 3
      %p201 = por %p199, %p200
      %p202 = scmp.ne.s32.totalorder %s193, %s194
      %p203 = scmp.eq.s32.totalorder %s25, 0
      %p204 = por %p202, %p203
      %p205 = scmp.ne.s32.totalorder %s193, %s194
      %p206 = scmp.eq.s32.totalorder %s26, 3
      %p207 = por %p205, %p206
      %p209 = scmp.ne.s32.totalorder %s194, %s208
      %p210 = scmp.eq.s32.totalorder %s26, 0
      %p211 = por %p209, %p210
      %s212 = ssub.s32 %s28, %s35
      %p213 = scmp.eq.s32.totalorder %s212, 0
      %s215 = sadd.s32 %s214, 1
      %s216 = scalar_select %p213, %s214, %s215
      %p219 = pneg %p213
      %p220 = scmp.eq.s32.totalorder %s20, 3
      %p221 = por %p219, %p220
      %p222 = scmp.ne.s32.totalorder %s214, %s217
      %p223 = scmp.eq.s32.totalorder %s20, 0
      %p224 = por %p222, %p223
      %p225 = scmp.ne.s32.totalorder %s214, %s217
      %p226 = scmp.eq.s32.totalorder %s25, 3
      %p227 = por %p225, %p226
      %p228 = scmp.ne.s32.totalorder %s217, %s218
      %p229 = scmp.eq.s32.totalorder %s25, 0
      %p230 = por %p228, %p229
      %p231 = scmp.ne.s32.totalorder %s217, %s218
      %p232 = scmp.eq.s32.totalorder %s26, 3
      %p233 = por %p231, %p232
      %p235 = scmp.ne.s32.totalorder %s218, %s234
      %p236 = scmp.eq.s32.totalorder %s26, 0
      %p237 = por %p235, %p236
      %s239 = sadd.s32 %s238, 1
      %p242 = scmp.eq.s32.totalorder %s20, 3
      %p243 = scmp.ne.s32.totalorder %s238, %s240
      %p244 = scmp.eq.s32.totalorder %s20, 0
      %p245 = por %p243, %p244
      %p246 = scmp.ne.s32.totalorder %s238, %s240
      %p247 = scmp.eq.s32.totalorder %s25, 3
      %p248 = por %p246, %p247
      %p249 = scmp.ne.s32.totalorder %s240, %s241
      %p250 = scmp.eq.s32.totalorder %s25, 0
      %p251 = por %p249, %p250
      %p252 = scmp.ne.s32.totalorder %s240, %s241
      %p253 = scmp.eq.s32.totalorder %s26, 3
      %p254 = por %p252, %p253
      %p256 = scmp.ne.s32.totalorder %s241, %s255
      %p257 = scmp.eq.s32.totalorder %s26, 0
      %p258 = por %p256, %p257
      %s259 = ssub.s32 %s27, %s39
      %s260 = ssub.s32 %s28, %s35
      %s261 = sor.u32 %s259, %s260
      %p262 = scmp.eq.s32.totalorder %s261, 0
      %s264 = sadd.s32 %s263, 1
      %s265 = scalar_select %p262, %s263, %s264
      %p268 = pneg %p262
      %p269 = scmp.eq.s32.totalorder %s20, 3
      %p270 = por %p268, %p269
      %p271 = scmp.ne.s32.totalorder %s263, %s266
      %p272 = scmp.eq.s32.totalorder %s20, 0
      %p273 = por %p271, %p272
      %p274 = scmp.ne.s32.totalorder %s263, %s266
      %p275 = scmp.eq.s32.totalorder %s25, 3
      %p276 = por %p274, %p275
      %p277 = scmp.ne.s32.totalorder %s266, %s267
      %p278 = scmp.eq.s32.totalorder %s25, 0
      %p279 = por %p277, %p278
      %p280 = scmp.ne.s32.totalorder %s266, %s267
      %p281 = scmp.eq.s32.totalorder %s26, 3
      %p282 = por %p280, %p281
      %p284 = scmp.ne.s32.totalorder %s267, %s283
      %p285 = scmp.eq.s32.totalorder %s26, 0
      %p286 = por %p284, %p285
      %s287 = ssub.s32 %s27, %s39
      %p288 = scmp.eq.s32.totalorder %s287, 0
      %s290 = sadd.s32 %s289, 1
      %s291 = scalar_select %p288, %s289, %s290
      %p294 = pneg %p288
      %p295 = scmp.eq.s32.totalorder %s20, 3
      %p296 = por %p294, %p295
      %p297 = scmp.ne.s32.totalorder %s289, %s292
      %p298 = scmp.eq.s32.totalorder %s20, 0
      %p299 = por %p297, %p298
      %p300 = scmp.ne.s32.totalorder %s289, %s292
      %p301 = scmp.eq.s32.totalorder %s25, 3
      %p302 = por %p300, %p301
      %p303 = scmp.ne.s32.totalorder %s292, %s293
      %p304 = scmp.eq.s32.totalorder %s25, 0
      %p305 = por %p303, %p304
      %p306 = scmp.ne.s32.totalorder %s292, %s293
      %p307 = scmp.eq.s32.totalorder %s26, 3
      %p308 = por %p306, %p307
      %p310 = scmp.ne.s32.totalorder %s293, %s309
      %p311 = scmp.eq.s32.totalorder %s26, 0
      %p312 = por %p310, %p311
      %s313 = ssub.s32 %s27, %s39
      %s314 = ssub.s32 %s28, %s35
      %s315 = sor.u32 %s313, %s314
      %p316 = scmp.eq.s32.totalorder %s315, 0
      %s318 = sadd.s32 %s317, 1
      %s319 = scalar_select %p316, %s317, %s318
      %p322 = pneg %p316
      %p323 = scmp.eq.s32.totalorder %s20, 3
      %p324 = por %p322, %p323
      %p325 = scmp.ne.s32.totalorder %s317, %s320
      %p326 = scmp.eq.s32.totalorder %s20, 0
      %p327 = por %p325, %p326
      %p328 = scmp.ne.s32.totalorder %s317, %s320
      %p329 = scmp.eq.s32.totalorder %s25, 3
      %p330 = por %p328, %p329
      %p331 = scmp.ne.s32.totalorder %s320, %s321
      %p332 = scmp.eq.s32.totalorder %s25, 0
      %p333 = por %p331, %p332
      %p334 = scmp.ne.s32.totalorder %s320, %s321
      %p335 = scmp.eq.s32.totalorder %s26, 3
      %p336 = por %p334, %p335
      %p338 = scmp.ne.s32.totalorder %s321, %s337
      %p339 = scmp.eq.s32.totalorder %s26, 0
      %p340 = por %p338, %p339
      %p341 = scmp.le.s32.totalorder 1, %s20
      %p342 = scmp.lt.s32.totalorder %s20, 5
      %p343 = pnand %p341, %p342
      %p344 = pneg %p343
      // Predicated region
      $region9: #{fpa_forward.17} parent=5 // pred_check
        _
      $region10: #{fpa_forward.17} parent=5 // pred_check_branch
        %346 = sbr.rel (%p343) target = $region12
      $region11: #{fpa_forward.17} parent=5 // pred_region
        %s347 = ssub.s32 %s20, 1
        // Predicated region
        $region13: #{fpa_forward.17} parent=11 // pred_check
          %p348 = pneg %p157
        $region14: #{fpa_forward.17} parent=11 // pred_check_branch
          %350 = sbr.rel (%p348) target = $region16
        $region15: #{fpa_forward.17} parent=11 // pred_region
          _
        $region16: #{fpa_forward.17} parent=11 // pred_fallthru
          _
        // Predicated region
        $region17: #{fpa_forward.17} parent=11 // pred_check
          %p351 = pneg %p204
        $region18: #{fpa_forward.17} parent=11 // pred_check_branch
          %353 = sbr.rel (%p351) target = $region20
        $region19: #{fpa_forward.17} parent=11 // pred_region
          _
        $region20: #{fpa_forward.17} parent=11 // pred_fallthru
          _
        // Predicated region
        $region21: #{fpa_forward.17} parent=11 // pred_check
          %p354 = pneg %p251
        $region22: #{fpa_forward.17} parent=11 // pred_check_branch
          %356 = sbr.rel (%p354) target = $region24
        $region23: #{fpa_forward.17} parent=11 // pred_region
          _
        $region24: #{fpa_forward.17} parent=11 // pred_fallthru
          _
      $region12: #{fpa_forward.17} parent=5 // pred_fallthru
        _
      %p357 = scmp.lt.s32.totalorder %s20, 4
      // Predicated region
      $region25: #{fpa_forward.17} parent=5 // pred_check
        %p358 = pneg %p357
      $region26: #{fpa_forward.17} parent=5 // pred_check_branch
        %360 = sbr.rel (%p358) target = $region28
      $region27: #{fpa_forward.17} parent=5 // pred_region
        // Predicated region
        $region29: #{fpa_forward.17} parent=27 // pred_check
          %p361 = pneg %p52
        $region30: #{fpa_forward.17} parent=27 // pred_check_branch
          %363 = sbr.rel (%p361) target = $region32
        $region31: #{fpa_forward.17} parent=27 // pred_region
          %p364 = scmp.lt.s32.totalorder %s27, 1
          %s365 = scalar_select %p364, %s27, 1
          %s366 = smul.addr %s365, 8
          %s367 = scalar_lea.vmem %s0, %s366
        $region32: #{fpa_forward.17} parent=27 // pred_fallthru
          _
        // Predicated region
        $region33: #{fpa_forward.17} parent=27 // pred_check
          %p368 = pneg %p78
        $region34: #{fpa_forward.17} parent=27 // pred_check_branch
          %370 = sbr.rel (%p368) target = $region36
        $region35: #{fpa_forward.17} parent=27 // pred_region
          %p371 = scmp.lt.s32.totalorder %s27, 1
          %s372 = scalar_select %p371, %s27, 1
          %s373 = smul.addr %s372, 4
          %s374 = scalar_lea.vmem %s1, %s373
        $region36: #{fpa_forward.17} parent=27 // pred_fallthru
          _
        // Predicated region
        $region37: #{fpa_forward.17} parent=27 // pred_check
          %p375 = pneg %p104
        $region38: #{fpa_forward.17} parent=27 // pred_check_branch
          %377 = sbr.rel (%p375) target = $region40
        $region39: #{fpa_forward.17} parent=27 // pred_region
          %p378 = scmp.lt.s32.totalorder %s27, 1
          %s379 = scalar_select %p378, %s27, 1
          %s380 = smul.addr %s379, 2
          %s381 = scalar_lea.vmem %s2, %s380
        $region40: #{fpa_forward.17} parent=27 // pred_fallthru
          _
        // Predicated region
        $region41: #{fpa_forward.17} parent=27 // pred_check
          %p382 = pneg %p130
        $region42: #{fpa_forward.17} parent=27 // pred_check_branch
          %384 = sbr.rel (%p382) target = $region44
        $region43: #{fpa_forward.17} parent=27 // pred_region
          %p385 = scmp.lt.s32.totalorder %s28, 1
          %s386 = scalar_select %p385, %s28, 1
          %s387 = smul.addr %s386, 8
          %s388 = scalar_lea.vmem %s3, %s387
        $region44: #{fpa_forward.17} parent=27 // pred_fallthru
          _
        // Predicated region
        $region45: #{fpa_forward.17} parent=27 // pred_check
          %p389 = pneg %p177
        $region46: #{fpa_forward.17} parent=27 // pred_check_branch
          %391 = sbr.rel (%p389) target = $region48
        $region47: #{fpa_forward.17} parent=27 // pred_region
          %p392 = scmp.lt.s32.totalorder %s28, 1
          %s393 = scalar_select %p392, %s28, 1
          %s394 = smul.addr %s393, 8
          %s395 = scalar_lea.vmem %s5, %s394
        $region48: #{fpa_forward.17} parent=27 // pred_fallthru
          _
        // Predicated region
        $region49: #{fpa_forward.17} parent=27 // pred_check
          %p396 = pneg %p224
        $region50: #{fpa_forward.17} parent=27 // pred_check_branch
          %398 = sbr.rel (%p396) target = $region52
        $region51: #{fpa_forward.17} parent=27 // pred_region
          %p399 = scmp.lt.s32.totalorder %s28, 1
          %s400 = scalar_select %p399, %s28, 1
          %s401 = smul.addr %s400, 8
          %s402 = scalar_lea.vmem %s7, %s401
        $region52: #{fpa_forward.17} parent=27 // pred_fallthru
          _
        // Predicated region
        $region53: #{fpa_forward.17} parent=27 // pred_check
          %p403 = pneg %p273
        $region54: #{fpa_forward.17} parent=27 // pred_check_branch
          %405 = sbr.rel (%p403) target = $region56
        $region55: #{fpa_forward.17} parent=27 // pred_region
          %s406 = sand.u32 %s263, 1
          %s407 = sand.u32 %s263, 1
          %s408 = smul.addr %s407, 64
          %s409 = scalar_lea.vmem [#allocation2], %s408
          %s410 = smul.addr %s27, 16
          %s411 = sadd.s32 %s28, %s410
          %s412 = smul.addr %s411, 8
          %s413 = scalar_lea.vmem %s9, %s412
          // Predicated region
          $region57: #{fpa_forward.17} parent=55 // pred_check
            _
          $region58: #{fpa_forward.17} parent=55 // pred_check_branch
            %415 = sbr.rel (0) target = $region60
          $region59: #{fpa_forward.17} parent=55 // pred_region
            // Predicated region
            $region61: #{fpa_forward.17} parent=59 // pred_check
              _
            $region62: #{fpa_forward.17} parent=59 // pred_check_branch
              %417 = sbr.rel (0) target = $region64
            $region63: #{fpa_forward.17} parent=59 // pred_region
              // Predicated region
              $region76: #{fpa_forward.17} parent=63 // pred_check
                _
              $region77: #{fpa_forward.17} parent=63 // pred_check_branch
                %446 = sbr.rel (0) target = $region79
              $region78: #{fpa_forward.17} parent=63 // pred_region
                loop: start=0, step=1, limit=1
                $region80: #{fpa_forward.17} parent=78 // loop_pre_header
                  _
                $region81: #{fpa_forward.17} parent=78 // loop_header
                  %s448 = sphi 0, %s452
                  %p449 = scmp.ge.s32.totalorder %s448, 1
                  %s453 = sphi %s413, %s413
                  %s454 = sphi %s409, %s409
                $region82: #{fpa_forward.17} parent=78 // loop_header_branch
                  %451 = sbr.rel (%p449) target = $region86
                $region83: #{fpa_forward.17} parent=78 // loop_body
                  %v455 = vld [vmem:[%s453] sm:$0xff]
                  %456 = vst [vmem:[%s454] sm:$0xff] %v455
                  %v457 = vld [vmem:[%s453 + $0x10] sm:$0xff]
                  %458 = vst [vmem:[%s454 + $0x8] sm:$0xff] %v457
                  %v459 = vld [vmem:[%s453 + $0x20] sm:$0xff]
                  %460 = vst [vmem:[%s454 + $0x10] sm:$0xff] %v459
                  %v461 = vld [vmem:[%s453 + $0x30] sm:$0xff]
                  %462 = vst [vmem:[%s454 + $0x18] sm:$0xff] %v461
                  %v463 = vld [vmem:[%s453 + $0x40] sm:$0xff]
                  %464 = vst [vmem:[%s454 + $0x20] sm:$0xff] %v463
                  %v465 = vld [vmem:[%s453 + $0x50] sm:$0xff]
                  %466 = vst [vmem:[%s454 + $0x28] sm:$0xff] %v465
                  %v467 = vld [vmem:[%s453 + $0x60] sm:$0xff]
                  %468 = vst [vmem:[%s454 + $0x30] sm:$0xff] %v467
                  %v469 = vld [vmem:[%s453 + $0x70] sm:$0xff]
                  %470 = vst [vmem:[%s454 + $0x38] sm:$0xff] %v469
                $region84: #{fpa_forward.17} parent=78 // loop_footer
                  %s452 = sadd.s32 1, %s448
                $region85: #{fpa_forward.17} parent=78 // loop_footer_branch
                  %447 = sbr.rel target = $region81
                $region86: #{fpa_forward.17} parent=78 // loop_exit
                  _
              $region79: #{fpa_forward.17} parent=63 // pred_fallthru
                _
              // Predicated region
              $region87: #{fpa_forward.17} parent=63 // pred_check
                _
              $region88: #{fpa_forward.17} parent=63 // pred_check_branch
                %472 = sbr.rel target = $region90
              $region89: #{fpa_forward.17} parent=63 // pred_region
                _
              $region90: #{fpa_forward.17} parent=63 // pred_fallthru
                _
            $region64: #{fpa_forward.17} parent=59 // pred_fallthru
              _
            // Predicated region
            $region65: #{fpa_forward.17} parent=59 // pred_check
              _
            $region66: #{fpa_forward.17} parent=59 // pred_check_branch
              %419 = sbr.rel target = $region68
            $region67: #{fpa_forward.17} parent=59 // pred_region
              loop: start=0, step=1, limit=1
              $region69: #{fpa_forward.17} parent=67 // loop_pre_header
                _
              $region70: #{fpa_forward.17} parent=67 // loop_header
                %s422 = sphi 0, %s426
                %p423 = scmp.ge.s32.totalorder %s422, 1
                %s427 = sphi %s413, %s413
                %s428 = sphi %s409, %s409
              $region71: #{fpa_forward.17} parent=67 // loop_header_branch
                %425 = sbr.rel (%p423) target = $region75
              $region72: #{fpa_forward.17} parent=67 // loop_body
                %v429 = vld [vmem:[%s427] sm:$0xff]
                %430 = vst [vmem:[%s428] sm:$0xff] %v429
                %v431 = vld [vmem:[%s427 + $0x10] sm:$0xff]
                %432 = vst [vmem:[%s428 + $0x8] sm:$0xff] %v431
                %v433 = vld [vmem:[%s427 + $0x20] sm:$0xff]
                %434 = vst [vmem:[%s428 + $0x10] sm:$0xff] %v433
                %v435 = vld [vmem:[%s427 + $0x30] sm:$0xff]
                %436 = vst [vmem:[%s428 + $0x18] sm:$0xff] %v435
                %v437 = vld [vmem:[%s427 + $0x40] sm:$0xff]
                %438 = vst [vmem:[%s428 + $0x20] sm:$0xff] %v437
                %v439 = vld [vmem:[%s427 + $0x50] sm:$0xff]
                %440 = vst [vmem:[%s428 + $0x28] sm:$0xff] %v439
                %v441 = vld [vmem:[%s427 + $0x60] sm:$0xff]
                %442 = vst [vmem:[%s428 + $0x30] sm:$0xff] %v441
                %v443 = vld [vmem:[%s427 + $0x70] sm:$0xff]
                %444 = vst [vmem:[%s428 + $0x38] sm:$0xff] %v443
              $region73: #{fpa_forward.17} parent=67 // loop_footer
                %s426 = sadd.s32 1, %s422
              $region74: #{fpa_forward.17} parent=67 // loop_footer_branch
                %421 = sbr.rel target = $region70
              $region75: #{fpa_forward.17} parent=67 // loop_exit
                _
            $region68: #{fpa_forward.17} parent=59 // pred_fallthru
              _
          $region60: #{fpa_forward.17} parent=55 // pred_fallthru
            _
          %473 = vnop
        $region56: #{fpa_forward.17} parent=27 // pred_fallthru
          _
        // Predicated region
        $region91: #{fpa_forward.17} parent=27 // pred_check
          %p474 = pneg %p299
        $region92: #{fpa_forward.17} parent=27 // pred_check_branch
          %476 = sbr.rel (%p474) target = $region94
        $region93: #{fpa_forward.17} parent=27 // pred_region
          %p477 = scmp.lt.s32.totalorder %s27, 1
          %s478 = scalar_select %p477, %s27, 1
          %s479 = smul.addr %s478, 8
          %s480 = scalar_lea.vmem %s10, %s479
        $region94: #{fpa_forward.17} parent=27 // pred_fallthru
          _
      $region28: #{fpa_forward.17} parent=5 // pred_fallthru
        _
      %p481 = scmp.le.s32.totalorder 1, %s20
      %p482 = scmp.lt.s32.totalorder %s20, 5
      %p483 = pnand %p481, %p482
      %p484 = pneg %p483
      // Predicated region
      $region95: #{fpa_forward.17} parent=5 // pred_check
        _
      $region96: #{fpa_forward.17} parent=5 // pred_check_branch
        %486 = sbr.rel (%p483) target = $region98
      $region97: #{fpa_forward.17} parent=5 // pred_region
        %s487 = ssub.s32 %s20, 1
        %s488 = sand.u32 %s266, 1
        %s489 = sand.u32 %s266, 1
        %s490 = smul.addr %s489, 64
        %s491 = scalar_lea.vmem [#allocation2], %s490
        // Predicated region
        $region99: #{fpa_forward.17} parent=97 // pred_check
          %p492 = pneg %p279
        $region100: #{fpa_forward.17} parent=97 // pred_check_branch
          %494 = sbr.rel (%p492) target = $region102
        $region101: #{fpa_forward.17} parent=97 // pred_region
          _
        $region102: #{fpa_forward.17} parent=97 // pred_fallthru
          _
        %p495 = scmp.lt.s32.totalorder %s29, 1
        %s496 = scalar_select %p495, %s29, 1
        %s497 = smul.addr %s496, 8
        %s498 = scalar_lea.vmem %s0, %s497
        %p499 = pneg %p58
        %p500 = pneg %p55
        %p501 = scmp.lt.s32.totalorder %s29, 1
        %s502 = scalar_select %p501, %s29, 1
        %s503 = smul.addr %s502, 4
        %s504 = scalar_lea.vmem %s1, %s503
        %p505 = pneg %p84
        %p506 = pneg %p81
        %p507 = scmp.lt.s32.totalorder %s29, 1
        %s508 = scalar_select %p507, %s29, 1
        %s509 = smul.addr %s508, 2
        %s510 = scalar_lea.vmem %s2, %s509
        %p511 = pneg %p110
        %p512 = pneg %p107
        %p513 = scmp.lt.s32.totalorder %s30, 1
        %s514 = scalar_select %p513, %s30, 1
        %s515 = smul.addr %s514, 8
        %s516 = scalar_lea.vmem %s3, %s515
        %p517 = pneg %p136
        %p518 = pneg %p133
        %p519 = pneg %p157
        %p520 = pneg %p154
        %p521 = scmp.lt.s32.totalorder %s30, 1
        %s522 = scalar_select %p521, %s30, 1
        %s523 = smul.addr %s522, 8
        %s524 = scalar_lea.vmem %s5, %s523
        %p525 = pneg %p183
        %p526 = pneg %p180
        %p527 = pneg %p204
        %p528 = pneg %p201
        %p529 = scmp.lt.s32.totalorder %s30, 1
        %s530 = scalar_select %p529, %s30, 1
        %s531 = smul.addr %s530, 8
        %s532 = scalar_lea.vmem %s7, %s531
        %p533 = pneg %p230
        %p534 = pneg %p227
        %p535 = pneg %p251
        %p536 = pneg %p248
        %s537 = sand.u32 %s266, 1
        %s538 = sand.u32 %s266, 1
        %s539 = smul.addr %s538, 64
        %s540 = scalar_lea.vmem [#allocation2], %s539
        %p541 = pneg %p279
        %p542 = pneg %p276
        %p543 = scmp.lt.s32.totalorder %s29, 1
        %s544 = scalar_select %p543, %s29, 1
        %s545 = smul.addr %s544, 8
        %s546 = scalar_lea.vmem %s10, %s545
        %p547 = pneg %p305
        %p548 = pneg %p302
        %p549 = pneg %p333
        %p550 = pneg %p330
        %s551 = sand.u32 %s320, 1
        %s552 = scalar_lea.sflag [#allocation4], %s551
        %s553 = sand.u32 %s320, 1
        %s554 = smul.addr %s553, 64
        %s555 = scalar_lea.vmem [#allocation3], %s554
        %p556 = scmp.lt.s32.totalorder %s29, 1
        %s557 = scalar_select %p556, %s29, 1
        %s558 = smul.addr %s557, 8
        %s559 = scalar_lea.vmem %s0, %s558
        %p560 = scmp.lt.s32.totalorder %s29, 1
        %s561 = scalar_select %p560, %s29, 1
        %s562 = smul.addr %s561, 4
        %s563 = scalar_lea.vmem %s1, %s562
        %p564 = scmp.lt.s32.totalorder %s29, 1
        %s565 = scalar_select %p564, %s29, 1
        %s566 = smul.addr %s565, 2
        %s567 = scalar_lea.vmem %s2, %s566
        %p568 = scmp.lt.s32.totalorder %s30, 1
        %s569 = scalar_select %p568, %s30, 1
        %s570 = smul.addr %s569, 8
        %s571 = scalar_lea.vmem %s3, %s570
        %p572 = scmp.lt.s32.totalorder %s30, 1
        %s573 = scalar_select %p572, %s30, 1
        %s574 = smul.addr %s573, 8
        %s575 = scalar_lea.vmem %s5, %s574
        %p576 = scmp.lt.s32.totalorder %s30, 1
        %s577 = scalar_select %p576, %s30, 1
        %s578 = smul.addr %s577, 8
        %s579 = scalar_lea.vmem %s7, %s578
        %p580 = scmp.lt.s32.totalorder %s29, 1
        %s581 = scalar_select %p580, %s29, 1
        %s582 = smul.addr %s581, 8
        %s583 = scalar_lea.vmem %s10, %s582
        %v584 = vld [vmem:[%s571] sm:$0xff]
        %v585 = vld [vmem:[%s559] sm:$0xff]
        %vm586 = vcmask 64512
        %v588 = vsel %vm586, %v584, 0
        %590 = vmatprep.subr.mxu0 0.0
        %591 = vmatpush1.msra.mxu0 %v585
        %592 = vmatprep.subr.mxu0 0.0
        %593 = vmatpush1.msra.mxu0 0.0
        %594 = vmatprep.subr.mxu0 0.0
        %595 = vmatpush1.msra.mxu0 0.0
        %596 = vmatprep.subr.mxu0 0.0
        %597 = vmatpush1.msra.mxu0 0.0
        %598 = vmatprep.subr.mxu0 0.0
        %599 = vmatpush1.msra.mxu0 0.0
        %600 = vmatprep.subr.mxu0 0.0
        %601 = vmatpush1.msra.mxu0 0.0
        %602 = vmatprep.subr.mxu0 0.0
        %603 = vmatpush1.msra.mxu0 0.0
        %604 = vmatprep.subr.mxu0 0.0
        %605 = vmatpush1.msra.mxu0 0.0
        %606 = vmatprep.subr.mxu0 0.0
        %607 = vmatpush1.msra.mxu0 0.0
        %608 = vmatprep.subr.mxu0 0.0
        %609 = vmatpush1.msra.mxu0 0.0
        %610 = vmatprep.subr.mxu0 0.0
        %611 = vmatpush1.msra.mxu0 0.0
        %612 = vmatprep.subr.mxu0 0.0
        %613 = vmatpush1.msra.mxu0 0.0
        %614 = vmatprep.subr.mxu0 0.0
        %615 = vmatpush1.msra.mxu0 0.0
        %616 = vmatprep.subr.mxu0 0.0
        %617 = vmatpush1.msra.mxu0 0.0
        %618 = vmatprep.subr.mxu0 0.0
        %619 = vmatpush1.msra.mxu0 0.0
        %620 = vmatprep.subr.mxu0 0.0
        %621 = vmatpush1.msra.mxu0 0.0
        %622 = vmatprep.subr.mxu0 0.0
        %623 = vmatpush1.msra.mxu0 0.0
        %624 = vmatprep.subr.mxu0 0.0
        %625 = vmatpush1.msra.mxu0 0.0
        %626 = vmatprep.subr.mxu0 0.0
        %627 = vmatpush1.msra.mxu0 0.0
        %628 = vmatprep.subr.mxu0 0.0
        %629 = vmatpush1.msra.mxu0 0.0
        %630 = vmatprep.subr.mxu0 0.0
        %631 = vmatpush1.msra.mxu0 0.0
        %632 = vmatprep.subr.mxu0 0.0
        %633 = vmatpush1.msra.mxu0 0.0
        %634 = vmatprep.subr.mxu0 0.0
        %635 = vmatpush1.msra.mxu0 0.0
        %636 = vmatprep.subr.mxu0 0.0
        %637 = vmatpush1.msra.mxu0 0.0
        %638 = vmatprep.subr.mxu0 0.0
        %639 = vmatpush1.msra.mxu0 0.0
        %640 = vmatprep.subr.mxu0 0.0
        %641 = vmatpush1.msra.mxu0 0.0
        %642 = vmatprep.subr.mxu0 0.0
        %643 = vmatpush1.msra.mxu0 0.0
        %644 = vmatprep.subr.mxu0 0.0
        %645 = vmatpush1.msra.mxu0 0.0
        %646 = vmatprep.subr.mxu0 0.0
        %647 = vmatpush1.msra.mxu0 0.0
        %648 = vmatprep.subr.mxu0 0.0
        %649 = vmatpush1.msra.mxu0 0.0
        %650 = vmatprep.subr.mxu0 0.0
        %651 = vmatpush1.msra.mxu0 0.0
        %652 = vmatprep.subr.mxu0 0.0
        %653 = vmatpush1.msra.mxu0 0.0
        %654 = vmatprep.mubr.f32.mxu0 0.0
        %655 = vmatmul.mubr.f32.gmra.mrb[0].mxu0 %v588
        %v656 = vpop.f32.mrb[0].mxu0
        %v657 = vadd.f32 0.0, %v656
        %v658 = vpop.f32.mrb[0].mxu0
        %659 = vdwg.mxu0
        %v660 = vld [vmem:[%s4] sm:$0xff]
        %v661 = vld [vmem:[%s575] sm:$0xff]
        %v662 = vld [vmem:[%s563] sm:$0xf]
        %vm663 = vcmask 31744
        %v665 = vsel %vm663, %v661, 0
        %vm667 = vcmask 1043456
        %v669 = vsel %vm667, %v662, 0
        %671 = vmatprep.subr.mxu0 0.0
        %672 = vmatpush1.msra.mxu0 %v669
        %673 = vmatprep.subr.mxu0 0.0
        %674 = vmatpush1.msra.mxu0 0.0
        %675 = vmatprep.subr.mxu0 0.0
        %676 = vmatpush1.msra.mxu0 0.0
        %677 = vmatprep.subr.mxu0 0.0
        %678 = vmatpush1.msra.mxu0 0.0
        %679 = vmatprep.subr.mxu0 0.0
        %680 = vmatpush1.msra.mxu0 0.0
        %681 = vmatprep.subr.mxu0 0.0
        %682 = vmatpush1.msra.mxu0 0.0
        %683 = vmatprep.subr.mxu0 0.0
        %684 = vmatpush1.msra.mxu0 0.0
        %685 = vmatprep.subr.mxu0 0.0
        %686 = vmatpush1.msra.mxu0 0.0
        %687 = vmatprep.subr.mxu0 0.0
        %688 = vmatpush1.msra.mxu0 0.0
        %689 = vmatprep.subr.mxu0 0.0
        %690 = vmatpush1.msra.mxu0 0.0
        %691 = vmatprep.subr.mxu0 0.0
        %692 = vmatpush1.msra.mxu0 0.0
        %693 = vmatprep.subr.mxu0 0.0
        %694 = vmatpush1.msra.mxu0 0.0
        %695 = vmatprep.subr.mxu0 0.0
        %696 = vmatpush1.msra.mxu0 0.0
        %697 = vmatprep.subr.mxu0 0.0
        %698 = vmatpush1.msra.mxu0 0.0
        %699 = vmatprep.subr.mxu0 0.0
        %700 = vmatpush1.msra.mxu0 0.0
        %701 = vmatprep.subr.mxu0 0.0
        %702 = vmatpush1.msra.mxu0 0.0
        %703 = vmatprep.subr.mxu0 0.0
        %704 = vmatpush1.msra.mxu0 0.0
        %705 = vmatprep.subr.mxu0 0.0
        %706 = vmatpush1.msra.mxu0 0.0
        %707 = vmatprep.subr.mxu0 0.0
        %708 = vmatpush1.msra.mxu0 0.0
        %709 = vmatprep.subr.mxu0 0.0
        %710 = vmatpush1.msra.mxu0 0.0
        %711 = vmatprep.subr.mxu0 0.0
        %712 = vmatpush1.msra.mxu0 0.0
        %713 = vmatprep.subr.mxu0 0.0
        %714 = vmatpush1.msra.mxu0 0.0
        %715 = vmatprep.subr.mxu0 0.0
        %716 = vmatpush1.msra.mxu0 0.0
        %717 = vmatprep.subr.mxu0 0.0
        %718 = vmatpush1.msra.mxu0 0.0
        %719 = vmatprep.subr.mxu0 0.0
        %720 = vmatpush1.msra.mxu0 0.0
        %721 = vmatprep.subr.mxu0 0.0
        %722 = vmatpush1.msra.mxu0 0.0
        %723 = vmatprep.subr.mxu0 0.0
        %724 = vmatpush1.msra.mxu0 0.0
        %725 = vmatprep.subr.mxu0 0.0
        %726 = vmatpush1.msra.mxu0 0.0
        %727 = vmatprep.subr.mxu0 0.0
        %728 = vmatpush1.msra.mxu0 0.0
        %729 = vmatprep.subr.mxu0 0.0
        %730 = vmatpush1.msra.mxu0 0.0
        %731 = vmatprep.subr.mxu0 0.0
        %732 = vmatpush1.msra.mxu0 0.0
        %733 = vmatprep.subr.mxu0 0.0
        %734 = vmatpush1.msra.mxu0 0.0
        %735 = vmatprep.mubr.f32.mxu0 0.0
        %736 = vmatmul.mubr.f32.gmra.mrb[0].mxu0 %v665
        %v737 = vpop.f32.mrb[0].mxu0
        %v738 = vadd.f32 0.0, %v737
        %v739 = vpop.f32.mrb[0].mxu0
        %740 = vdwg.mxu0
        %v741 = vld [vmem:[%s6] sm:$0xf]
        %v743 = vsel %vm663, %v738, 0
        %v746 = vsel %vm667, %v741, 0
        %748 = vmatprep.subr.mxu0 0.0
        %749 = vmatpush1.msra.mxu0 %v746
        %750 = vmatprep.subr.mxu0 0.0
        %751 = vmatpush1.msra.mxu0 0.0
        %752 = vmatprep.subr.mxu0 0.0
        %753 = vmatpush1.msra.mxu0 0.0
        %754 = vmatprep.subr.mxu0 0.0
        %755 = vmatpush1.msra.mxu0 0.0
        %756 = vmatprep.subr.mxu0 0.0
        %757 = vmatpush1.msra.mxu0 0.0
        %758 = vmatprep.subr.mxu0 0.0
        %759 = vmatpush1.msra.mxu0 0.0
        %760 = vmatprep.subr.mxu0 0.0
        %761 = vmatpush1.msra.mxu0 0.0
        %762 = vmatprep.subr.mxu0 0.0
        %763 = vmatpush1.msra.mxu0 0.0
        %764 = vmatprep.subr.mxu0 0.0
        %765 = vmatpush1.msra.mxu0 0.0
        %766 = vmatprep.subr.mxu0 0.0
        %767 = vmatpush1.msra.mxu0 0.0
        %768 = vmatprep.subr.mxu0 0.0
        %769 = vmatpush1.msra.mxu0 0.0
        %770 = vmatprep.subr.mxu0 0.0
        %771 = vmatpush1.msra.mxu0 0.0
        %772 = vmatprep.subr.mxu0 0.0
        %773 = vmatpush1.msra.mxu0 0.0
        %774 = vmatprep.subr.mxu0 0.0
        %775 = vmatpush1.msra.mxu0 0.0
        %776 = vmatprep.subr.mxu0 0.0
        %777 = vmatpush1.msra.mxu0 0.0
        %778 = vmatprep.subr.mxu0 0.0
        %779 = vmatpush1.msra.mxu0 0.0
        %780 = vmatprep.subr.mxu0 0.0
        %781 = vmatpush1.msra.mxu0 0.0
        %782 = vmatprep.subr.mxu0 0.0
        %783 = vmatpush1.msra.mxu0 0.0
        %784 = vmatprep.subr.mxu0 0.0
        %785 = vmatpush1.msra.mxu0 0.0
        %786 = vmatprep.subr.mxu0 0.0
        %787 = vmatpush1.msra.mxu0 0.0
        %788 = vmatprep.subr.mxu0 0.0
        %789 = vmatpush1.msra.mxu0 0.0
        %790 = vmatprep.subr.mxu0 0.0
        %791 = vmatpush1.msra.mxu0 0.0
        %792 = vmatprep.subr.mxu0 0.0
        %793 = vmatpush1.msra.mxu0 0.0
        %794 = vmatprep.subr.mxu0 0.0
        %795 = vmatpush1.msra.mxu0 0.0
        %796 = vmatprep.subr.mxu0 0.0
        %797 = vmatpush1.msra.mxu0 0.0
        %798 = vmatprep.subr.mxu0 0.0
        %799 = vmatpush1.msra.mxu0 0.0
        %800 = vmatprep.subr.mxu0 0.0
        %801 = vmatpush1.msra.mxu0 0.0
        %802 = vmatprep.subr.mxu0 0.0
        %803 = vmatpush1.msra.mxu0 0.0
        %804 = vmatprep.subr.mxu0 0.0
        %805 = vmatpush1.msra.mxu0 0.0
        %806 = vmatprep.subr.mxu0 0.0
        %807 = vmatpush1.msra.mxu0 0.0
        %808 = vmatprep.subr.mxu0 0.0
        %809 = vmatpush1.msra.mxu0 0.0
        %810 = vmatprep.subr.mxu0 0.0
        %811 = vmatpush1.msra.mxu0 0.0
        %812 = vmatprep.mubr.f32.mxu0 0.0
        %813 = vmatmul.mubr.f32.gmra.mrb[0].mxu0 %v743
        %v814 = vpop.f32.mrb[0].mxu0
        %v815 = vadd.f32 0.0, %v814
        %v816 = vpop.f32.mrb[0].mxu0
        %817 = vdwg.mxu0
        %v819 = vsel %vm586, %v657, 0
        %821 = vmatprep.subr.mxu0 0.0
        %822 = vmatpush1.msra.mxu0 %v660
        %823 = vmatprep.subr.mxu0 0.0
        %824 = vmatpush1.msra.mxu0 0.0
        %825 = vmatprep.subr.mxu0 0.0
        %826 = vmatpush1.msra.mxu0 0.0
        %827 = vmatprep.subr.mxu0 0.0
        %828 = vmatpush1.msra.mxu0 0.0
        %829 = vmatprep.subr.mxu0 0.0
        %830 = vmatpush1.msra.mxu0 0.0
        %831 = vmatprep.subr.mxu0 0.0
        %832 = vmatpush1.msra.mxu0 0.0
        %833 = vmatprep.subr.mxu0 0.0
        %834 = vmatpush1.msra.mxu0 0.0
        %835 = vmatprep.subr.mxu0 0.0
        %836 = vmatpush1.msra.mxu0 0.0
        %837 = vmatprep.subr.mxu0 0.0
        %838 = vmatpush1.msra.mxu0 0.0
        %839 = vmatprep.subr.mxu0 0.0
        %840 = vmatpush1.msra.mxu0 0.0
        %841 = vmatprep.subr.mxu0 0.0
        %842 = vmatpush1.msra.mxu0 0.0
        %843 = vmatprep.subr.mxu0 0.0
        %844 = vmatpush1.msra.mxu0 0.0
        %845 = vmatprep.subr.mxu0 0.0
        %846 = vmatpush1.msra.mxu0 0.0
        %847 = vmatprep.subr.mxu0 0.0
        %848 = vmatpush1.msra.mxu0 0.0
        %849 = vmatprep.subr.mxu0 0.0
        %850 = vmatpush1.msra.mxu0 0.0
        %851 = vmatprep.subr.mxu0 0.0
        %852 = vmatpush1.msra.mxu0 0.0
        %853 = vmatprep.subr.mxu0 0.0
        %854 = vmatpush1.msra.mxu0 0.0
        %855 = vmatprep.subr.mxu0 0.0
        %856 = vmatpush1.msra.mxu0 0.0
        %857 = vmatprep.subr.mxu0 0.0
        %858 = vmatpush1.msra.mxu0 0.0
        %859 = vmatprep.subr.mxu0 0.0
        %860 = vmatpush1.msra.mxu0 0.0
        %861 = vmatprep.subr.mxu0 0.0
        %862 = vmatpush1.msra.mxu0 0.0
        %863 = vmatprep.subr.mxu0 0.0
        %864 = vmatpush1.msra.mxu0 0.0
        %865 = vmatprep.subr.mxu0 0.0
        %866 = vmatpush1.msra.mxu0 0.0
        %867 = vmatprep.subr.mxu0 0.0
        %868 = vmatpush1.msra.mxu0 0.0
        %869 = vmatprep.subr.mxu0 0.0
        %870 = vmatpush1.msra.mxu0 0.0
        %871 = vmatprep.subr.mxu0 0.0
        %872 = vmatpush1.msra.mxu0 0.0
        %873 = vmatprep.subr.mxu0 0.0
        %874 = vmatpush1.msra.mxu0 0.0
        %875 = vmatprep.subr.mxu0 0.0
        %876 = vmatpush1.msra.mxu0 0.0
        %877 = vmatprep.subr.mxu0 0.0
        %878 = vmatpush1.msra.mxu0 0.0
        %879 = vmatprep.subr.mxu0 0.0
        %880 = vmatpush1.msra.mxu0 0.0
        %881 = vmatprep.subr.mxu0 0.0
        %882 = vmatpush1.msra.mxu0 0.0
        %883 = vmatprep.subr.mxu0 0.0
        %884 = vmatpush1.msra.mxu0 0.0
        %885 = vmatprep.mubr.f32.mxu0 0.0
        %886 = vmatmul.mubr.f32.gmra.mrb[0].mxu0 %v819
        %v887 = vpop.f32.mrb[0].mxu0
        %v888 = vadd.f32 %v815, %v887
        %v889 = vpop.f32.mrb[0].mxu0
        %890 = vdwg.mxu0
        %v891 = vld [vmem:[%s579] sm:$0xff]
        %v892 = vld [vmem:[%s567] sm:$0x3]
        %vm893 = vcmask 15360
        %v895 = vsel %vm893, %v891, 0
        %vm897 = vcmask 1041408
        %v899 = vsel %vm897, %v892, 0
        %901 = vmatprep.subr.mxu0 0.0
        %902 = vmatpush1.msra.mxu0 %v899
        %903 = vmatprep.subr.mxu0 0.0
        %904 = vmatpush1.msra.mxu0 0.0
        %905 = vmatprep.subr.mxu0 0.0
        %906 = vmatpush1.msra.mxu0 0.0
        %907 = vmatprep.subr.mxu0 0.0
        %908 = vmatpush1.msra.mxu0 0.0
        %909 = vmatprep.subr.mxu0 0.0
        %910 = vmatpush1.msra.mxu0 0.0
        %911 = vmatprep.subr.mxu0 0.0
        %912 = vmatpush1.msra.mxu0 0.0
        %913 = vmatprep.subr.mxu0 0.0
        %914 = vmatpush1.msra.mxu0 0.0
        %915 = vmatprep.subr.mxu0 0.0
        %916 = vmatpush1.msra.mxu0 0.0
        %917 = vmatprep.subr.mxu0 0.0
        %918 = vmatpush1.msra.mxu0 0.0
        %919 = vmatprep.subr.mxu0 0.0
        %920 = vmatpush1.msra.mxu0 0.0
        %921 = vmatprep.subr.mxu0 0.0
        %922 = vmatpush1.msra.mxu0 0.0
        %923 = vmatprep.subr.mxu0 0.0
        %924 = vmatpush1.msra.mxu0 0.0
        %925 = vmatprep.subr.mxu0 0.0
        %926 = vmatpush1.msra.mxu0 0.0
        %927 = vmatprep.subr.mxu0 0.0
        %928 = vmatpush1.msra.mxu0 0.0
        %929 = vmatprep.subr.mxu0 0.0
        %930 = vmatpush1.msra.mxu0 0.0
        %931 = vmatprep.subr.mxu0 0.0
        %932 = vmatpush1.msra.mxu0 0.0
        %933 = vmatprep.subr.mxu0 0.0
        %934 = vmatpush1.msra.mxu0 0.0
        %935 = vmatprep.subr.mxu0 0.0
        %936 = vmatpush1.msra.mxu0 0.0
        %937 = vmatprep.subr.mxu0 0.0
        %938 = vmatpush1.msra.mxu0 0.0
        %939 = vmatprep.subr.mxu0 0.0
        %940 = vmatpush1.msra.mxu0 0.0
        %941 = vmatprep.subr.mxu0 0.0
        %942 = vmatpush1.msra.mxu0 0.0
        %943 = vmatprep.subr.mxu0 0.0
        %944 = vmatpush1.msra.mxu0 0.0
        %945 = vmatprep.subr.mxu0 0.0
        %946 = vmatpush1.msra.mxu0 0.0
        %947 = vmatprep.subr.mxu0 0.0
        %948 = vmatpush1.msra.mxu0 0.0
        %949 = vmatprep.subr.mxu0 0.0
        %950 = vmatpush1.msra.mxu0 0.0
        %951 = vmatprep.subr.mxu0 0.0
        %952 = vmatpush1.msra.mxu0 0.0
        %953 = vmatprep.subr.mxu0 0.0
        %954 = vmatpush1.msra.mxu0 0.0
        %955 = vmatprep.subr.mxu0 0.0
        %956 = vmatpush1.msra.mxu0 0.0
        %957 = vmatprep.subr.mxu0 0.0
        %958 = vmatpush1.msra.mxu0 0.0
        %959 = vmatprep.subr.mxu0 0.0
        %960 = vmatpush1.msra.mxu0 0.0
        %961 = vmatprep.subr.mxu0 0.0
        %962 = vmatpush1.msra.mxu0 0.0
        %963 = vmatprep.subr.mxu0 0.0
        %964 = vmatpush1.msra.mxu0 0.0
        %965 = vmatprep.mubr.f32.mxu0 0.0
        %966 = vmatmul.mubr.f32.gmra.mrb[0].mxu0 %v895
        %v967 = vpop.f32.mrb[0].mxu0
        %v968 = vadd.f32 0.0, %v967
        %v969 = vpop.f32.mrb[0].mxu0
        %970 = vdwg.mxu0
        %v971 = vld [vmem:[%s8] sm:$0x3]
        %v973 = vsel %vm893, %v968, 0
        %v976 = vsel %vm897, %v971, 0
        %978 = vmatprep.subr.mxu0 0.0
        %979 = vmatpush1.msra.mxu0 %v976
        %980 = vmatprep.subr.mxu0 0.0
        %981 = vmatpush1.msra.mxu0 0.0
        %982 = vmatprep.subr.mxu0 0.0
        %983 = vmatpush1.msra.mxu0 0.0
        %984 = vmatprep.subr.mxu0 0.0
        %985 = vmatpush1.msra.mxu0 0.0
        %986 = vmatprep.subr.mxu0 0.0
        %987 = vmatpush1.msra.mxu0 0.0
        %988 = vmatprep.subr.mxu0 0.0
        %989 = vmatpush1.msra.mxu0 0.0
        %990 = vmatprep.subr.mxu0 0.0
        %991 = vmatpush1.msra.mxu0 0.0
        %992 = vmatprep.subr.mxu0 0.0
        %993 = vmatpush1.msra.mxu0 0.0
        %994 = vmatprep.subr.mxu0 0.0
        %995 = vmatpush1.msra.mxu0 0.0
        %996 = vmatprep.subr.mxu0 0.0
        %997 = vmatpush1.msra.mxu0 0.0
        %998 = vmatprep.subr.mxu0 0.0
        %999 = vmatpush1.msra.mxu0 0.0
        %1000 = vmatprep.subr.mxu0 0.0
        %1001 = vmatpush1.msra.mxu0 0.0
        %1002 = vmatprep.subr.mxu0 0.0
        %1003 = vmatpush1.msra.mxu0 0.0
        %1004 = vmatprep.subr.mxu0 0.0
        %1005 = vmatpush1.msra.mxu0 0.0
        %1006 = vmatprep.subr.mxu0 0.0
        %1007 = vmatpush1.msra.mxu0 0.0
        %1008 = vmatprep.subr.mxu0 0.0
        %1009 = vmatpush1.msra.mxu0 0.0
        %1010 = vmatprep.subr.mxu0 0.0
        %1011 = vmatpush1.msra.mxu0 0.0
        %1012 = vmatprep.subr.mxu0 0.0
        %1013 = vmatpush1.msra.mxu0 0.0
        %1014 = vmatprep.subr.mxu0 0.0
        %1015 = vmatpush1.msra.mxu0 0.0
        %1016 = vmatprep.subr.mxu0 0.0
        %1017 = vmatpush1.msra.mxu0 0.0
        %1018 = vmatprep.subr.mxu0 0.0
        %1019 = vmatpush1.msra.mxu0 0.0
        %1020 = vmatprep.subr.mxu0 0.0
        %1021 = vmatpush1.msra.mxu0 0.0
        %1022 = vmatprep.subr.mxu0 0.0
        %1023 = vmatpush1.msra.mxu0 0.0
        %1024 = vmatprep.subr.mxu0 0.0
        %1025 = vmatpush1.msra.mxu0 0.0
        %1026 = vmatprep.subr.mxu0 0.0
        %1027 = vmatpush1.msra.mxu0 0.0
        %1028 = vmatprep.subr.mxu0 0.0
        %1029 = vmatpush1.msra.mxu0 0.0
        %1030 = vmatprep.subr.mxu0 0.0
        %1031 = vmatpush1.msra.mxu0 0.0
        %1032 = vmatprep.subr.mxu0 0.0
        %1033 = vmatpush1.msra.mxu0 0.0
        %1034 = vmatprep.subr.mxu0 0.0
        %1035 = vmatpush1.msra.mxu0 0.0
        %1036 = vmatprep.subr.mxu0 0.0
        %1037 = vmatpush1.msra.mxu0 0.0
        %1038 = vmatprep.subr.mxu0 0.0
        %1039 = vmatpush1.msra.mxu0 0.0
        %1040 = vmatprep.subr.mxu0 0.0
        %1041 = vmatpush1.msra.mxu0 0.0
        %1042 = vmatprep.mubr.f32.mxu0 0.0
        %1043 = vmatmul.mubr.f32.gmra.mrb[0].mxu0 %v973
        %v1044 = vpop.f32.mrb[0].mxu0
        %v1045 = vadd.f32 0.0, %v1044
        %v1046 = vpop.f32.mrb[0].mxu0
        %1047 = vdwg.mxu0
        %v1048 = vadd.f32 %v888, %v1045
        %v1049 = vxor.u32 %v1048, 2147483648
        %v1050 = vmul.f32 %v1049, 1.442695
        %v1051 = vpow.pop %v1050
        %v1052 = vadd.f32 %v1051, 1.0
        %v1053 = vrcp.pop %v1052
        %v1054 = vmul.f32 1.0, %v1053
        %v1055 = vld [vmem:[%s491] sm:$0xff]
        %v1056 = vld [vmem:[%s491 + $0x8] sm:$0xff]
        %v1057 = vld [vmem:[%s491 + $0x10] sm:$0xff]
        %v1058 = vld [vmem:[%s491 + $0x18] sm:$0xff]
        %v1059 = vld [vmem:[%s491 + $0x20] sm:$0xff]
        %v1060 = vld [vmem:[%s491 + $0x28] sm:$0xff]
        %v1061 = vld [vmem:[%s491 + $0x30] sm:$0xff]
        %v1062 = vld [vmem:[%s491 + $0x38] sm:$0xff]
        %v1063 = vmul.f32 %v1054, %v1055
        %v1064 = vmul.f32 %v1054, %v1056
        %v1065 = vmul.f32 %v1054, %v1057
        %v1066 = vmul.f32 %v1054, %v1058
        %v1067 = vmul.f32 %v1054, %v1059
        %v1068 = vmul.f32 %v1054, %v1060
        %v1069 = vmul.f32 %v1054, %v1061
        %v1070 = vmul.f32 %v1054, %v1062
        %v1071 = vld [vmem:[%s583] sm:$0xff]
        %v1073 = vcombine.high %v1071, %v1071
        %v1075 = vunpack.c.l.s4 1966171168
        %v1076 = vunpack.c.0.s8 %v1075
        %v1077 = vlaneseq
        %v1078 = vshrl.u32 %v1077, 7
        %v1079 = vsub.s32 %v1076, %v1078
        %v1080 = vrot.slane %v1071, %v1079
        %v1082 = vunpack.c.l.s4 1966171168
        %v1083 = vunpack.c.0.s8 %v1082
        %v1084 = vlaneseq
        %v1085 = vshrl.u32 %v1084, 7
        %v1086 = vsub.s32 %v1083, %v1085
        %v1087 = vrot.slane %v1073, %v1086
        %v1088 = vcombine.high %v1080, %v1080
        %v1089 = vcombine.high %v1087, %v1087
        %v1091 = vunpack.c.l.s4 1966171168
        %v1092 = vunpack.c.0.s8 %v1091
        %v1093 = vlaneseq
        %v1094 = vshrl.u32 %v1093, 7
        %v1095 = vsub.s32 %v1092, %v1094
        %v1096 = vrot.slane %v1080, %v1095
        %v1098 = vunpack.c.l.s4 1966171168
        %v1099 = vunpack.c.0.s8 %v1098
        %v1100 = vlaneseq
        %v1101 = vshrl.u32 %v1100, 7
        %v1102 = vsub.s32 %v1099, %v1101
        %v1103 = vrot.slane %v1087, %v1102
        %v1105 = vunpack.c.l.s4 1966171168
        %v1106 = vunpack.c.0.s8 %v1105
        %v1107 = vlaneseq
        %v1108 = vshrl.u32 %v1107, 7
        %v1109 = vsub.s32 %v1106, %v1108
        %v1110 = vrot.slane %v1088, %v1109
        %v1112 = vunpack.c.l.s4 1966171168
        %v1113 = vunpack.c.0.s8 %v1112
        %v1114 = vlaneseq
        %v1115 = vshrl.u32 %v1114, 7
        %v1116 = vsub.s32 %v1113, %v1115
        %v1117 = vrot.slane %v1089, %v1116
        %v1118 = vcombine.high %v1096, %v1096
        %v1119 = vcombine.high %v1103, %v1103
        %v1120 = vcombine.high %v1110, %v1110
        %v1121 = vcombine.high %v1117, %v1117
        %v1122 = vlaneseq
        %v1123 = vshrl.u32 %v1122, 7
        %v1124 = vsub.s32 0, %v1123
        %v1125 = vrot.slane %v1096, %v1124
        %v1126 = vlaneseq
        %v1127 = vshrl.u32 %v1126, 7
        %v1128 = vsub.s32 0, %v1127
        %v1129 = vrot.slane %v1110, %v1128
        %v1130 = vlaneseq
        %v1131 = vshrl.u32 %v1130, 7
        %v1132 = vsub.s32 0, %v1131
        %v1133 = vrot.slane %v1118, %v1132
        %v1134 = vlaneseq
        %v1135 = vshrl.u32 %v1134, 7
        %v1136 = vsub.s32 0, %v1135
        %v1137 = vrot.slane %v1120, %v1136
        %v1138 = vlaneseq
        %v1139 = vshrl.u32 %v1138, 7
        %v1140 = vsub.s32 0, %v1139
        %v1141 = vrot.slane %v1103, %v1140
        %v1142 = vlaneseq
        %v1143 = vshrl.u32 %v1142, 7
        %v1144 = vsub.s32 0, %v1143
        %v1145 = vrot.slane %v1117, %v1144
        %v1146 = vlaneseq
        %v1147 = vshrl.u32 %v1146, 7
        %v1148 = vsub.s32 0, %v1147
        %v1149 = vrot.slane %v1119, %v1148
        %v1150 = vlaneseq
        %v1151 = vshrl.u32 %v1150, 7
        %v1152 = vsub.s32 0, %v1151
        %v1153 = vrot.slane %v1121, %v1152
        %1154 = vset.pattern.permute.xlu0 0
        %1155 = vperm.xlu0 %1154, %v1125
        %v1156 = vpop.permute.xlu0 %1155
        %1158 = vset.pattern.permute.xlu0 0
        %1159 = vperm.xlu0 %1158, %v1129
        %v1160 = vpop.permute.xlu0 %1159
        %1162 = vset.pattern.permute.xlu0 0
        %1163 = vperm.xlu0 %1162, %v1133
        %v1164 = vpop.permute.xlu0 %1163
        %1166 = vset.pattern.permute.xlu0 0
        %1167 = vperm.xlu0 %1166, %v1137
        %v1168 = vpop.permute.xlu0 %1167
        %1170 = vset.pattern.permute.xlu0 0
        %1171 = vperm.xlu0 %1170, %v1141
        %v1172 = vpop.permute.xlu0 %1171
        %1174 = vset.pattern.permute.xlu0 0
        %1175 = vperm.xlu0 %1174, %v1145
        %v1176 = vpop.permute.xlu0 %1175
        %1178 = vset.pattern.permute.xlu0 0
        %1179 = vperm.xlu0 %1178, %v1149
        %v1180 = vpop.permute.xlu0 %1179
        %1182 = vset.pattern.permute.xlu0 0
        %1183 = vperm.xlu0 %1182, %v1153
        %v1184 = vpop.permute.xlu0 %1183
        %v1186 = vadd.f32 %v1063, %v1156
        %v1187 = vadd.f32 %v1064, %v1160
        %v1188 = vadd.f32 %v1065, %v1164
        %v1189 = vadd.f32 %v1066, %v1168
        %v1190 = vadd.f32 %v1067, %v1172
        %v1191 = vadd.f32 %v1068, %v1176
        %v1192 = vadd.f32 %v1069, %v1180
        %v1193 = vadd.f32 %v1070, %v1184
        %vm1194 = vcmask 130048
        %1195 = vst.msk [vmem:[%s555] sm:$0xff] %vm1194, %v1186
        %1196 = vst.msk [vmem:[%s555 + $0x8] sm:$0xff] %vm1194, %v1187
        %1197 = vst.msk [vmem:[%s555 + $0x10] sm:$0xff] %vm1194, %v1188
        %1198 = vst.msk [vmem:[%s555 + $0x18] sm:$0xff] %vm1194, %v1189
        %1199 = vst.msk [vmem:[%s555 + $0x20] sm:$0xff] %vm1194, %v1190
        %1200 = vst.msk [vmem:[%s555 + $0x28] sm:$0xff] %vm1194, %v1191
        %1201 = vst.msk [vmem:[%s555 + $0x30] sm:$0xff] %vm1194, %v1192
        %1202 = vst.msk [vmem:[%s555 + $0x38] sm:$0xff] %vm1194, %v1193
        %s1203 = sand.u32 %s320, 1
        %s1204 = scalar_lea.sflag [#allocation4], %s1203
        %s1205 = sand.u32 %s320, 1
        %s1206 = smul.addr %s1205, 64
        %s1207 = scalar_lea.vmem [#allocation3], %s1206
        // Predicated region
        $region103: #{fpa_forward.17} parent=97 // pred_check
          %p1208 = pneg %p330
        $region104: #{fpa_forward.17} parent=97 // pred_check_branch
          %1210 = sbr.rel (%p1208) target = $region106
        $region105: #{fpa_forward.17} parent=97 // pred_region
          %s1212 = ssub.s32 1024, 1024
          %1213 = vsyncadd %s1204, %s1212
          %s1214 = smul.addr %s29, 16
          %s1215 = sadd.s32 %s30, %s1214
          %s1216 = smul.addr %s1215, 128
          %s1217 = scalar_lea.hbm %s11, %s1216
          %s1218 = sshll.u32 %s1207, 4
          %s1219 = int_to_ptr.vmem [resolvable:$true] %s1218
          %1224 = dma.vmem_to_hbm [thread:$0]  %s1219, 1024, %s1217, %s1204, 128, 256, 8
        $region106: #{fpa_forward.17} parent=97 // pred_fallthru
          _
      $region98: #{fpa_forward.17} parent=5 // pred_fallthru
        _
      %p1225 = scmp.le.s32.totalorder 2, %s20
      // Predicated region
      $region107: #{fpa_forward.17} parent=5 // pred_check
        %p1226 = pneg %p1225
      $region108: #{fpa_forward.17} parent=5 // pred_check_branch
        %1228 = sbr.rel (%p1226) target = $region110
      $region109: #{fpa_forward.17} parent=5 // pred_region
        %s1229 = ssub.s32 %s20, 2
        // Predicated region
        $region111: #{fpa_forward.17} parent=109 // pred_check
          %p1230 = pneg %p336
        $region112: #{fpa_forward.17} parent=109 // pred_check_branch
          %1232 = sbr.rel (%p1230) target = $region114
        $region113: #{fpa_forward.17} parent=109 // pred_region
          %s1233 = sand.u32 %s321, 1
          %s1234 = scalar_lea.sflag [#allocation4], %s1233
          %s1235 = sand.u32 %s321, 1
          %s1236 = smul.addr %s1235, 64
          %s1237 = scalar_lea.vmem [#allocation3], %s1236
          %1238 = dma.done %s1234, 1024
        $region114: #{fpa_forward.17} parent=109 // pred_fallthru
          _
      $region110: #{fpa_forward.17} parent=5 // pred_fallthru
        _
    $region6: #{fpa_forward.17} parent=1 // loop_footer
      %s24 = sadd.s32 1, %s20
    $region7: #{fpa_forward.17} parent=1 // loop_footer_branch
      %19 = sbr.rel target = $region3
    $region8: #{fpa_forward.17} parent=1 // loop_exit
      _
    %1239 = vsyncpa [#allocation4], 1
    %s1240 = scalar_lea.sflag [#allocation4], 1
    %1241 = vsyncpa %s1240, 1

</llo_original>
